<compile_context>
chip_gen: v7x
topology: tpu7x:2x2x1
jax: 0.10.0
libtpu: 0.0.40
codegen_flags: <defaults>
</compile_context>

<pallas_src>
from functools import partial

import jax
import jax.numpy as jnp
from jax.experimental import pallas as pl
from jax.experimental.pallas import tpu as pltpu

BN_EPS = 1e-5


def _round_up(x, m):
    return ((x + m - 1) // m) * m


# ----------------------------------------------------------------------------
# Pallas kernels (implicit-GEMM conv + folded-BN bias [+ residual/shortcut] + ReLU)
# ----------------------------------------------------------------------------
def _acc_kh_taps(x_ref, w_ref, ho, wo, tn):
    """x_ref: (1, ho+2, wo, K) kw-expanded bf16; w_ref: (3, K, tn) bf16.
    Returns f32 (ho*wo, tn) accumulator (3 unrolled MXU dots over kh)."""
    k = x_ref.shape[3]
    acc = jnp.zeros((ho * wo, tn), jnp.float32)
    for kh in range(3):                                   # static, unrolled
        xk = x_ref[0, kh:kh + ho, :, :].reshape(ho * wo, k)
        acc = acc + jnp.dot(xk, w_ref[kh], preferred_element_type=jnp.float32)
    return acc


def _conv_kh_kernel(x_ref, w_ref, b_ref, o_ref, *, relu):
    _, ho, wo, tn = o_ref.shape
    z = _acc_kh_taps(x_ref, w_ref, ho, wo, tn) + b_ref[...]
    if relu:
        z = jnp.maximum(z, 0.0)
    o_ref[0] = z.reshape(ho, wo, tn).astype(o_ref.dtype)


def _conv_kh_res_kernel(x_ref, w_ref, b_ref, r_ref, o_ref):
    """conv3x3(s=1) + bias + identity residual + ReLU."""
    _, ho, wo, tn = o_ref.shape
    z = _acc_kh_taps(x_ref, w_ref, ho, wo, tn) + b_ref[...]
    z = z + r_ref[0].reshape(ho * wo, tn).astype(jnp.float32)
    o_ref[0] = jnp.maximum(z, 0.0).reshape(ho, wo, tn).astype(o_ref.dtype)


def _conv_kh_shortcut_kernel(x_ref, w_ref, b_ref, xs_ref, ws_ref, bs_ref, o_ref):
    """conv3x3(s=1) + bias + fused (1x1 conv + BN) shortcut + ReLU."""
    _, ho, wo, tn = o_ref.shape
    z = _acc_kh_taps(x_ref, w_ref, ho, wo, tn) + b_ref[...]
    cip = xs_ref.shape[3]
    res = jnp.dot(xs_ref[0].reshape(ho * wo, cip), ws_ref[...],
                  preferred_element_type=jnp.float32) + bs_ref[...]
    o_ref[0] = jnp.maximum(z + res, 0.0).reshape(ho, wo, tn).astype(o_ref.dtype)


def _conv_full_kernel(x_ref, w_ref, b_ref, o_ref, *, relu):
    """stride-2 conv via one dot over the full 9-tap expansion."""
    _, ho, wo, tn = o_ref.shape
    k = x_ref.shape[3]
    z = jnp.dot(x_ref[0].reshape(ho * wo, k), w_ref[...],
                preferred_element_type=jnp.float32) + b_ref[...]
    if relu:
        z = jnp.maximum(z, 0.0)
    o_ref[0] = z.reshape(ho, wo, tn).astype(o_ref.dtype)


# ----------------------------------------------------------------------------
# pallas_call wrapper
# ----------------------------------------------------------------------------
def _conv_pallas(x_exp, w, b, *, kh_taps, relu=True, residual=None, shortcut=None):
    """x_exp: (N, Hx, Wo, K) bf16 expanded input; w: (3,K,Cop) or (K,Cop) bf16;
    b: (1, Cop) f32.  Returns (N, Ho, Wo, Cop) bf16."""
    n, hx, wo, k = x_exp.shape
    cop = w.shape[-1]
    ho = hx - 2 if kh_taps else hx
    tn = 256 if cop % 256 == 0 else 128           # fill 256-wide MXU on v6e/v7x
    grid = (n, cop // tn)

    x_spec = pl.BlockSpec((1, hx, wo, k), lambda i, j: (i, 0, 0, 0))
    if kh_taps:
        w_spec = pl.BlockSpec((3, k, tn), lambda i, j: (0, 0, j))   # resident
    else:
        w_spec = pl.BlockSpec((k, tn), lambda i, j: (0, j))
    b_spec = pl.BlockSpec((1, tn), lambda i, j: (0, j))
    o_spec = pl.BlockSpec((1, ho, wo, tn), lambda i, j: (i, 0, 0, j))

    in_specs = [x_spec, w_spec, b_spec]
    args = [x_exp, w, b]

    if shortcut is not None:
        xs, ws, bs = shortcut
        cip = xs.shape[-1]
        in_specs += [pl.BlockSpec((1, ho, wo, cip), lambda i, j: (i, 0, 0, 0)),
                     pl.BlockSpec((cip, tn), lambda i, j: (0, j)),
                     pl.BlockSpec((1, tn), lambda i, j: (0, j))]
        args += [xs, ws, bs]
        kernel = _conv_kh_shortcut_kernel
    elif residual is not None:
        in_specs += [pl.BlockSpec((1, ho, wo, tn), lambda i, j: (i, 0, 0, j))]
        args += [residual]
        kernel = _conv_kh_res_kernel
    else:
        kernel = partial(_conv_kh_kernel if kh_taps else _conv_full_kernel, relu=relu)

    return pl.pallas_call(
        kernel,
        out_shape=jax.ShapeDtypeStruct((n, ho, wo, cop), jnp.bfloat16),
        grid_spec=pltpu.PrefetchScalarGridSpec(
            num_scalar_prefetch=0,
            grid=grid,
            in_specs=in_specs,
            out_specs=o_spec,
        ),
        compiler_params=pltpu.CompilerParams(
            dimension_semantics=("parallel", "parallel"),
            vmem_limit_bytes=32 * 1024 * 1024),
    )(*args)


# ----------------------------------------------------------------------------
# Plain-JAX glue: tap expansion (bf16), BN folding, parameter preparation
# ----------------------------------------------------------------------------
def _pad_ch(x, c):
    return x if x.shape[-1] == c else jnp.pad(
        x, ((0, 0), (0, 0), (0, 0), (0, c - x.shape[-1])))


def _expand_kw(x, kpad):
    """Stride-1 3x3 (pad=1): (N,H,W,C) -> (N,H+2,W,kpad) with the 3 kw taps
    concatenated on the channel axis (kh taps handled inside the kernel)."""
    n, h, w, c = x.shape
    xp = jnp.pad(x, ((0, 0), (1, 1), (1, 1), (0, 0)))
    e = jnp.concatenate([xp[:, :, kw:kw + w, :] for kw in range(3)], axis=-1)
    if kpad > 3 * c:
        e = jnp.pad(e, ((0, 0), (0, 0), (0, 0), (0, kpad - 3 * c)))
    return e


def _expand_full_s2(x, kpad):
    """Stride-2 3x3 (pad=1): full 9-tap expansion (N,Ho,Wo,kpad)."""
    n, h, w, c = x.shape
    ho = (h + 2 - 3) // 2 + 1
    wo = (w + 2 - 3) // 2 + 1
    xp = jnp.pad(x, ((0, 0), (1, 1), (1, 1), (0, 0)))
    taps = []
    for kh in range(3):
        for kw in range(3):
            taps.append(xp[:, kh:kh + 2 * ho - 1:2, kw:kw + 2 * wo - 1:2, :])
    e = jnp.concatenate(taps, axis=-1)
    if kpad > 9 * c:
        e = jnp.pad(e, ((0, 0), (0, 0), (0, 0), (0, kpad - 9 * c)))
    return e


def fold_bn(bn):
    scale = bn["gamma"] / jnp.sqrt(bn["var"] + BN_EPS)
    bias = bn["beta"] - bn["mean"] * scale
    return scale, bias


def _prepare_block(p, in_act_ch):
    """Fold BN into weights, reshape/pad to kernel-ready layouts (done once).
    in_act_ch: channel count of the activation actually entering this block."""
    cin = p["w1"].shape[2]
    cout = p["w1"].shape[3]
    cop = _round_up(cout, 128)
    stride = p["downsampling"]
    s1, b1 = fold_bn(p["bn1"])
    s2, b2 = fold_bn(p["bn2"])
    bp = {"stride": stride, "cout": cout, "cop": cop}

    # conv1
    if stride == 2:
        w1 = (p["w1"] * s1[None, None, None, :]).reshape(9 * cin, cout)
        k1p = _round_up(9 * cin, 128)
        bp["w1"] = jnp.pad(w1, ((0, k1p - 9 * cin), (0, cop - cout))).astype(jnp.bfloat16)
    else:
        w1 = p["w1"] * s1[None, None, None, :]
        w1 = jnp.pad(w1, ((0, 0), (0, 0), (0, in_act_ch - cin), (0, 0)))
        w1 = w1.reshape(3, 3 * in_act_ch, cout)
        k1p = _round_up(3 * in_act_ch, 128)
        bp["w1"] = jnp.pad(w1, ((0, 0), (0, k1p - 3 * in_act_ch),
                                (0, cop - cout))).astype(jnp.bfloat16)
    bp["k1_pad"] = k1p
    bp["b1"] = jnp.pad(b1, (0, cop - cout)).astype(jnp.float32).reshape(1, cop)

    # conv2 (input channels = cop, the padded conv1 output)
    w2 = p["w2"] * s2[None, None, None, :]
    w2 = jnp.pad(w2, ((0, 0), (0, 0), (0, cop - cout), (0, cop - cout)))
    bp["w2"] = w2.reshape(3, 3 * cop, cop).astype(jnp.bfloat16)
    bp["k2_pad"] = 3 * cop
    bp["b2"] = jnp.pad(b2, (0, cop - cout)).astype(jnp.float32).reshape(1, cop)

    # 1x1 shortcut (fused into the conv2 kernel epilogue)
    if "ws" in p:
        ss, bs = fold_bn(p["bns"])
        cip = _round_up(cin, 128)
        ws = p["ws"].reshape(cin, cout) * ss[None, :]
        bp["ws"] = jnp.pad(ws, ((0, cip - cin), (0, cop - cout))).astype(jnp.bfloat16)
        bp["bs"] = jnp.pad(bs, (0, cop - cout)).astype(jnp.float32).reshape(1, cop)
    return bp


def prepare_layer_params(raw_blocks, in_channels):
    prepared = []
    in_act = in_channels
    for p in raw_blocks:
        bp = _prepare_block(p, in_act)
        prepared.append(bp)
        in_act = bp["cop"]
    return prepared


# ----------------------------------------------------------------------------
# Parameter init (mirrors the PyTorch module structure)
# ----------------------------------------------------------------------------
def init_bn(key, c):
    k1, k2, k3, k4 = jax.random.split(key, 4)
    return {
        "gamma": jax.random.uniform(k1, (c,), jnp.float32, 0.5, 1.5),
        "beta": jax.random.uniform(k2, (c,), jnp.float32, -0.5, 0.5),
        "mean": jax.random.uniform(k3, (c,), jnp.float32, -0.5, 0.5),
        "var": jax.random.uniform(k4, (c,), jnp.float32, 0.5, 1.5),
    }


def init_block_params(key, cin, cout, downsampling):
    keys = jax.random.split(key, 6)
    params = {
        "w1": 0.1 * jax.random.normal(keys[0], (3, 3, cin, cout), jnp.float32),
        "bn1": init_bn(keys[1], cout),
        "w2": 0.1 * jax.random.normal(keys[2], (3, 3, cout, cout), jnp.float32),
        "bn2": init_bn(keys[3], cout),
        "downsampling": downsampling,
    }
    if cin != cout:  # should_apply_shortcut
        params["ws"] = 0.1 * jax.random.normal(keys[4], (1, 1, cin, cout), jnp.float32)
        params["bns"] = init_bn(keys[5], cout)
    return params


def init_layer_params(key, in_channels, out_channels, n):
    downsampling = 2 if in_channels != out_channels else 1
    keys = jax.random.split(key, n)
    blocks = [init_block_params(keys[0], in_channels, out_channels, downsampling)]
    for i in range(1, n):
        blocks.append(init_block_params(keys[i], out_channels, out_channels, 1))
    return blocks


# ----------------------------------------------------------------------------
# Forward pass (Pallas-based)
# ----------------------------------------------------------------------------
def basic_block_forward(x, bp):
    """x: (N,H,W,C) bf16 NHWC (C may already be lane-padded).  Returns
    (N,Ho,Wo,Cop) bf16."""
    stride = bp["stride"]
    cop = bp["cop"]

    # conv1 + bn1 + relu
    if stride == 2:
        e1 = _expand_full_s2(x, bp["k1_pad"])
        y1 = _conv_pallas(e1, bp["w1"], bp["b1"], kh_taps=False, relu=True)
    else:
        e1 = _expand_kw(x, bp["k1_pad"])
        y1 = _conv_pallas(e1, bp["w1"], bp["b1"], kh_taps=True, relu=True)

    # conv2 + bn2, fused residual/shortcut add + final relu
    e2 = _expand_kw(y1, bp["k2_pad"])
    if "ws" in bp:
        xs = _pad_ch(x[:, ::stride, ::stride, :], bp["ws"].shape[0])
        out = _conv_pallas(e2, bp["w2"], bp["b2"], kh_taps=True,
                           shortcut=(xs, bp["ws"], bp["bs"]))
    else:
        r = x if x.shape[-1] == cop else _pad_ch(x, cop)
        out = _conv_pallas(e2, bp["w2"], bp["b2"], kh_taps=True, residual=r)
    return out


def resnet_layer_forward(x_nchw, prepared):
    x = jnp.transpose(x_nchw, (0, 2, 3, 1)).astype(jnp.bfloat16)   # NCHW -> NHWC bf16
    for bp in prepared:
        x = basic_block_forward(x, bp)
    cout = prepared[-1]["cout"]
    return jnp.transpose(x[..., :cout].astype(jnp.float32), (0, 3, 1, 2))


# ----------------------------------------------------------------------------
# Reference (lax.conv) mirroring the kernel numerics:
# BN folded in eval mode, bf16 conv operands / inter-block activations, f32 accum.
# ----------------------------------------------------------------------------
def _conv_bn_ref(x, w, bn, stride, pad, relu):
    scale, bias = fold_bn(bn)
    w_f = (w * scale[None, None, None, :]).astype(jnp.bfloat16)
    y = jax.lax.conv_general_dilated(
        x.astype(jnp.bfloat16), w_f, (stride, stride), ((pad, pad), (pad, pad)),
        dimension_numbers=("NHWC", "HWIO", "NHWC"),
        preferred_element_type=jnp.float32)
    y = y + bias
    return jnp.maximum(y, 0.0) if relu else y


def _block_ref(x, p):
    stride = p["downsampling"]
    if "ws" in p:
        residual = _conv_bn_ref(x, p["ws"], p["bns"], stride, 0, relu=False)
    else:
        residual = x
    y = _conv_bn_ref(x, p["w1"], p["bn1"], stride, 1, relu=True)
    y = _conv_bn_ref(y.astype(jnp.bfloat16), p["w2"], p["bn2"], 1, 1, relu=False)
    return jnp.maximum(y + residual, 0.0)


def resnet_layer_ref(x_nchw, raw_params):
    x = jnp.transpose(x_nchw, (0, 2, 3, 1)).astype(jnp.bfloat16)
    for p in raw_params:
        x = _block_ref(x, p).astype(jnp.bfloat16)
    return jnp.transpose(x.astype(jnp.float32), (0, 3, 1, 2))


# ----------------------------------------------------------------------------
if __name__ == "__main__":
    key = jax.random.PRNGKey(0)
    k_x, k_p = jax.random.split(key)

    # ResNetLayer(in_channels=4, out_channels=8, n=2):
    #   block 1: 4 -> 8, downsampling=2, 1x1-conv shortcut (fused)
    #   block 2: 8 -> 8, downsampling=1, identity shortcut (fused)
    in_channels, out_channels, n_blocks = 4, 8, 2
    x = jax.random.normal(k_x, (2, in_channels, 16, 16), jnp.float32)  # NCHW

    raw_params = init_layer_params(k_p, in_channels, out_channels, n_blocks)
    prepared = prepare_layer_params(raw_params, in_channels)   # one-time BN fold / pad

    fwd = jax.jit(lambda xx: resnet_layer_forward(xx, prepared))
    out = jax.block_until_ready(fwd(x))

    ref = jax.block_until_ready(resnet_layer_ref(x, raw_params))
    assert out.shape == (2, out_channels, 8, 8), out.shape
    max_err = float(jnp.abs(out - ref).max())
    assert jnp.allclose(out, ref, atol=2e-2, rtol=2e-2), max_err

    print("KERNEL_OK")
</pallas_src>

<mosaic_0001>
module attributes {stable_mosaic.version = 11 : i64} {
  func.func @_conv_kh_res_kernel(%arg0: i32, %arg1: i32, %arg2: memref<1x10x8x384xbf16, #tpu.memory_space<vmem>>, %arg3: memref<3x384x128xbf16, #tpu.memory_space<vmem>>, %arg4: memref<1x128xf32, #tpu.memory_space<vmem>>, %arg5: memref<1x8x8x128xbf16, #tpu.memory_space<vmem>>, %arg6: memref<1x8x8x128xbf16, #tpu.memory_space<vmem>>) attributes {dimension_semantics = [#tpu.dimension_semantics<parallel>, #tpu.dimension_semantics<parallel>], iteration_bounds = array<i64: 2, 1>, scalar_prefetch = 0 : i64, scratch_operands = 0 : i64, tpu.core_type = #tpu.core_type<tc>, window_params = [{transform_indices = @transform_0, window_bounds = array<i64: 1, 10, 8, 384>}, {transform_indices = @transform_1, window_bounds = array<i64: 3, 384, 128>}, {transform_indices = @transform_2, window_bounds = array<i64: 1, 128>}, {transform_indices = @transform_3, window_bounds = array<i64: 1, 8, 8, 128>}, {transform_indices = @transform_4, window_bounds = array<i64: 1, 8, 8, 128>}]} {
    %cst = arith.constant 0.000000e+00 : f32
    %0 = vector.broadcast %cst : f32 to vector<64x128xf32>
    %c0 = arith.constant 0 : index
    %c0_0 = arith.constant 0 : index
    %c0_1 = arith.constant 0 : index
    %c0_2 = arith.constant 0 : index
    %1 = vector.load %arg2[%c0, %c0_0, %c0_1, %c0_2] : memref<1x10x8x384xbf16, #tpu.memory_space<vmem>>, vector<1x8x8x384xbf16>
    %2 = vector.shape_cast %1 : vector<1x8x8x384xbf16> to vector<8x8x384xbf16>
    %3 = vector.shape_cast %2 : vector<8x8x384xbf16> to vector<64x384xbf16>
    %c0_3 = arith.constant 0 : index
    %c0_4 = arith.constant 0 : index
    %c0_5 = arith.constant 0 : index
    %4 = vector.load %arg3[%c0_3, %c0_4, %c0_5] : memref<3x384x128xbf16, #tpu.memory_space<vmem>>, vector<1x384x128xbf16>
    %5 = vector.shape_cast %4 : vector<1x384x128xbf16> to vector<384x128xbf16>
    %cst_6 = arith.constant dense<0.000000e+00> : vector<64x128xf32>
    %6 = tpu.matmul %3, %5, %cst_6 {dimension_numbers = #tpu.dot_dimension_numbers<[1], [0], [0], [1], [0, 0, 1, 1], [], []>} : vector<64x384xbf16>, vector<384x128xbf16>, vector<64x128xf32> -> vector<64x128xf32>
    %7 = arith.addf %0, %6 : vector<64x128xf32>
    %c0_7 = arith.constant 0 : index
    %c1 = arith.constant 1 : index
    %c0_8 = arith.constant 0 : index
    %c0_9 = arith.constant 0 : index
    %8 = vector.load %arg2[%c0_7, %c1, %c0_8, %c0_9] : memref<1x10x8x384xbf16, #tpu.memory_space<vmem>>, vector<1x8x8x384xbf16>
    %9 = vector.shape_cast %8 : vector<1x8x8x384xbf16> to vector<8x8x384xbf16>
    %10 = vector.shape_cast %9 : vector<8x8x384xbf16> to vector<64x384xbf16>
    %c1_10 = arith.constant 1 : index
    %c0_11 = arith.constant 0 : index
    %c0_12 = arith.constant 0 : index
    %11 = vector.load %arg3[%c1_10, %c0_11, %c0_12] : memref<3x384x128xbf16, #tpu.memory_space<vmem>>, vector<1x384x128xbf16>
    %12 = vector.shape_cast %11 : vector<1x384x128xbf16> to vector<384x128xbf16>
    %cst_13 = arith.constant dense<0.000000e+00> : vector<64x128xf32>
    %13 = tpu.matmul %10, %12, %cst_13 {dimension_numbers = #tpu.dot_dimension_numbers<[1], [0], [0], [1], [0, 0, 1, 1], [], []>} : vector<64x384xbf16>, vector<384x128xbf16>, vector<64x128xf32> -> vector<64x128xf32>
    %14 = arith.addf %7, %13 : vector<64x128xf32>
    %c0_14 = arith.constant 0 : index
    %c2 = arith.constant 2 : index
    %c0_15 = arith.constant 0 : index
    %c0_16 = arith.constant 0 : index
    %15 = vector.load %arg2[%c0_14, %c2, %c0_15, %c0_16] : memref<1x10x8x384xbf16, #tpu.memory_space<vmem>>, vector<1x8x8x384xbf16>
    %16 = vector.shape_cast %15 : vector<1x8x8x384xbf16> to vector<8x8x384xbf16>
    %17 = vector.shape_cast %16 : vector<8x8x384xbf16> to vector<64x384xbf16>
    %c2_17 = arith.constant 2 : index
    %c0_18 = arith.constant 0 : index
    %c0_19 = arith.constant 0 : index
    %18 = vector.load %arg3[%c2_17, %c0_18, %c0_19] : memref<3x384x128xbf16, #tpu.memory_space<vmem>>, vector<1x384x128xbf16>
    %19 = vector.shape_cast %18 : vector<1x384x128xbf16> to vector<384x128xbf16>
    %cst_20 = arith.constant dense<0.000000e+00> : vector<64x128xf32>
    %20 = tpu.matmul %17, %19, %cst_20 {dimension_numbers = #tpu.dot_dimension_numbers<[1], [0], [0], [1], [0, 0, 1, 1], [], []>} : vector<64x384xbf16>, vector<384x128xbf16>, vector<64x128xf32> -> vector<64x128xf32>
    %21 = arith.addf %14, %20 : vector<64x128xf32>
    %c0_21 = arith.constant 0 : index
    %c0_22 = arith.constant 0 : index
    %22 = vector.load %arg4[%c0_21, %c0_22] : memref<1x128xf32, #tpu.memory_space<vmem>>, vector<1x128xf32>
    %23 = vector.broadcast %22 : vector<1x128xf32> to vector<64x128xf32>
    %24 = arith.addf %21, %23 : vector<64x128xf32>
    %c0_23 = arith.constant 0 : index
    %c0_24 = arith.constant 0 : index
    %c0_25 = arith.constant 0 : index
    %c0_26 = arith.constant 0 : index
    %25 = vector.load %arg5[%c0_23, %c0_24, %c0_25, %c0_26] : memref<1x8x8x128xbf16, #tpu.memory_space<vmem>>, vector<1x8x8x128xbf16>
    %26 = vector.shape_cast %25 : vector<1x8x8x128xbf16> to vector<8x8x128xbf16>
    %27 = vector.shape_cast %26 : vector<8x8x128xbf16> to vector<64x128xbf16>
    %28 = arith.extf %27 : vector<64x128xbf16> to vector<64x128xf32>
    %29 = arith.addf %24, %28 : vector<64x128xf32>
    %cst_27 = arith.constant 0.000000e+00 : f32
    %30 = vector.broadcast %cst_27 : f32 to vector<64x128xf32>
    %31 = arith.maximumf %29, %30 : vector<64x128xf32>
    %32 = vector.shape_cast %31 : vector<64x128xf32> to vector<8x8x128xf32>
    %33 = arith.truncf %32 : vector<8x8x128xf32> to vector<8x8x128xbf16>
    %c0_28 = arith.constant 0 : index
    %c0_29 = arith.constant 0 : index
    %c0_30 = arith.constant 0 : index
    %c0_31 = arith.constant 0 : index
    %34 = vector.load %arg6[%c0_28, %c0_29, %c0_30, %c0_31] : memref<1x8x8x128xbf16, #tpu.memory_space<vmem>>, vector<1x8x8x128xbf16>
    %35 = vector.shape_cast %34 : vector<1x8x8x128xbf16> to vector<8x8x128xbf16>
    %36 = vector.shape_cast %33 : vector<8x8x128xbf16> to vector<1x8x8x128xbf16>
    tpu.vector_store %arg6[%c0_28, %c0_29, %c0_30, %c0_31], %36 {strides = array<i32>} : memref<1x8x8x128xbf16, #tpu.memory_space<vmem>>, vector<1x8x8x128xbf16>,
    return
  }
  func.func @transform_0(%arg0: i32, %arg1: i32) -> (i32, i32, i32, i32) {
    %c0_i32 = arith.constant 0 : i32
    %c0_i32_0 = arith.constant 0 : i32
    %c0_i32_1 = arith.constant 0 : i32
    %c0_i32_2 = arith.constant 0 : i32
    return %arg0, %c0_i32, %c0_i32_0, %c0_i32_1 : i32, i32, i32, i32
  }
  func.func @transform_1(%arg0: i32, %arg1: i32) -> (i32, i32, i32) {
    %c0_i32 = arith.constant 0 : i32
    %c0_i32_0 = arith.constant 0 : i32
    %c0_i32_1 = arith.constant 0 : i32
    return %c0_i32, %c0_i32_0, %arg1 : i32, i32, i32
  }
  func.func @transform_2(%arg0: i32, %arg1: i32) -> (i32, i32) {
    %c0_i32 = arith.constant 0 : i32
    %c0_i32_0 = arith.constant 0 : i32
    return %c0_i32, %arg1 : i32, i32
  }
  func.func @transform_3(%arg0: i32, %arg1: i32) -> (i32, i32, i32, i32) {
    %c0_i32 = arith.constant 0 : i32
    %c0_i32_0 = arith.constant 0 : i32
    %c0_i32_1 = arith.constant 0 : i32
    return %arg0, %c0_i32, %c0_i32_0, %arg1 : i32, i32, i32, i32
  }
  func.func @transform_4(%arg0: i32, %arg1: i32) -> (i32, i32, i32, i32) {
    %c0_i32 = arith.constant 0 : i32
    %c0_i32_0 = arith.constant 0 : i32
    %c0_i32_1 = arith.constant 0 : i32
    return %arg0, %c0_i32, %c0_i32_0, %arg1 : i32, i32, i32, i32
  }
}

module attributes {stable_mosaic.version = 11 : i64} {
  func.func @_conv_full_kernel(%arg0: i32, %arg1: i32, %arg2: memref<1x8x8x128xbf16, #tpu.memory_space<vmem>>, %arg3: memref<128x128xbf16, #tpu.memory_space<vmem>>, %arg4: memref<1x128xf32, #tpu.memory_space<vmem>>, %arg5: memref<1x8x8x128xbf16, #tpu.memory_space<vmem>>) attributes {dimension_semantics = [#tpu.dimension_semantics<parallel>, #tpu.dimension_semantics<parallel>], iteration_bounds = array<i64: 2, 1>, scalar_prefetch = 0 : i64, scratch_operands = 0 : i64, tpu.core_type = #tpu.core_type<tc>, window_params = [{transform_indices = @transform_0, window_bounds = array<i64: 1, 8, 8, 128>}, {transform_indices = @transform_1, window_bounds = array<i64: 128, 128>}, {transform_indices = @transform_2, window_bounds = array<i64: 1, 128>}, {transform_indices = @transform_3, window_bounds = array<i64: 1, 8, 8, 128>}]} {
    %c0 = arith.constant 0 : index
    %c0_0 = arith.constant 0 : index
    %c0_1 = arith.constant 0 : index
    %c0_2 = arith.constant 0 : index
    %0 = vector.load %arg2[%c0, %c0_0, %c0_1, %c0_2] : memref<1x8x8x128xbf16, #tpu.memory_space<vmem>>, vector<1x8x8x128xbf16>
    %1 = vector.shape_cast %0 : vector<1x8x8x128xbf16> to vector<8x8x128xbf16>
    %2 = vector.shape_cast %1 : vector<8x8x128xbf16> to vector<64x128xbf16>
    %c0_3 = arith.constant 0 : index
    %c0_4 = arith.constant 0 : index
    %3 = vector.load %arg3[%c0_3, %c0_4] : memref<128x128xbf16, #tpu.memory_space<vmem>>, vector<128x128xbf16>
    %cst = arith.constant dense<0.000000e+00> : vector<64x128xf32>
    %4 = tpu.matmul %2, %3, %cst {dimension_numbers = #tpu.dot_dimension_numbers<[1], [0], [0], [1], [0, 0, 1, 1], [], []>} : vector<64x128xbf16>, vector<128x128xbf16>, vector<64x128xf32> -> vector<64x128xf32>
    %c0_5 = arith.constant 0 : index
    %c0_6 = arith.constant 0 : index
    %5 = vector.load %arg4[%c0_5, %c0_6] : memref<1x128xf32, #tpu.memory_space<vmem>>, vector<1x128xf32>
    %6 = vector.broadcast %5 : vector<1x128xf32> to vector<64x128xf32>
    %7 = arith.addf %4, %6 : vector<64x128xf32>
    %cst_7 = arith.constant 0.000000e+00 : f32
    %8 = vector.broadcast %cst_7 : f32 to vector<64x128xf32>
    %9 = arith.maximumf %7, %8 : vector<64x128xf32>
    %10 = vector.shape_cast %9 : vector<64x128xf32> to vector<8x8x128xf32>
    %11 = arith.truncf %10 : vector<8x8x128xf32> to vector<8x8x128xbf16>
    %c0_8 = arith.constant 0 : index
    %c0_9 = arith.constant 0 : index
    %c0_10 = arith.constant 0 : index
    %c0_11 = arith.constant 0 : index
    %12 = vector.load %arg5[%c0_8, %c0_9, %c0_10, %c0_11] : memref<1x8x8x128xbf16, #tpu.memory_space<vmem>>, vector<1x8x8x128xbf16>
    %13 = vector.shape_cast %12 : vector<1x8x8x128xbf16> to vector<8x8x128xbf16>
    %14 = vector.shape_cast %11 : vector<8x8x128xbf16> to vector<1x8x8x128xbf16>
    tpu.vector_store %arg5[%c0_8, %c0_9, %c0_10, %c0_11], %14 {strides = array<i32>} : memref<1x8x8x128xbf16, #tpu.memory_space<vmem>>, vector<1x8x8x128xbf16>,
    return
  }
  func.func @transform_0(%arg0: i32, %arg1: i32) -> (i32, i32, i32, i32) {
    %c0_i32 = arith.constant 0 : i32
    %c0_i32_0 = arith.constant 0 : i32
    %c0_i32_1 = arith.constant 0 : i32
    %c0_i32_2 = arith.constant 0 : i32
    return %arg0, %c0_i32, %c0_i32_0, %c0_i32_1 : i32, i32, i32, i32
  }
  func.func @transform_1(%arg0: i32, %arg1: i32) -> (i32, i32) {
    %c0_i32 = arith.constant 0 : i32
    %c0_i32_0 = arith.constant 0 : i32
    return %c0_i32, %arg1 : i32, i32
  }
  func.func @transform_2(%arg0: i32, %arg1: i32) -> (i32, i32) {
    %c0_i32 = arith.constant 0 : i32
    %c0_i32_0 = arith.constant 0 : i32
    return %c0_i32, %arg1 : i32, i32
  }
  func.func @transform_3(%arg0: i32, %arg1: i32) -> (i32, i32, i32, i32) {
    %c0_i32 = arith.constant 0 : i32
    %c0_i32_0 = arith.constant 0 : i32
    %c0_i32_1 = arith.constant 0 : i32
    return %arg0, %c0_i32, %c0_i32_0, %arg1 : i32, i32, i32, i32
  }
}

module attributes {stable_mosaic.version = 11 : i64} {
  func.func @_conv_kh_kernel(%arg0: i32, %arg1: i32, %arg2: memref<1x10x8x384xbf16, #tpu.memory_space<vmem>>, %arg3: memref<3x384x128xbf16, #tpu.memory_space<vmem>>, %arg4: memref<1x128xf32, #tpu.memory_space<vmem>>, %arg5: memref<1x8x8x128xbf16, #tpu.memory_space<vmem>>) attributes {dimension_semantics = [#tpu.dimension_semantics<parallel>, #tpu.dimension_semantics<parallel>], iteration_bounds = array<i64: 2, 1>, scalar_prefetch = 0 : i64, scratch_operands = 0 : i64, tpu.core_type = #tpu.core_type<tc>, window_params = [{transform_indices = @transform_0, window_bounds = array<i64: 1, 10, 8, 384>}, {transform_indices = @transform_1, window_bounds = array<i64: 3, 384, 128>}, {transform_indices = @transform_2, window_bounds = array<i64: 1, 128>}, {transform_indices = @transform_3, window_bounds = array<i64: 1, 8, 8, 128>}]} {
    %cst = arith.constant 0.000000e+00 : f32
    %0 = vector.broadcast %cst : f32 to vector<64x128xf32>
    %c0 = arith.constant 0 : index
    %c0_0 = arith.constant 0 : index
    %c0_1 = arith.constant 0 : index
    %c0_2 = arith.constant 0 : index
    %1 = vector.load %arg2[%c0, %c0_0, %c0_1, %c0_2] : memref<1x10x8x384xbf16, #tpu.memory_space<vmem>>, vector<1x8x8x384xbf16>
    %2 = vector.shape_cast %1 : vector<1x8x8x384xbf16> to vector<8x8x384xbf16>
    %3 = vector.shape_cast %2 : vector<8x8x384xbf16> to vector<64x384xbf16>
    %c0_3 = arith.constant 0 : index
    %c0_4 = arith.constant 0 : index
    %c0_5 = arith.constant 0 : index
    %4 = vector.load %arg3[%c0_3, %c0_4, %c0_5] : memref<3x384x128xbf16, #tpu.memory_space<vmem>>, vector<1x384x128xbf16>
    %5 = vector.shape_cast %4 : vector<1x384x128xbf16> to vector<384x128xbf16>
    %cst_6 = arith.constant dense<0.000000e+00> : vector<64x128xf32>
    %6 = tpu.matmul %3, %5, %cst_6 {dimension_numbers = #tpu.dot_dimension_numbers<[1], [0], [0], [1], [0, 0, 1, 1], [], []>} : vector<64x384xbf16>, vector<384x128xbf16>, vector<64x128xf32> -> vector<64x128xf32>
    %7 = arith.addf %0, %6 : vector<64x128xf32>
    %c0_7 = arith.constant 0 : index
    %c1 = arith.constant 1 : index
    %c0_8 = arith.constant 0 : index
    %c0_9 = arith.constant 0 : index
    %8 = vector.load %arg2[%c0_7, %c1, %c0_8, %c0_9] : memref<1x10x8x384xbf16, #tpu.memory_space<vmem>>, vector<1x8x8x384xbf16>
    %9 = vector.shape_cast %8 : vector<1x8x8x384xbf16> to vector<8x8x384xbf16>
    %10 = vector.shape_cast %9 : vector<8x8x384xbf16> to vector<64x384xbf16>
    %c1_10 = arith.constant 1 : index
    %c0_11 = arith.constant 0 : index
    %c0_12 = arith.constant 0 : index
    %11 = vector.load %arg3[%c1_10, %c0_11, %c0_12] : memref<3x384x128xbf16, #tpu.memory_space<vmem>>, vector<1x384x128xbf16>
    %12 = vector.shape_cast %11 : vector<1x384x128xbf16> to vector<384x128xbf16>
    %cst_13 = arith.constant dense<0.000000e+00> : vector<64x128xf32>
    %13 = tpu.matmul %10, %12, %cst_13 {dimension_numbers = #tpu.dot_dimension_numbers<[1], [0], [0], [1], [0, 0, 1, 1], [], []>} : vector<64x384xbf16>, vector<384x128xbf16>, vector<64x128xf32> -> vector<64x128xf32>
    %14 = arith.addf %7, %13 : vector<64x128xf32>
    %c0_14 = arith.constant 0 : index
    %c2 = arith.constant 2 : index
    %c0_15 = arith.constant 0 : index
    %c0_16 = arith.constant 0 : index
    %15 = vector.load %arg2[%c0_14, %c2, %c0_15, %c0_16] : memref<1x10x8x384xbf16, #tpu.memory_space<vmem>>, vector<1x8x8x384xbf16>
    %16 = vector.shape_cast %15 : vector<1x8x8x384xbf16> to vector<8x8x384xbf16>
    %17 = vector.shape_cast %16 : vector<8x8x384xbf16> to vector<64x384xbf16>
    %c2_17 = arith.constant 2 : index
    %c0_18 = arith.constant 0 : index
    %c0_19 = arith.constant 0 : index
    %18 = vector.load %arg3[%c2_17, %c0_18, %c0_19] : memref<3x384x128xbf16, #tpu.memory_space<vmem>>, vector<1x384x128xbf16>
    %19 = vector.shape_cast %18 : vector<1x384x128xbf16> to vector<384x128xbf16>
    %cst_20 = arith.constant dense<0.000000e+00> : vector<64x128xf32>
    %20 = tpu.matmul %17, %19, %cst_20 {dimension_numbers = #tpu.dot_dimension_numbers<[1], [0], [0], [1], [0, 0, 1, 1], [], []>} : vector<64x384xbf16>, vector<384x128xbf16>, vector<64x128xf32> -> vector<64x128xf32>
    %21 = arith.addf %14, %20 : vector<64x128xf32>
    %c0_21 = arith.constant 0 : index
    %c0_22 = arith.constant 0 : index
    %22 = vector.load %arg4[%c0_21, %c0_22] : memref<1x128xf32, #tpu.memory_space<vmem>>, vector<1x128xf32>
    %23 = vector.broadcast %22 : vector<1x128xf32> to vector<64x128xf32>
    %24 = arith.addf %21, %23 : vector<64x128xf32>
    %cst_23 = arith.constant 0.000000e+00 : f32
    %25 = vector.broadcast %cst_23 : f32 to vector<64x128xf32>
    %26 = arith.maximumf %24, %25 : vector<64x128xf32>
    %27 = vector.shape_cast %26 : vector<64x128xf32> to vector<8x8x128xf32>
    %28 = arith.truncf %27 : vector<8x8x128xf32> to vector<8x8x128xbf16>
    %c0_24 = arith.constant 0 : index
    %c0_25 = arith.constant 0 : index
    %c0_26 = arith.constant 0 : index
    %c0_27 = arith.constant 0 : index
    %29 = vector.load %arg5[%c0_24, %c0_25, %c0_26, %c0_27] : memref<1x8x8x128xbf16, #tpu.memory_space<vmem>>, vector<1x8x8x128xbf16>
    %30 = vector.shape_cast %29 : vector<1x8x8x128xbf16> to vector<8x8x128xbf16>
    %31 = vector.shape_cast %28 : vector<8x8x128xbf16> to vector<1x8x8x128xbf16>
    tpu.vector_store %arg5[%c0_24, %c0_25, %c0_26, %c0_27], %31 {strides = array<i32>} : memref<1x8x8x128xbf16, #tpu.memory_space<vmem>>, vector<1x8x8x128xbf16>,
    return
  }
  func.func @transform_0(%arg0: i32, %arg1: i32) -> (i32, i32, i32, i32) {
    %c0_i32 = arith.constant 0 : i32
    %c0_i32_0 = arith.constant 0 : i32
    %c0_i32_1 = arith.constant 0 : i32
    %c0_i32_2 = arith.constant 0 : i32
    return %arg0, %c0_i32, %c0_i32_0, %c0_i32_1 : i32, i32, i32, i32
  }
  func.func @transform_1(%arg0: i32, %arg1: i32) -> (i32, i32, i32) {
    %c0_i32 = arith.constant 0 : i32
    %c0_i32_0 = arith.constant 0 : i32
    %c0_i32_1 = arith.constant 0 : i32
    return %c0_i32, %c0_i32_0, %arg1 : i32, i32, i32
  }
  func.func @transform_2(%arg0: i32, %arg1: i32) -> (i32, i32) {
    %c0_i32 = arith.constant 0 : i32
    %c0_i32_0 = arith.constant 0 : i32
    return %c0_i32, %arg1 : i32, i32
  }
  func.func @transform_3(%arg0: i32, %arg1: i32) -> (i32, i32, i32, i32) {
    %c0_i32 = arith.constant 0 : i32
    %c0_i32_0 = arith.constant 0 : i32
    %c0_i32_1 = arith.constant 0 : i32
    return %arg0, %c0_i32, %c0_i32_0, %arg1 : i32, i32, i32, i32
  }
}

module attributes {stable_mosaic.version = 11 : i64} {
  func.func @_conv_kh_shortcut_kernel(%arg0: i32, %arg1: i32, %arg2: memref<1x10x8x384xbf16, #tpu.memory_space<vmem>>, %arg3: memref<3x384x128xbf16, #tpu.memory_space<vmem>>, %arg4: memref<1x128xf32, #tpu.memory_space<vmem>>, %arg5: memref<1x8x8x128xbf16, #tpu.memory_space<vmem>>, %arg6: memref<128x128xbf16, #tpu.memory_space<vmem>>, %arg7: memref<1x128xf32, #tpu.memory_space<vmem>>, %arg8: memref<1x8x8x128xbf16, #tpu.memory_space<vmem>>) attributes {dimension_semantics = [#tpu.dimension_semantics<parallel>, #tpu.dimension_semantics<parallel>], iteration_bounds = array<i64: 2, 1>, scalar_prefetch = 0 : i64, scratch_operands = 0 : i64, tpu.core_type = #tpu.core_type<tc>, window_params = [{transform_indices = @transform_0, window_bounds = array<i64: 1, 10, 8, 384>}, {transform_indices = @transform_1, window_bounds = array<i64: 3, 384, 128>}, {transform_indices = @transform_2, window_bounds = array<i64: 1, 128>}, {transform_indices = @transform_3, window_bounds = array<i64: 1, 8, 8, 128>}, {transform_indices = @transform_4, window_bounds = array<i64: 128, 128>}, {transform_indices = @transform_5, window_bounds = array<i64: 1, 128>}, {transform_indices = @transform_6, window_bounds = array<i64: 1, 8, 8, 128>}]} {
    %cst = arith.constant 0.000000e+00 : f32
    %0 = vector.broadcast %cst : f32 to vector<64x128xf32>
    %c0 = arith.constant 0 : index
    %c0_0 = arith.constant 0 : index
    %c0_1 = arith.constant 0 : index
    %c0_2 = arith.constant 0 : index
    %1 = vector.load %arg2[%c0, %c0_0, %c0_1, %c0_2] : memref<1x10x8x384xbf16, #tpu.memory_space<vmem>>, vector<1x8x8x384xbf16>
    %2 = vector.shape_cast %1 : vector<1x8x8x384xbf16> to vector<8x8x384xbf16>
    %3 = vector.shape_cast %2 : vector<8x8x384xbf16> to vector<64x384xbf16>
    %c0_3 = arith.constant 0 : index
    %c0_4 = arith.constant 0 : index
    %c0_5 = arith.constant 0 : index
    %4 = vector.load %arg3[%c0_3, %c0_4, %c0_5] : memref<3x384x128xbf16, #tpu.memory_space<vmem>>, vector<1x384x128xbf16>
    %5 = vector.shape_cast %4 : vector<1x384x128xbf16> to vector<384x128xbf16>
    %cst_6 = arith.constant dense<0.000000e+00> : vector<64x128xf32>
    %6 = tpu.matmul %3, %5, %cst_6 {dimension_numbers = #tpu.dot_dimension_numbers<[1], [0], [0], [1], [0, 0, 1, 1], [], []>} : vector<64x384xbf16>, vector<384x128xbf16>, vector<64x128xf32> -> vector<64x128xf32>
    %7 = arith.addf %0, %6 : vector<64x128xf32>
    %c0_7 = arith.constant 0 : index
    %c1 = arith.constant 1 : index
    %c0_8 = arith.constant 0 : index
    %c0_9 = arith.constant 0 : index
    %8 = vector.load %arg2[%c0_7, %c1, %c0_8, %c0_9] : memref<1x10x8x384xbf16, #tpu.memory_space<vmem>>, vector<1x8x8x384xbf16>
    %9 = vector.shape_cast %8 : vector<1x8x8x384xbf16> to vector<8x8x384xbf16>
    %10 = vector.shape_cast %9 : vector<8x8x384xbf16> to vector<64x384xbf16>
    %c1_10 = arith.constant 1 : index
    %c0_11 = arith.constant 0 : index
    %c0_12 = arith.constant 0 : index
    %11 = vector.load %arg3[%c1_10, %c0_11, %c0_12] : memref<3x384x128xbf16, #tpu.memory_space<vmem>>, vector<1x384x128xbf16>
    %12 = vector.shape_cast %11 : vector<1x384x128xbf16> to vector<384x128xbf16>
    %cst_13 = arith.constant dense<0.000000e+00> : vector<64x128xf32>
    %13 = tpu.matmul %10, %12, %cst_13 {dimension_numbers = #tpu.dot_dimension_numbers<[1], [0], [0], [1], [0, 0, 1, 1], [], []>} : vector<64x384xbf16>, vector<384x128xbf16>, vector<64x128xf32> -> vector<64x128xf32>
    %14 = arith.addf %7, %13 : vector<64x128xf32>
    %c0_14 = arith.constant 0 : index
    %c2 = arith.constant 2 : index
    %c0_15 = arith.constant 0 : index
    %c0_16 = arith.constant 0 : index
    %15 = vector.load %arg2[%c0_14, %c2, %c0_15, %c0_16] : memref<1x10x8x384xbf16, #tpu.memory_space<vmem>>, vector<1x8x8x384xbf16>
    %16 = vector.shape_cast %15 : vector<1x8x8x384xbf16> to vector<8x8x384xbf16>
    %17 = vector.shape_cast %16 : vector<8x8x384xbf16> to vector<64x384xbf16>
    %c2_17 = arith.constant 2 : index
    %c0_18 = arith.constant 0 : index
    %c0_19 = arith.constant 0 : index
    %18 = vector.load %arg3[%c2_17, %c0_18, %c0_19] : memref<3x384x128xbf16, #tpu.memory_space<vmem>>, vector<1x384x128xbf16>
    %19 = vector.shape_cast %18 : vector<1x384x128xbf16> to vector<384x128xbf16>
    %cst_20 = arith.constant dense<0.000000e+00> : vector<64x128xf32>
    %20 = tpu.matmul %17, %19, %cst_20 {dimension_numbers = #tpu.dot_dimension_numbers<[1], [0], [0], [1], [0, 0, 1, 1], [], []>} : vector<64x384xbf16>, vector<384x128xbf16>, vector<64x128xf32> -> vector<64x128xf32>
    %21 = arith.addf %14, %20 : vector<64x128xf32>
    %c0_21 = arith.constant 0 : index
    %c0_22 = arith.constant 0 : index
    %22 = vector.load %arg4[%c0_21, %c0_22] : memref<1x128xf32, #tpu.memory_space<vmem>>, vector<1x128xf32>
    %23 = vector.broadcast %22 : vector<1x128xf32> to vector<64x128xf32>
    %24 = arith.addf %21, %23 : vector<64x128xf32>
    %c0_23 = arith.constant 0 : index
    %c0_24 = arith.constant 0 : index
    %c0_25 = arith.constant 0 : index
    %c0_26 = arith.constant 0 : index
    %25 = vector.load %arg5[%c0_23, %c0_24, %c0_25, %c0_26] : memref<1x8x8x128xbf16, #tpu.memory_space<vmem>>, vector<1x8x8x128xbf16>
    %26 = vector.shape_cast %25 : vector<1x8x8x128xbf16> to vector<8x8x128xbf16>
    %27 = vector.shape_cast %26 : vector<8x8x128xbf16> to vector<64x128xbf16>
    %c0_27 = arith.constant 0 : index
    %c0_28 = arith.constant 0 : index
    %28 = vector.load %arg6[%c0_27, %c0_28] : memref<128x128xbf16, #tpu.memory_space<vmem>>, vector<128x128xbf16>
    %cst_29 = arith.constant dense<0.000000e+00> : vector<64x128xf32>
    %29 = tpu.matmul %27, %28, %cst_29 {dimension_numbers = #tpu.dot_dimension_numbers<[1], [0], [0], [1], [0, 0, 1, 1], [], []>} : vector<64x128xbf16>, vector<128x128xbf16>, vector<64x128xf32> -> vector<64x128xf32>
    %c0_30 = arith.constant 0 : index
    %c0_31 = arith.constant 0 : index
    %30 = vector.load %arg7[%c0_30, %c0_31] : memref<1x128xf32, #tpu.memory_space<vmem>>, vector<1x128xf32>
    %31 = vector.broadcast %30 : vector<1x128xf32> to vector<64x128xf32>
    %32 = arith.addf %29, %31 : vector<64x128xf32>
    %33 = arith.addf %24, %32 : vector<64x128xf32>
    %cst_32 = arith.constant 0.000000e+00 : f32
    %34 = vector.broadcast %cst_32 : f32 to vector<64x128xf32>
    %35 = arith.maximumf %33, %34 : vector<64x128xf32>
    %36 = vector.shape_cast %35 : vector<64x128xf32> to vector<8x8x128xf32>
    %37 = arith.truncf %36 : vector<8x8x128xf32> to vector<8x8x128xbf16>
    %c0_33 = arith.constant 0 : index
    %c0_34 = arith.constant 0 : index
    %c0_35 = arith.constant 0 : index
    %c0_36 = arith.constant 0 : index
    %38 = vector.load %arg8[%c0_33, %c0_34, %c0_35, %c0_36] : memref<1x8x8x128xbf16, #tpu.memory_space<vmem>>, vector<1x8x8x128xbf16>
    %39 = vector.shape_cast %38 : vector<1x8x8x128xbf16> to vector<8x8x128xbf16>
    %40 = vector.shape_cast %37 : vector<8x8x128xbf16> to vector<1x8x8x128xbf16>
    tpu.vector_store %arg8[%c0_33, %c0_34, %c0_35, %c0_36], %40 {strides = array<i32>} : memref<1x8x8x128xbf16, #tpu.memory_space<vmem>>, vector<1x8x8x128xbf16>,
    return
  }
  func.func @transform_0(%arg0: i32, %arg1: i32) -> (i32, i32, i32, i32) {
    %c0_i32 = arith.constant 0 : i32
    %c0_i32_0 = arith.constant 0 : i32
    %c0_i32_1 = arith.constant 0 : i32
    %c0_i32_2 = arith.constant 0 : i32
    return %arg0, %c0_i32, %c0_i32_0, %c0_i32_1 : i32, i32, i32, i32
  }
  func.func @transform_1(%arg0: i32, %arg1: i32) -> (i32, i32, i32) {
    %c0_i32 = arith.constant 0 : i32
    %c0_i32_0 = arith.constant 0 : i32
    %c0_i32_1 = arith.constant 0 : i32
    return %c0_i32, %c0_i32_0, %arg1 : i32, i32, i32
  }
  func.func @transform_2(%arg0: i32, %arg1: i32) -> (i32, i32) {
    %c0_i32 = arith.constant 0 : i32
    %c0_i32_0 = arith.constant 0 : i32
    return %c0_i32, %arg1 : i32, i32
  }
  func.func @transform_3(%arg0: i32, %arg1: i32) -> (i32, i32, i32, i32) {
    %c0_i32 = arith.constant 0 : i32
    %c0_i32_0 = arith.constant 0 : i32
    %c0_i32_1 = arith.constant 0 : i32
    %c0_i32_2 = arith.constant 0 : i32
    return %arg0, %c0_i32, %c0_i32_0, %c0_i32_1 : i32, i32, i32, i32
  }
  func.func @transform_4(%arg0: i32, %arg1: i32) -> (i32, i32) {
    %c0_i32 = arith.constant 0 : i32
    %c0_i32_0 = arith.constant 0 : i32
    return %c0_i32, %arg1 : i32, i32
  }
  func.func @transform_5(%arg0: i32, %arg1: i32) -> (i32, i32) {
    %c0_i32 = arith.constant 0 : i32
    %c0_i32_0 = arith.constant 0 : i32
    return %c0_i32, %arg1 : i32, i32
  }
  func.func @transform_6(%arg0: i32, %arg1: i32) -> (i32, i32, i32, i32) {
    %c0_i32 = arith.constant 0 : i32
    %c0_i32_0 = arith.constant 0 : i32
    %c0_i32_1 = arith.constant 0 : i32
    return %arg0, %c0_i32, %c0_i32_0, %arg1 : i32, i32, i32, i32
  }
}

</mosaic_0001>

<llo_original>
// kernel: _lambda_.4
$region0: #{_lambda_.4}
  #allocation0 [shape = 'u32[]', space=smem, size = 0x4, offset = 0x4, fixed_abs, tag = 'smem constant byte address 0x4 - core index']
  #allocation1 [shape = 'u32[144,128]{1,0:T(1,128)}', space=vmem, size = 0x12000, scoped, tag = 'internal scratch']
  %s0 = inlined_call_operand.vmem [shape: bf16[2,8,8,128], index: 0, kind: input, shape index: {}]
  %s1 = inlined_call_operand.vmem [shape: bf16[128,128], index: 1, kind: input, shape index: {}]
  %s2 = inlined_call_operand.vmem [shape: f32[1,128], index: 2, kind: input, shape index: {}]
  %s3 = inlined_call_operand.vmem [shape: bf16[2,8,8,128], index: 3, kind: output, shape index: {}]
  %s4 = sld [smem:[#allocation0]]
  $region45: #{_lambda_.4} parent=0
    _
  %s6 = ssub.s32 1, %s4
  %s7 = scalar_select 0, %s6, %s4
  loop: start=0, step=1, limit=4
  $region2: #{_lambda_.4} parent=0 // loop_pre_header
    _
  $region3: #{_lambda_.4} parent=0 // loop_header
    %s9 = sphi 0, %s13
    %p10 = scmp.ge.s32.totalorder %s9, 4
    %s16 = sphi 0, %s28
    %s17 = sphi 0, %s24
    %s18 = sphi 0, %s16
    %s19 = sphi 0, %s17
    %s20 = sphi 0, %s18
    %s21 = sphi 0, %s19
    %s31 = sphi 0, %s33
    %s34 = sphi 0, %s31
    %s35 = sphi 0, %s34
    %s51 = sphi 0, %s35
    %s57 = sphi 0, %s59
    %s60 = sphi 0, %s57
    %s61 = sphi 0, %s60
    %s77 = sphi 0, %s61
    %s83 = sphi 0, %s85
    %s86 = sphi 0, %s83
    %s87 = sphi 0, %s86
    %s103 = sphi 0, %s87
    %s111 = sphi 0, %s113
    %s114 = sphi 0, %s111
    %s115 = sphi 0, %s114
    %s131 = sphi 0, %s115
  $region4: #{_lambda_.4} parent=0 // loop_header_branch
    %12 = sbr.rel (%p10) target = $region8
  $region5: #{_lambda_.4} parent=0 // loop_body
    %s14 = ssub.s32 %s9, 1
    %s15 = ssub.s32 %s9, 2
    %s22 = sadd.s32 1, %s17
    %p23 = scmp.ge.s32.totalorder %s22, 1
    %s24 = scalar_select %p23, 0, %s22
    %s25 = sadd.s32 1, %s16
    %s26 = scalar_select %p23, %s25, %s16
    %p27 = scmp.ge.s32.totalorder %s26, 2
    %s28 = scalar_select %p27, 0, %s26
    %s29 = ssub.s32 %s16, %s28
    %p30 = scmp.eq.s32.totalorder %s29, 0
    %s32 = sadd.s32 %s31, 1
    %s33 = scalar_select %p30, %s31, %s32
    %p36 = pneg %p30
    %p37 = scmp.eq.s32.totalorder %s9, 1
    %p38 = por %p36, %p37
    %p39 = scmp.ne.s32.totalorder %s31, %s34
    %p40 = scmp.eq.s32.totalorder %s9, 0
    %p41 = por %p39, %p40
    %p42 = scmp.ne.s32.totalorder %s31, %s34
    %p43 = scmp.eq.s32.totalorder %s14, 1
    %p44 = por %p42, %p43
    %p45 = scmp.ne.s32.totalorder %s34, %s35
    %p46 = scmp.eq.s32.totalorder %s14, 0
    %p47 = por %p45, %p46
    %p48 = scmp.ne.s32.totalorder %s34, %s35
    %p49 = scmp.eq.s32.totalorder %s15, 1
    %p50 = por %p48, %p49
    %p52 = scmp.ne.s32.totalorder %s35, %s51
    %p53 = scmp.eq.s32.totalorder %s15, 0
    %p54 = por %p52, %p53
    %s55 = ssub.s32 %s17, %s24
    %p56 = scmp.eq.s32.totalorder %s55, 0
    %s58 = sadd.s32 %s57, 1
    %s59 = scalar_select %p56, %s57, %s58
    %p62 = pneg %p56
    %p63 = scmp.eq.s32.totalorder %s9, 1
    %p64 = por %p62, %p63
    %p65 = scmp.ne.s32.totalorder %s57, %s60
    %p66 = scmp.eq.s32.totalorder %s9, 0
    %p67 = por %p65, %p66
    %p68 = scmp.ne.s32.totalorder %s57, %s60
    %p69 = scmp.eq.s32.totalorder %s14, 1
    %p70 = por %p68, %p69
    %p71 = scmp.ne.s32.totalorder %s60, %s61
    %p72 = scmp.eq.s32.totalorder %s14, 0
    %p73 = por %p71, %p72
    %p74 = scmp.ne.s32.totalorder %s60, %s61
    %p75 = scmp.eq.s32.totalorder %s15, 1
    %p76 = por %p74, %p75
    %p78 = scmp.ne.s32.totalorder %s61, %s77
    %p79 = scmp.eq.s32.totalorder %s15, 0
    %p80 = por %p78, %p79
    %s81 = ssub.s32 %s17, %s24
    %p82 = scmp.eq.s32.totalorder %s81, 0
    %s84 = sadd.s32 %s83, 1
    %s85 = scalar_select %p82, %s83, %s84
    %p88 = pneg %p82
    %p89 = scmp.eq.s32.totalorder %s9, 1
    %p90 = por %p88, %p89
    %p91 = scmp.ne.s32.totalorder %s83, %s86
    %p92 = scmp.eq.s32.totalorder %s9, 0
    %p93 = por %p91, %p92
    %p94 = scmp.ne.s32.totalorder %s83, %s86
    %p95 = scmp.eq.s32.totalorder %s14, 1
    %p96 = por %p94, %p95
    %p97 = scmp.ne.s32.totalorder %s86, %s87
    %p98 = scmp.eq.s32.totalorder %s14, 0
    %p99 = por %p97, %p98
    %p100 = scmp.ne.s32.totalorder %s86, %s87
    %p101 = scmp.eq.s32.totalorder %s15, 1
    %p102 = por %p100, %p101
    %p104 = scmp.ne.s32.totalorder %s87, %s103
    %p105 = scmp.eq.s32.totalorder %s15, 0
    %p106 = por %p104, %p105
    %s107 = ssub.s32 %s16, %s28
    %s108 = ssub.s32 %s17, %s24
    %s109 = sor.u32 %s107, %s108
    %p110 = scmp.eq.s32.totalorder %s109, 0
    %s112 = sadd.s32 %s111, 1
    %s113 = scalar_select %p110, %s111, %s112
    %p116 = pneg %p110
    %p117 = scmp.eq.s32.totalorder %s9, 1
    %p118 = por %p116, %p117
    %p119 = scmp.ne.s32.totalorder %s111, %s114
    %p120 = scmp.eq.s32.totalorder %s9, 0
    %p121 = por %p119, %p120
    %p122 = scmp.ne.s32.totalorder %s111, %s114
    %p123 = scmp.eq.s32.totalorder %s14, 1
    %p124 = por %p122, %p123
    %p125 = scmp.ne.s32.totalorder %s114, %s115
    %p126 = scmp.eq.s32.totalorder %s14, 0
    %p127 = por %p125, %p126
    %p128 = scmp.ne.s32.totalorder %s114, %s115
    %p129 = scmp.eq.s32.totalorder %s15, 1
    %p130 = por %p128, %p129
    %p132 = scmp.ne.s32.totalorder %s115, %s131
    %p133 = scmp.eq.s32.totalorder %s15, 0
    %p134 = por %p132, %p133
    %p135 = scmp.le.s32.totalorder 1, %s9
    %p136 = scmp.lt.s32.totalorder %s9, 3
    %p137 = pnand %p135, %p136
    %p138 = pneg %p137
    // Predicated region
    $region9: #{_lambda_.4} parent=5 // pred_check
      _
    $region10: #{_lambda_.4} parent=5 // pred_check_branch
      %140 = sbr.rel (%p137) target = $region12
    $region11: #{_lambda_.4} parent=5 // pred_region
      %s141 = ssub.s32 %s9, 1
      // Predicated region
      $region13: #{_lambda_.4} parent=11 // pred_check
        %p142 = pneg %p73
      $region14: #{_lambda_.4} parent=11 // pred_check_branch
        %144 = sbr.rel (%p142) target = $region16
      $region15: #{_lambda_.4} parent=11 // pred_region
        %p145 = scmp.lt.s32.totalorder %s19, 0
        %s146 = scalar_select %p145, %s19, 0
        %s147 = smul.addr %s146, 4
        %s148 = scalar_lea.vmem %s1, %s147
      $region16: #{_lambda_.4} parent=11 // pred_fallthru
        _
      // Predicated region
      $region17: #{_lambda_.4} parent=11 // pred_check
        %p149 = pneg %p99
      $region18: #{_lambda_.4} parent=11 // pred_check_branch
        %151 = sbr.rel (%p149) target = $region20
      $region19: #{_lambda_.4} parent=11 // pred_region
        %p152 = scmp.lt.s32.totalorder %s19, 0
        %s153 = scalar_select %p152, %s19, 0
        %s154 = scalar_lea.vmem %s2, %s153
      $region20: #{_lambda_.4} parent=11 // pred_fallthru
        _
    $region12: #{_lambda_.4} parent=5 // pred_fallthru
      _
    %p155 = scmp.lt.s32.totalorder %s9, 2
    // Predicated region
    $region21: #{_lambda_.4} parent=5 // pred_check
      %p156 = pneg %p155
    $region22: #{_lambda_.4} parent=5 // pred_check_branch
      %158 = sbr.rel (%p156) target = $region24
    $region23: #{_lambda_.4} parent=5 // pred_region
      // Predicated region
      $region25: #{_lambda_.4} parent=23 // pred_check
        %p159 = pneg %p41
      $region26: #{_lambda_.4} parent=23 // pred_check_branch
        %161 = sbr.rel (%p159) target = $region28
      $region27: #{_lambda_.4} parent=23 // pred_region
        %p162 = scmp.lt.s32.totalorder %s16, 1
        %s163 = scalar_select %p162, %s16, 1
        %s164 = smul.addr %s163, 8
        %s165 = smul.addr %s164, 4
        %s166 = scalar_lea.vmem %s0, %s165
      $region28: #{_lambda_.4} parent=23 // pred_fallthru
        _
    $region24: #{_lambda_.4} parent=5 // pred_fallthru
      _
    %p167 = scmp.le.s32.totalorder 1, %s9
    %p168 = scmp.lt.s32.totalorder %s9, 3
    %p169 = pnand %p167, %p168
    %p170 = pneg %p169
    // Predicated region
    $region29: #{_lambda_.4} parent=5 // pred_check
      _
    $region30: #{_lambda_.4} parent=5 // pred_check_branch
      %172 = sbr.rel (%p169) target = $region32
    $region31: #{_lambda_.4} parent=5 // pred_region
      %s173 = ssub.s32 %s9, 1
      %p174 = scmp.lt.s32.totalorder %s18, 1
      %s175 = scalar_select %p174, %s18, 1
      %s176 = smul.addr %s175, 8
      %s177 = smul.addr %s176, 4
      %s178 = scalar_lea.vmem %s0, %s177
      %p179 = pneg %p47
      %p180 = pneg %p44
      %p181 = scmp.lt.s32.totalorder %s19, 0
      %s182 = scalar_select %p181, %s19, 0
      %s183 = smul.addr %s182, 4
      %s184 = scalar_lea.vmem %s1, %s183
      %p185 = pneg %p73
      %p186 = pneg %p70
      %p187 = scmp.lt.s32.totalorder %s19, 0
      %s188 = scalar_select %p187, %s19, 0
      %s189 = scalar_lea.vmem %s2, %s188
      %p190 = pneg %p99
      %p191 = pneg %p96
      %p192 = pneg %p127
      %p193 = pneg %p124
      %p194 = scmp.lt.s32.totalorder %s18, 1
      %s195 = scalar_select %p194, %s18, 1
      %p196 = scmp.lt.s32.totalorder %s19, 0
      %s197 = scalar_select %p196, %s19, 0
      %s198 = smul.addr %s195, 8
      %s199 = sadd.s32 %s197, %s198
      %s200 = smul.addr %s199, 4
      %s201 = scalar_lea.vmem %s3, %s200
      %p202 = scmp.lt.s32.totalorder %s18, 1
      %s203 = scalar_select %p202, %s18, 1
      %s204 = smul.addr %s203, 8
      %s205 = smul.addr %s204, 4
      %s206 = scalar_lea.vmem %s0, %s205
      %p207 = scmp.lt.s32.totalorder %s19, 0
      %s208 = scalar_select %p207, %s19, 0
      %s209 = smul.addr %s208, 4
      %s210 = scalar_lea.vmem %s1, %s209
      %p211 = scmp.lt.s32.totalorder %s19, 0
      %s212 = scalar_select %p211, %s19, 0
      %s213 = scalar_lea.vmem %s2, %s212
      %p214 = scmp.lt.s32.totalorder %s18, 1
      %s215 = scalar_select %p214, %s18, 1
      %p216 = scmp.lt.s32.totalorder %s19, 0
      %s217 = scalar_select %p216, %s19, 0
      %s218 = smul.addr %s215, 8
      %s219 = sadd.s32 %s217, %s218
      %s220 = smul.addr %s219, 4
      %s221 = scalar_lea.vmem %s3, %s220
      %v223 = vld [vmem:[%s206] sm:$0xf]
      %v224 = vld [vmem:[%s206 + $0x4] sm:$0xf]
      %v225 = vld [vmem:[%s206 + $0x8] sm:$0xf]
      %v226 = vld [vmem:[%s206 + $0xc] sm:$0xf]
      %v227 = vld [vmem:[%s206 + $0x10] sm:$0xf]
      %v228 = vld [vmem:[%s206 + $0x14] sm:$0xf]
      %v229 = vld [vmem:[%s206 + $0x18] sm:$0xf]
      %v230 = vld [vmem:[%s206 + $0x1c] sm:$0xf]
      %v231 = vld [vmem:[%s210] sm:$0xf]
      %v232 = vld [vmem:[%s210 + $0x4] sm:$0xf]
      %v233 = vld [vmem:[%s210 + $0x8] sm:$0xf]
      %v234 = vld [vmem:[%s210 + $0xc] sm:$0xf]
      %v235 = vld [vmem:[%s210 + $0x10] sm:$0xf]
      %v236 = vld [vmem:[%s210 + $0x14] sm:$0xf]
      %v237 = vld [vmem:[%s210 + $0x18] sm:$0xf]
      %v238 = vld [vmem:[%s210 + $0x1c] sm:$0xf]
      %v239 = vld [vmem:[%s210 + $0x20] sm:$0xf]
      %v240 = vld [vmem:[%s210 + $0x24] sm:$0xf]
      %v241 = vld [vmem:[%s210 + $0x28] sm:$0xf]
      %v242 = vld [vmem:[%s210 + $0x2c] sm:$0xf]
      %v243 = vld [vmem:[%s210 + $0x30] sm:$0xf]
      %v244 = vld [vmem:[%s210 + $0x34] sm:$0xf]
      %v245 = vld [vmem:[%s210 + $0x38] sm:$0xf]
      %v246 = vld [vmem:[%s210 + $0x3c] sm:$0xf]
      %v247 = vld [vmem:[%s213] sm:$0x1]
      %v249 = vlaneseq
      %v250 = vshrl.u32 %v249, 7
      %v251 = vsub.s32 0, %v250
      %v252 = vrot.slane %v247, %v251
      %v262 = vunpack.c.l.b16 %v223
      %v263 = vunpack.c.l.b16 %v224
      %v264 = vunpack.c.l.b16 %v225
      %v265 = vunpack.c.l.b16 %v226
      %v266 = vunpack.c.l.b16 %v227
      %v267 = vunpack.c.l.b16 %v228
      %v268 = vunpack.c.l.b16 %v229
      %v269 = vunpack.c.l.b16 %v230
      %v270 = vpack.c.b16 %v263, %v262
      %v271 = vpack.c.b16 %v265, %v264
      %v272 = vpack.c.b16 %v267, %v266
      %v273 = vpack.c.b16 %v269, %v268
      %v294 = vunpack.c.l.b16 %v231
      %v295 = vunpack.c.l.b16 %v232
      %v296 = vunpack.c.l.b16 %v233
      %v297 = vunpack.c.l.b16 %v234
      %v298 = vunpack.c.l.b16 %v235
      %v299 = vunpack.c.l.b16 %v236
      %v300 = vunpack.c.l.b16 %v237
      %v301 = vunpack.c.l.b16 %v238
      %v302 = vunpack.c.l.b16 %v239
      %v303 = vunpack.c.l.b16 %v240
      %v304 = vunpack.c.l.b16 %v241
      %v305 = vunpack.c.l.b16 %v242
      %v306 = vunpack.c.l.b16 %v243
      %v307 = vunpack.c.l.b16 %v244
      %v308 = vunpack.c.l.b16 %v245
      %v309 = vunpack.c.l.b16 %v246
      %v310 = vpack.c.b16 %v295, %v294
      %v311 = vpack.c.b16 %v297, %v296
      %v312 = vpack.c.b16 %v299, %v298
      %v313 = vpack.c.b16 %v301, %v300
      %v314 = vpack.c.b16 %v303, %v302
      %v315 = vpack.c.b16 %v305, %v304
      %v316 = vpack.c.b16 %v307, %v306
      %v317 = vpack.c.b16 %v309, %v308
      %326 = vmatprep.subr.bf16.mxu0 0
      %327 = vmatpush1.bf16.msra.mxu0 %v310
      %328 = vmatprep.subr.bf16.mxu0 0
      %329 = vmatpush1.bf16.msra.mxu0 %v311
      %330 = vmatprep.subr.bf16.mxu0 0
      %331 = vmatpush1.bf16.msra.mxu0 %v312
      %332 = vmatprep.subr.bf16.mxu0 0
      %333 = vmatpush1.bf16.msra.mxu0 %v313
      %334 = vmatprep.subr.bf16.mxu0 0
      %335 = vmatpush1.bf16.msra.mxu0 %v314
      %336 = vmatprep.subr.bf16.mxu0 0
      %337 = vmatpush1.bf16.msra.mxu0 %v315
      %338 = vmatprep.subr.bf16.mxu0 0
      %339 = vmatpush1.bf16.msra.mxu0 %v316
      %340 = vmatprep.subr.bf16.mxu0 0
      %341 = vmatpush1.bf16.msra.mxu0 %v317
      %342 = vmatprep.subr.bf16.mxu0 0
      %343 = vmatpush1.bf16.msra.mxu0 0
      %344 = vmatprep.subr.bf16.mxu0 0
      %345 = vmatpush1.bf16.msra.mxu0 0
      %346 = vmatprep.subr.bf16.mxu0 0
      %347 = vmatpush1.bf16.msra.mxu0 0
      %348 = vmatprep.subr.bf16.mxu0 0
      %349 = vmatpush1.bf16.msra.mxu0 0
      %350 = vmatprep.subr.bf16.mxu0 0
      %351 = vmatpush1.bf16.msra.mxu0 0
      %352 = vmatprep.subr.bf16.mxu0 0
      %353 = vmatpush1.bf16.msra.mxu0 0
      %354 = vmatprep.subr.bf16.mxu0 0
      %355 = vmatpush1.bf16.msra.mxu0 0
      %356 = vmatprep.subr.bf16.mxu0 0
      %357 = vmatpush1.bf16.msra.mxu0 0
      %358 = vmatprep.mubr.bf16.mxu0 0
      %359 = vmatmul.mubr.bf16.gmra.mrb[0].mxu0 %v270
      %v360 = vpop.f32.mrb[0].mxu0
      %v361 = vadd.f32 %v252, %v360
      %v362 = vpop.f32.mrb[0].mxu0
      %v363 = vpop.f32.mrb[0].mxu0
      %v364 = vadd.f32 %v252, %v363
      %v365 = vpop.f32.mrb[0].mxu0
      %366 = vmatprep.mubr.bf16.mxu0 0
      %367 = vmatmul.mubr.bf16.gmra.mrb[0].mxu0 %v271
      %v368 = vpop.f32.mrb[0].mxu0
      %v369 = vadd.f32 %v252, %v368
      %v370 = vpop.f32.mrb[0].mxu0
      %v371 = vpop.f32.mrb[0].mxu0
      %v372 = vadd.f32 %v252, %v371
      %v373 = vpop.f32.mrb[0].mxu0
      %374 = vmatprep.mubr.bf16.mxu0 0
      %375 = vmatmul.mubr.bf16.gmra.mrb[0].mxu0 %v272
      %v376 = vpop.f32.mrb[0].mxu0
      %v377 = vadd.f32 %v252, %v376
      %v378 = vpop.f32.mrb[0].mxu0
      %v379 = vpop.f32.mrb[0].mxu0
      %v380 = vadd.f32 %v252, %v379
      %v381 = vpop.f32.mrb[0].mxu0
      %382 = vmatprep.mubr.bf16.mxu0 0
      %383 = vmatmul.mubr.bf16.gmra.mrb[0].mxu0 %v273
      %v384 = vpop.f32.mrb[0].mxu0
      %v385 = vadd.f32 %v252, %v384
      %v386 = vpop.f32.mrb[0].mxu0
      %v387 = vpop.f32.mrb[0].mxu0
      %v388 = vadd.f32 %v252, %v387
      %v389 = vpop.f32.mrb[0].mxu0
      %390 = vdwg.mxu0
      %v391 = vmax.f32 %v361, 0.0
      %v392 = vmax.f32 %v364, 0.0
      %v393 = vmax.f32 %v369, 0.0
      %v394 = vmax.f32 %v372, 0.0
      %v395 = vmax.f32 %v377, 0.0
      %v396 = vmax.f32 %v380, 0.0
      %v397 = vmax.f32 %v385, 0.0
      %v398 = vmax.f32 %v388, 0.0
      %v399 = vpack.c.bf16 %v391, %v391
      %v400 = vpack.c.bf16 %v392, %v392
      %v401 = vpack.c.bf16 %v393, %v393
      %v402 = vpack.c.bf16 %v394, %v394
      %v403 = vpack.c.bf16 %v395, %v395
      %v404 = vpack.c.bf16 %v396, %v396
      %v405 = vpack.c.bf16 %v397, %v397
      %v406 = vpack.c.bf16 %v398, %v398
      %407 = vst [vmem:[%s221] sm:$0xf] %v399
      %408 = vst [vmem:[%s221 + $0x4] sm:$0xf] %v400
      %409 = vst [vmem:[%s221 + $0x8] sm:$0xf] %v401
      %410 = vst [vmem:[%s221 + $0xc] sm:$0xf] %v402
      %411 = vst [vmem:[%s221 + $0x10] sm:$0xf] %v403
      %412 = vst [vmem:[%s221 + $0x14] sm:$0xf] %v404
      %413 = vst [vmem:[%s221 + $0x18] sm:$0xf] %v405
      %414 = vst [vmem:[%s221 + $0x1c] sm:$0xf] %v406
      %p415 = scmp.lt.s32.totalorder %s18, 1
      %s416 = scalar_select %p415, %s18, 1
      %p417 = scmp.lt.s32.totalorder %s19, 0
      %s418 = scalar_select %p417, %s19, 0
      %s419 = smul.addr %s416, 8
      %s420 = sadd.s32 %s418, %s419
      %s421 = smul.addr %s420, 4
      %s422 = scalar_lea.vmem %s3, %s421
      // Predicated region
      $region33: #{_lambda_.4} parent=31 // pred_check
        %p423 = pneg %p124
      $region34: #{_lambda_.4} parent=31 // pred_check_branch
        %425 = sbr.rel (%p423) target = $region36
      $region35: #{_lambda_.4} parent=31 // pred_region
        _
      $region36: #{_lambda_.4} parent=31 // pred_fallthru
        _
    $region32: #{_lambda_.4} parent=5 // pred_fallthru
      _
    %p426 = scmp.le.s32.totalorder 2, %s9
    // Predicated region
    $region37: #{_lambda_.4} parent=5 // pred_check
      %p427 = pneg %p426
    $region38: #{_lambda_.4} parent=5 // pred_check_branch
      %429 = sbr.rel (%p427) target = $region40
    $region39: #{_lambda_.4} parent=5 // pred_region
      %s430 = ssub.s32 %s9, 2
      // Predicated region
      $region41: #{_lambda_.4} parent=39 // pred_check
        %p431 = pneg %p130
      $region42: #{_lambda_.4} parent=39 // pred_check_branch
        %433 = sbr.rel (%p431) target = $region44
      $region43: #{_lambda_.4} parent=39 // pred_region
        %p434 = scmp.lt.s32.totalorder %s20, 1
        %s435 = scalar_select %p434, %s20, 1
        %p436 = scmp.lt.s32.totalorder %s21, 0
        %s437 = scalar_select %p436, %s21, 0
        %s438 = smul.addr %s435, 8
        %s439 = sadd.s32 %s437, %s438
        %s440 = smul.addr %s439, 4
        %s441 = scalar_lea.vmem %s3, %s440
      $region44: #{_lambda_.4} parent=39 // pred_fallthru
        _
    $region40: #{_lambda_.4} parent=5 // pred_fallthru
      _
  $region6: #{_lambda_.4} parent=0 // loop_footer
    %s13 = sadd.s32 1, %s9
  $region7: #{_lambda_.4} parent=0 // loop_footer_branch
    %8 = sbr.rel target = $region3
  $region8: #{_lambda_.4} parent=0 // loop_exit
    _

// kernel: _lambda_.7
$region0: #{_lambda_.7}
  #allocation0 [shape = 'u32[]', space=smem, size = 0x4, offset = 0x4, fixed_abs, tag = 'smem constant byte address 0x4 - core index']
  #allocation1 [shape = 'u32[144,128]{1,0:T(1,128)}', space=vmem, size = 0x12000, scoped, tag = 'internal scratch']
  %s0 = inlined_call_operand.vmem [shape: bf16[2,10,8,384], index: 0, kind: input, shape index: {}]
  %s1 = inlined_call_operand.vmem [shape: bf16[3,384,128], index: 1, kind: input, shape index: {}]
  %s2 = inlined_call_operand.vmem [shape: f32[1,128], index: 2, kind: input, shape index: {}]
  %s3 = inlined_call_operand.vmem [shape: bf16[2,8,8,128], index: 3, kind: input, shape index: {}]
  %s4 = inlined_call_operand.vmem [shape: bf16[2,8,8,128], index: 4, kind: output, shape index: {}]
  %s5 = sld [smem:[#allocation0]]
  $region49: #{_lambda_.7} parent=0
    _
  %s7 = ssub.s32 1, %s5
  %s8 = scalar_select 0, %s7, %s5
  loop: start=0, step=1, limit=4
  $region2: #{_lambda_.7} parent=0 // loop_pre_header
    _
  $region3: #{_lambda_.7} parent=0 // loop_header
    %s10 = sphi 0, %s14
    %p11 = scmp.ge.s32.totalorder %s10, 4
    %s17 = sphi 0, %s29
    %s18 = sphi 0, %s25
    %s19 = sphi 0, %s17
    %s20 = sphi 0, %s18
    %s21 = sphi 0, %s19
    %s22 = sphi 0, %s20
    %s32 = sphi 0, %s34
    %s35 = sphi 0, %s32
    %s36 = sphi 0, %s35
    %s52 = sphi 0, %s36
    %s58 = sphi 0, %s60
    %s61 = sphi 0, %s58
    %s62 = sphi 0, %s61
    %s78 = sphi 0, %s62
    %s84 = sphi 0, %s86
    %s87 = sphi 0, %s84
    %s88 = sphi 0, %s87
    %s104 = sphi 0, %s88
    %s112 = sphi 0, %s114
    %s115 = sphi 0, %s112
    %s116 = sphi 0, %s115
    %s132 = sphi 0, %s116
    %s140 = sphi 0, %s142
    %s143 = sphi 0, %s140
    %s144 = sphi 0, %s143
    %s160 = sphi 0, %s144
  $region4: #{_lambda_.7} parent=0 // loop_header_branch
    %13 = sbr.rel (%p11) target = $region8
  $region5: #{_lambda_.7} parent=0 // loop_body
    %s15 = ssub.s32 %s10, 1
    %s16 = ssub.s32 %s10, 2
    %s23 = sadd.s32 1, %s18
    %p24 = scmp.ge.s32.totalorder %s23, 1
    %s25 = scalar_select %p24, 0, %s23
    %s26 = sadd.s32 1, %s17
    %s27 = scalar_select %p24, %s26, %s17
    %p28 = scmp.ge.s32.totalorder %s27, 2
    %s29 = scalar_select %p28, 0, %s27
    %s30 = ssub.s32 %s17, %s29
    %p31 = scmp.eq.s32.totalorder %s30, 0
    %s33 = sadd.s32 %s32, 1
    %s34 = scalar_select %p31, %s32, %s33
    %p37 = pneg %p31
    %p38 = scmp.eq.s32.totalorder %s10, 1
    %p39 = por %p37, %p38
    %p40 = scmp.ne.s32.totalorder %s32, %s35
    %p41 = scmp.eq.s32.totalorder %s10, 0
    %p42 = por %p40, %p41
    %p43 = scmp.ne.s32.totalorder %s32, %s35
    %p44 = scmp.eq.s32.totalorder %s15, 1
    %p45 = por %p43, %p44
    %p46 = scmp.ne.s32.totalorder %s35, %s36
    %p47 = scmp.eq.s32.totalorder %s15, 0
    %p48 = por %p46, %p47
    %p49 = scmp.ne.s32.totalorder %s35, %s36
    %p50 = scmp.eq.s32.totalorder %s16, 1
    %p51 = por %p49, %p50
    %p53 = scmp.ne.s32.totalorder %s36, %s52
    %p54 = scmp.eq.s32.totalorder %s16, 0
    %p55 = por %p53, %p54
    %s56 = ssub.s32 %s18, %s25
    %p57 = scmp.eq.s32.totalorder %s56, 0
    %s59 = sadd.s32 %s58, 1
    %s60 = scalar_select %p57, %s58, %s59
    %p63 = pneg %p57
    %p64 = scmp.eq.s32.totalorder %s10, 1
    %p65 = por %p63, %p64
    %p66 = scmp.ne.s32.totalorder %s58, %s61
    %p67 = scmp.eq.s32.totalorder %s10, 0
    %p68 = por %p66, %p67
    %p69 = scmp.ne.s32.totalorder %s58, %s61
    %p70 = scmp.eq.s32.totalorder %s15, 1
    %p71 = por %p69, %p70
    %p72 = scmp.ne.s32.totalorder %s61, %s62
    %p73 = scmp.eq.s32.totalorder %s15, 0
    %p74 = por %p72, %p73
    %p75 = scmp.ne.s32.totalorder %s61, %s62
    %p76 = scmp.eq.s32.totalorder %s16, 1
    %p77 = por %p75, %p76
    %p79 = scmp.ne.s32.totalorder %s62, %s78
    %p80 = scmp.eq.s32.totalorder %s16, 0
    %p81 = por %p79, %p80
    %s82 = ssub.s32 %s18, %s25
    %p83 = scmp.eq.s32.totalorder %s82, 0
    %s85 = sadd.s32 %s84, 1
    %s86 = scalar_select %p83, %s84, %s85
    %p89 = pneg %p83
    %p90 = scmp.eq.s32.totalorder %s10, 1
    %p91 = por %p89, %p90
    %p92 = scmp.ne.s32.totalorder %s84, %s87
    %p93 = scmp.eq.s32.totalorder %s10, 0
    %p94 = por %p92, %p93
    %p95 = scmp.ne.s32.totalorder %s84, %s87
    %p96 = scmp.eq.s32.totalorder %s15, 1
    %p97 = por %p95, %p96
    %p98 = scmp.ne.s32.totalorder %s87, %s88
    %p99 = scmp.eq.s32.totalorder %s15, 0
    %p100 = por %p98, %p99
    %p101 = scmp.ne.s32.totalorder %s87, %s88
    %p102 = scmp.eq.s32.totalorder %s16, 1
    %p103 = por %p101, %p102
    %p105 = scmp.ne.s32.totalorder %s88, %s104
    %p106 = scmp.eq.s32.totalorder %s16, 0
    %p107 = por %p105, %p106
    %s108 = ssub.s32 %s17, %s29
    %s109 = ssub.s32 %s18, %s25
    %s110 = sor.u32 %s108, %s109
    %p111 = scmp.eq.s32.totalorder %s110, 0
    %s113 = sadd.s32 %s112, 1
    %s114 = scalar_select %p111, %s112, %s113
    %p117 = pneg %p111
    %p118 = scmp.eq.s32.totalorder %s10, 1
    %p119 = por %p117, %p118
    %p120 = scmp.ne.s32.totalorder %s112, %s115
    %p121 = scmp.eq.s32.totalorder %s10, 0
    %p122 = por %p120, %p121
    %p123 = scmp.ne.s32.totalorder %s112, %s115
    %p124 = scmp.eq.s32.totalorder %s15, 1
    %p125 = por %p123, %p124
    %p126 = scmp.ne.s32.totalorder %s115, %s116
    %p127 = scmp.eq.s32.totalorder %s15, 0
    %p128 = por %p126, %p127
    %p129 = scmp.ne.s32.totalorder %s115, %s116
    %p130 = scmp.eq.s32.totalorder %s16, 1
    %p131 = por %p129, %p130
    %p133 = scmp.ne.s32.totalorder %s116, %s132
    %p134 = scmp.eq.s32.totalorder %s16, 0
    %p135 = por %p133, %p134
    %s136 = ssub.s32 %s17, %s29
    %s137 = ssub.s32 %s18, %s25
    %s138 = sor.u32 %s136, %s137
    %p139 = scmp.eq.s32.totalorder %s138, 0
    %s141 = sadd.s32 %s140, 1
    %s142 = scalar_select %p139, %s140, %s141
    %p145 = pneg %p139
    %p146 = scmp.eq.s32.totalorder %s10, 1
    %p147 = por %p145, %p146
    %p148 = scmp.ne.s32.totalorder %s140, %s143
    %p149 = scmp.eq.s32.totalorder %s10, 0
    %p150 = por %p148, %p149
    %p151 = scmp.ne.s32.totalorder %s140, %s143
    %p152 = scmp.eq.s32.totalorder %s15, 1
    %p153 = por %p151, %p152
    %p154 = scmp.ne.s32.totalorder %s143, %s144
    %p155 = scmp.eq.s32.totalorder %s15, 0
    %p156 = por %p154, %p155
    %p157 = scmp.ne.s32.totalorder %s143, %s144
    %p158 = scmp.eq.s32.totalorder %s16, 1
    %p159 = por %p157, %p158
    %p161 = scmp.ne.s32.totalorder %s144, %s160
    %p162 = scmp.eq.s32.totalorder %s16, 0
    %p163 = por %p161, %p162
    %p164 = scmp.le.s32.totalorder 1, %s10
    %p165 = scmp.lt.s32.totalorder %s10, 3
    %p166 = pnand %p164, %p165
    %p167 = pneg %p166
    // Predicated region
    $region9: #{_lambda_.7} parent=5 // pred_check
      _
    $region10: #{_lambda_.7} parent=5 // pred_check_branch
      %169 = sbr.rel (%p166) target = $region12
    $region11: #{_lambda_.7} parent=5 // pred_region
      %s170 = ssub.s32 %s10, 1
      // Predicated region
      $region13: #{_lambda_.7} parent=11 // pred_check
        %p171 = pneg %p74
      $region14: #{_lambda_.7} parent=11 // pred_check_branch
        %173 = sbr.rel (%p171) target = $region16
      $region15: #{_lambda_.7} parent=11 // pred_region
        %p174 = scmp.lt.s32.totalorder %s20, 0
        %s175 = scalar_select %p174, %s20, 0
        %s176 = smul.addr %s175, 4
        %s177 = scalar_lea.vmem %s1, %s176
      $region16: #{_lambda_.7} parent=11 // pred_fallthru
        _
      // Predicated region
      $region17: #{_lambda_.7} parent=11 // pred_check
        %p178 = pneg %p100
      $region18: #{_lambda_.7} parent=11 // pred_check_branch
        %180 = sbr.rel (%p178) target = $region20
      $region19: #{_lambda_.7} parent=11 // pred_region
        %p181 = scmp.lt.s32.totalorder %s20, 0
        %s182 = scalar_select %p181, %s20, 0
        %s183 = scalar_lea.vmem %s2, %s182
      $region20: #{_lambda_.7} parent=11 // pred_fallthru
        _
    $region12: #{_lambda_.7} parent=5 // pred_fallthru
      _
    %p184 = scmp.lt.s32.totalorder %s10, 2
    // Predicated region
    $region21: #{_lambda_.7} parent=5 // pred_check
      %p185 = pneg %p184
    $region22: #{_lambda_.7} parent=5 // pred_check_branch
      %187 = sbr.rel (%p185) target = $region24
    $region23: #{_lambda_.7} parent=5 // pred_region
      // Predicated region
      $region25: #{_lambda_.7} parent=23 // pred_check
        %p188 = pneg %p42
      $region26: #{_lambda_.7} parent=23 // pred_check_branch
        %190 = sbr.rel (%p188) target = $region28
      $region27: #{_lambda_.7} parent=23 // pred_region
        %p191 = scmp.lt.s32.totalorder %s17, 1
        %s192 = scalar_select %p191, %s17, 1
        %s193 = smul.addr %s192, 30
        %s194 = smul.addr %s193, 4
        %s195 = scalar_lea.vmem %s0, %s194
      $region28: #{_lambda_.7} parent=23 // pred_fallthru
        _
      // Predicated region
      $region29: #{_lambda_.7} parent=23 // pred_check
        %p196 = pneg %p122
      $region30: #{_lambda_.7} parent=23 // pred_check_branch
        %198 = sbr.rel (%p196) target = $region32
      $region31: #{_lambda_.7} parent=23 // pred_region
        %p199 = scmp.lt.s32.totalorder %s17, 1
        %s200 = scalar_select %p199, %s17, 1
        %p201 = scmp.lt.s32.totalorder %s18, 0
        %s202 = scalar_select %p201, %s18, 0
        %s203 = smul.addr %s200, 8
        %s204 = sadd.s32 %s202, %s203
        %s205 = smul.addr %s204, 4
        %s206 = scalar_lea.vmem %s3, %s205
      $region32: #{_lambda_.7} parent=23 // pred_fallthru
        _
    $region24: #{_lambda_.7} parent=5 // pred_fallthru
      _
    %p207 = scmp.le.s32.totalorder 1, %s10
    %p208 = scmp.lt.s32.totalorder %s10, 3
    %p209 = pnand %p207, %p208
    %p210 = pneg %p209
    // Predicated region
    $region33: #{_lambda_.7} parent=5 // pred_check
      _
    $region34: #{_lambda_.7} parent=5 // pred_check_branch
      %212 = sbr.rel (%p209) target = $region36
    $region35: #{_lambda_.7} parent=5 // pred_region
      %s213 = ssub.s32 %s10, 1
      %p214 = scmp.lt.s32.totalorder %s19, 1
      %s215 = scalar_select %p214, %s19, 1
      %s216 = smul.addr %s215, 30
      %s217 = smul.addr %s216, 4
      %s218 = scalar_lea.vmem %s0, %s217
      %p219 = pneg %p48
      %p220 = pneg %p45
      %p221 = scmp.lt.s32.totalorder %s20, 0
      %s222 = scalar_select %p221, %s20, 0
      %s223 = smul.addr %s222, 4
      %s224 = scalar_lea.vmem %s1, %s223
      %p225 = pneg %p74
      %p226 = pneg %p71
      %p227 = scmp.lt.s32.totalorder %s20, 0
      %s228 = scalar_select %p227, %s20, 0
      %s229 = scalar_lea.vmem %s2, %s228
      %p230 = pneg %p100
      %p231 = pneg %p97
      %p232 = scmp.lt.s32.totalorder %s19, 1
      %s233 = scalar_select %p232, %s19, 1
      %p234 = scmp.lt.s32.totalorder %s20, 0
      %s235 = scalar_select %p234, %s20, 0
      %s236 = smul.addr %s233, 8
      %s237 = sadd.s32 %s235, %s236
      %s238 = smul.addr %s237, 4
      %s239 = scalar_lea.vmem %s3, %s238
      %p240 = pneg %p128
      %p241 = pneg %p125
      %p242 = pneg %p156
      %p243 = pneg %p153
      %p244 = scmp.lt.s32.totalorder %s19, 1
      %s245 = scalar_select %p244, %s19, 1
      %p246 = scmp.lt.s32.totalorder %s20, 0
      %s247 = scalar_select %p246, %s20, 0
      %s248 = smul.addr %s245, 8
      %s249 = sadd.s32 %s247, %s248
      %s250 = smul.addr %s249, 4
      %s251 = scalar_lea.vmem %s4, %s250
      %p252 = scmp.lt.s32.totalorder %s19, 1
      %s253 = scalar_select %p252, %s19, 1
      %s254 = smul.addr %s253, 30
      %s255 = smul.addr %s254, 4
      %s256 = scalar_lea.vmem %s0, %s255
      %p257 = scmp.lt.s32.totalorder %s20, 0
      %s258 = scalar_select %p257, %s20, 0
      %s259 = smul.addr %s258, 4
      %s260 = scalar_lea.vmem %s1, %s259
      %p261 = scmp.lt.s32.totalorder %s20, 0
      %s262 = scalar_select %p261, %s20, 0
      %s263 = scalar_lea.vmem %s2, %s262
      %p264 = scmp.lt.s32.totalorder %s19, 1
      %s265 = scalar_select %p264, %s19, 1
      %p266 = scmp.lt.s32.totalorder %s20, 0
      %s267 = scalar_select %p266, %s20, 0
      %s268 = smul.addr %s265, 8
      %s269 = sadd.s32 %s267, %s268
      %s270 = smul.addr %s269, 4
      %s271 = scalar_lea.vmem %s3, %s270
      %p272 = scmp.lt.s32.totalorder %s19, 1
      %s273 = scalar_select %p272, %s19, 1
      %p274 = scmp.lt.s32.totalorder %s20, 0
      %s275 = scalar_select %p274, %s20, 0
      %s276 = smul.addr %s273, 8
      %s277 = sadd.s32 %s275, %s276
      %s278 = smul.addr %s277, 4
      %s279 = scalar_lea.vmem %s4, %s278
      %v281 = vld [vmem:[%s256] sm:$0xff]
      %v282 = vld [vmem:[%s256 + $0x8] sm:$0xf]
      %v283 = vld [vmem:[%s256 + $0xc] sm:$0xff]
      %v284 = vld [vmem:[%s256 + $0x14] sm:$0xf]
      %v285 = vld [vmem:[%s256 + $0x18] sm:$0xff]
      %v286 = vld [vmem:[%s256 + $0x20] sm:$0xf]
      %v287 = vld [vmem:[%s256 + $0x24] sm:$0xff]
      %v288 = vld [vmem:[%s256 + $0x2c] sm:$0xf]
      %v289 = vld [vmem:[%s256 + $0x30] sm:$0xff]
      %v290 = vld [vmem:[%s256 + $0x38] sm:$0xf]
      %v291 = vld [vmem:[%s256 + $0x3c] sm:$0xff]
      %v292 = vld [vmem:[%s256 + $0x44] sm:$0xf]
      %v293 = vld [vmem:[%s256 + $0x48] sm:$0xff]
      %v294 = vld [vmem:[%s256 + $0x50] sm:$0xf]
      %v295 = vld [vmem:[%s256 + $0x54] sm:$0xff]
      %v296 = vld [vmem:[%s256 + $0x5c] sm:$0xf]
      %v297 = vld [vmem:[%s260] sm:$0xf]
      %v298 = vld [vmem:[%s260 + $0x4] sm:$0xf]
      %v299 = vld [vmem:[%s260 + $0x8] sm:$0xf]
      %v300 = vld [vmem:[%s260 + $0xc] sm:$0xf]
      %v301 = vld [vmem:[%s260 + $0x10] sm:$0xf]
      %v302 = vld [vmem:[%s260 + $0x14] sm:$0xf]
      %v303 = vld [vmem:[%s260 + $0x18] sm:$0xf]
      %v304 = vld [vmem:[%s260 + $0x1c] sm:$0xf]
      %v305 = vld [vmem:[%s260 + $0x20] sm:$0xf]
      %v306 = vld [vmem:[%s260 + $0x24] sm:$0xf]
      %v307 = vld [vmem:[%s260 + $0x28] sm:$0xf]
      %v308 = vld [vmem:[%s260 + $0x2c] sm:$0xf]
      %v309 = vld [vmem:[%s260 + $0x30] sm:$0xf]
      %v310 = vld [vmem:[%s260 + $0x34] sm:$0xf]
      %v311 = vld [vmem:[%s260 + $0x38] sm:$0xf]
      %v312 = vld [vmem:[%s260 + $0x3c] sm:$0xf]
      %v313 = vld [vmem:[%s260 + $0x40] sm:$0xf]
      %v314 = vld [vmem:[%s260 + $0x44] sm:$0xf]
      %v315 = vld [vmem:[%s260 + $0x48] sm:$0xf]
      %v316 = vld [vmem:[%s260 + $0x4c] sm:$0xf]
      %v317 = vld [vmem:[%s260 + $0x50] sm:$0xf]
      %v318 = vld [vmem:[%s260 + $0x54] sm:$0xf]
      %v319 = vld [vmem:[%s260 + $0x58] sm:$0xf]
      %v320 = vld [vmem:[%s260 + $0x5c] sm:$0xf]
      %v321 = vld [vmem:[%s260 + $0x60] sm:$0xf]
      %v322 = vld [vmem:[%s260 + $0x64] sm:$0xf]
      %v323 = vld [vmem:[%s260 + $0x68] sm:$0xf]
      %v324 = vld [vmem:[%s260 + $0x6c] sm:$0xf]
      %v325 = vld [vmem:[%s260 + $0x70] sm:$0xf]
      %v326 = vld [vmem:[%s260 + $0x74] sm:$0xf]
      %v327 = vld [vmem:[%s260 + $0x78] sm:$0xf]
      %v328 = vld [vmem:[%s260 + $0x7c] sm:$0xf]
      %v329 = vld [vmem:[%s260 + $0x80] sm:$0xf]
      %v330 = vld [vmem:[%s260 + $0x84] sm:$0xf]
      %v331 = vld [vmem:[%s260 + $0x88] sm:$0xf]
      %v332 = vld [vmem:[%s260 + $0x8c] sm:$0xf]
      %v333 = vld [vmem:[%s260 + $0x90] sm:$0xf]
      %v334 = vld [vmem:[%s260 + $0x94] sm:$0xf]
      %v335 = vld [vmem:[%s260 + $0x98] sm:$0xf]
      %v336 = vld [vmem:[%s260 + $0x9c] sm:$0xf]
      %v337 = vld [vmem:[%s260 + $0xa0] sm:$0xf]
      %v338 = vld [vmem:[%s260 + $0xa4] sm:$0xf]
      %v339 = vld [vmem:[%s260 + $0xa8] sm:$0xf]
      %v340 = vld [vmem:[%s260 + $0xac] sm:$0xf]
      %v341 = vld [vmem:[%s260 + $0xb0] sm:$0xf]
      %v342 = vld [vmem:[%s260 + $0xb4] sm:$0xf]
      %v343 = vld [vmem:[%s260 + $0xb8] sm:$0xf]
      %v344 = vld [vmem:[%s260 + $0xbc] sm:$0xf]
      %s345 = scalar_lea.vmem %s256, 12
      %v346 = vld [vmem:[%s345] sm:$0xff]
      %v347 = vld [vmem:[%s345 + $0x8] sm:$0xf]
      %v348 = vld [vmem:[%s345 + $0xc] sm:$0xff]
      %v349 = vld [vmem:[%s345 + $0x14] sm:$0xf]
      %v350 = vld [vmem:[%s345 + $0x18] sm:$0xff]
      %v351 = vld [vmem:[%s345 + $0x20] sm:$0xf]
      %v352 = vld [vmem:[%s345 + $0x24] sm:$0xff]
      %v353 = vld [vmem:[%s345 + $0x2c] sm:$0xf]
      %v354 = vld [vmem:[%s345 + $0x30] sm:$0xff]
      %v355 = vld [vmem:[%s345 + $0x38] sm:$0xf]
      %v356 = vld [vmem:[%s345 + $0x3c] sm:$0xff]
      %v357 = vld [vmem:[%s345 + $0x44] sm:$0xf]
      %v358 = vld [vmem:[%s345 + $0x48] sm:$0xff]
      %v359 = vld [vmem:[%s345 + $0x50] sm:$0xf]
      %v360 = vld [vmem:[%s345 + $0x54] sm:$0xff]
      %v361 = vld [vmem:[%s345 + $0x5c] sm:$0xf]
      %s362 = scalar_lea.vmem %s260, 192
      %v363 = vld [vmem:[%s362] sm:$0xf]
      %v364 = vld [vmem:[%s362 + $0x4] sm:$0xf]
      %v365 = vld [vmem:[%s362 + $0x8] sm:$0xf]
      %v366 = vld [vmem:[%s362 + $0xc] sm:$0xf]
      %v367 = vld [vmem:[%s362 + $0x10] sm:$0xf]
      %v368 = vld [vmem:[%s362 + $0x14] sm:$0xf]
      %v369 = vld [vmem:[%s362 + $0x18] sm:$0xf]
      %v370 = vld [vmem:[%s362 + $0x1c] sm:$0xf]
      %v371 = vld [vmem:[%s362 + $0x20] sm:$0xf]
      %v372 = vld [vmem:[%s362 + $0x24] sm:$0xf]
      %v373 = vld [vmem:[%s362 + $0x28] sm:$0xf]
      %v374 = vld [vmem:[%s362 + $0x2c] sm:$0xf]
      %v375 = vld [vmem:[%s362 + $0x30] sm:$0xf]
      %v376 = vld [vmem:[%s362 + $0x34] sm:$0xf]
      %v377 = vld [vmem:[%s362 + $0x38] sm:$0xf]
      %v378 = vld [vmem:[%s362 + $0x3c] sm:$0xf]
      %v379 = vld [vmem:[%s362 + $0x40] sm:$0xf]
      %v380 = vld [vmem:[%s362 + $0x44] sm:$0xf]
      %v381 = vld [vmem:[%s362 + $0x48] sm:$0xf]
      %v382 = vld [vmem:[%s362 + $0x4c] sm:$0xf]
      %v383 = vld [vmem:[%s362 + $0x50] sm:$0xf]
      %v384 = vld [vmem:[%s362 + $0x54] sm:$0xf]
      %v385 = vld [vmem:[%s362 + $0x58] sm:$0xf]
      %v386 = vld [vmem:[%s362 + $0x5c] sm:$0xf]
      %v387 = vld [vmem:[%s362 + $0x60] sm:$0xf]
      %v388 = vld [vmem:[%s362 + $0x64] sm:$0xf]
      %v389 = vld [vmem:[%s362 + $0x68] sm:$0xf]
      %v390 = vld [vmem:[%s362 + $0x6c] sm:$0xf]
      %v391 = vld [vmem:[%s362 + $0x70] sm:$0xf]
      %v392 = vld [vmem:[%s362 + $0x74] sm:$0xf]
      %v393 = vld [vmem:[%s362 + $0x78] sm:$0xf]
      %v394 = vld [vmem:[%s362 + $0x7c] sm:$0xf]
      %v395 = vld [vmem:[%s362 + $0x80] sm:$0xf]
      %v396 = vld [vmem:[%s362 + $0x84] sm:$0xf]
      %v397 = vld [vmem:[%s362 + $0x88] sm:$0xf]
      %v398 = vld [vmem:[%s362 + $0x8c] sm:$0xf]
      %v399 = vld [vmem:[%s362 + $0x90] sm:$0xf]
      %v400 = vld [vmem:[%s362 + $0x94] sm:$0xf]
      %v401 = vld [vmem:[%s362 + $0x98] sm:$0xf]
      %v402 = vld [vmem:[%s362 + $0x9c] sm:$0xf]
      %v403 = vld [vmem:[%s362 + $0xa0] sm:$0xf]
      %v404 = vld [vmem:[%s362 + $0xa4] sm:$0xf]
      %v405 = vld [vmem:[%s362 + $0xa8] sm:$0xf]
      %v406 = vld [vmem:[%s362 + $0xac] sm:$0xf]
      %v407 = vld [vmem:[%s362 + $0xb0] sm:$0xf]
      %v408 = vld [vmem:[%s362 + $0xb4] sm:$0xf]
      %v409 = vld [vmem:[%s362 + $0xb8] sm:$0xf]
      %v410 = vld [vmem:[%s362 + $0xbc] sm:$0xf]
      %v427 = vunpack.c.l.b16 %v346
      %v428 = vunpack.c.h.b16 %v346
      %v429 = vunpack.c.l.b16 %v347
      %v430 = vunpack.c.l.b16 %v348
      %v431 = vunpack.c.h.b16 %v348
      %v432 = vunpack.c.l.b16 %v349
      %v433 = vunpack.c.l.b16 %v350
      %v434 = vunpack.c.h.b16 %v350
      %v435 = vunpack.c.l.b16 %v351
      %v436 = vunpack.c.l.b16 %v352
      %v437 = vunpack.c.h.b16 %v352
      %v438 = vunpack.c.l.b16 %v353
      %v439 = vunpack.c.l.b16 %v354
      %v440 = vunpack.c.h.b16 %v354
      %v441 = vunpack.c.l.b16 %v355
      %v442 = vunpack.c.l.b16 %v356
      %v443 = vunpack.c.h.b16 %v356
      %v444 = vunpack.c.l.b16 %v357
      %v445 = vunpack.c.l.b16 %v358
      %v446 = vunpack.c.h.b16 %v358
      %v447 = vunpack.c.l.b16 %v359
      %v448 = vunpack.c.l.b16 %v360
      %v449 = vunpack.c.h.b16 %v360
      %v450 = vunpack.c.l.b16 %v361
      %v451 = vpack.c.b16 %v430, %v427
      %v452 = vpack.c.b16 %v431, %v428
      %v453 = vpack.c.b16 %v432, %v429
      %v454 = vpack.c.b16 %v436, %v433
      %v455 = vpack.c.b16 %v437, %v434
      %v456 = vpack.c.b16 %v438, %v435
      %v457 = vpack.c.b16 %v442, %v439
      %v458 = vpack.c.b16 %v443, %v440
      %v459 = vpack.c.b16 %v444, %v441
      %v460 = vpack.c.b16 %v448, %v445
      %v461 = vpack.c.b16 %v449, %v446
      %v462 = vpack.c.b16 %v450, %v447
      %v523 = vunpack.c.l.b16 %v363
      %v524 = vunpack.c.l.b16 %v364
      %v525 = vunpack.c.l.b16 %v365
      %v526 = vunpack.c.l.b16 %v366
      %v527 = vunpack.c.l.b16 %v367
      %v528 = vunpack.c.l.b16 %v368
      %v529 = vunpack.c.l.b16 %v369
      %v530 = vunpack.c.l.b16 %v370
      %v531 = vunpack.c.l.b16 %v371
      %v532 = vunpack.c.l.b16 %v372
      %v533 = vunpack.c.l.b16 %v373
      %v534 = vunpack.c.l.b16 %v374
      %v535 = vunpack.c.l.b16 %v375
      %v536 = vunpack.c.l.b16 %v376
      %v537 = vunpack.c.l.b16 %v377
      %v538 = vunpack.c.l.b16 %v378
      %v539 = vunpack.c.l.b16 %v379
      %v540 = vunpack.c.l.b16 %v380
      %v541 = vunpack.c.l.b16 %v381
      %v542 = vunpack.c.l.b16 %v382
      %v543 = vunpack.c.l.b16 %v383
      %v544 = vunpack.c.l.b16 %v384
      %v545 = vunpack.c.l.b16 %v385
      %v546 = vunpack.c.l.b16 %v386
      %v547 = vunpack.c.l.b16 %v387
      %v548 = vunpack.c.l.b16 %v388
      %v549 = vunpack.c.l.b16 %v389
      %v550 = vunpack.c.l.b16 %v390
      %v551 = vunpack.c.l.b16 %v391
      %v552 = vunpack.c.l.b16 %v392
      %v553 = vunpack.c.l.b16 %v393
      %v554 = vunpack.c.l.b16 %v394
      %v555 = vunpack.c.l.b16 %v395
      %v556 = vunpack.c.l.b16 %v396
      %v557 = vunpack.c.l.b16 %v397
      %v558 = vunpack.c.l.b16 %v398
      %v559 = vunpack.c.l.b16 %v399
      %v560 = vunpack.c.l.b16 %v400
      %v561 = vunpack.c.l.b16 %v401
      %v562 = vunpack.c.l.b16 %v402
      %v563 = vunpack.c.l.b16 %v403
      %v564 = vunpack.c.l.b16 %v404
      %v565 = vunpack.c.l.b16 %v405
      %v566 = vunpack.c.l.b16 %v406
      %v567 = vunpack.c.l.b16 %v407
      %v568 = vunpack.c.l.b16 %v408
      %v569 = vunpack.c.l.b16 %v409
      %v570 = vunpack.c.l.b16 %v410
      %v571 = vpack.c.b16 %v524, %v523
      %v572 = vpack.c.b16 %v526, %v525
      %v573 = vpack.c.b16 %v528, %v527
      %v574 = vpack.c.b16 %v530, %v529
      %v575 = vpack.c.b16 %v532, %v531
      %v576 = vpack.c.b16 %v534, %v533
      %v577 = vpack.c.b16 %v536, %v535
      %v578 = vpack.c.b16 %v538, %v537
      %v579 = vpack.c.b16 %v540, %v539
      %v580 = vpack.c.b16 %v542, %v541
      %v581 = vpack.c.b16 %v544, %v543
      %v582 = vpack.c.b16 %v546, %v545
      %v583 = vpack.c.b16 %v548, %v547
      %v584 = vpack.c.b16 %v550, %v549
      %v585 = vpack.c.b16 %v552, %v551
      %v586 = vpack.c.b16 %v554, %v553
      %v587 = vpack.c.b16 %v556, %v555
      %v588 = vpack.c.b16 %v558, %v557
      %v589 = vpack.c.b16 %v560, %v559
      %v590 = vpack.c.b16 %v562, %v561
      %v591 = vpack.c.b16 %v564, %v563
      %v592 = vpack.c.b16 %v566, %v565
      %v593 = vpack.c.b16 %v568, %v567
      %v594 = vpack.c.b16 %v570, %v569
      %619 = vmatprep.subr.bf16.mxu0 0
      %620 = vmatpush1.bf16.msra.mxu0 %v571
      %621 = vmatprep.subr.bf16.mxu0 0
      %622 = vmatpush1.bf16.msra.mxu0 %v572
      %623 = vmatprep.subr.bf16.mxu0 0
      %624 = vmatpush1.bf16.msra.mxu0 %v573
      %625 = vmatprep.subr.bf16.mxu0 0
      %626 = vmatpush1.bf16.msra.mxu0 %v574
      %627 = vmatprep.subr.bf16.mxu0 0
      %628 = vmatpush1.bf16.msra.mxu0 %v575
      %629 = vmatprep.subr.bf16.mxu0 0
      %630 = vmatpush1.bf16.msra.mxu0 %v576
      %631 = vmatprep.subr.bf16.mxu0 0
      %632 = vmatpush1.bf16.msra.mxu0 %v577
      %633 = vmatprep.subr.bf16.mxu0 0
      %634 = vmatpush1.bf16.msra.mxu0 %v578
      %635 = vmatprep.subr.bf16.mxu0 0
      %636 = vmatpush1.bf16.msra.mxu0 %v579
      %637 = vmatprep.subr.bf16.mxu0 0
      %638 = vmatpush1.bf16.msra.mxu0 %v580
      %639 = vmatprep.subr.bf16.mxu0 0
      %640 = vmatpush1.bf16.msra.mxu0 %v581
      %641 = vmatprep.subr.bf16.mxu0 0
      %642 = vmatpush1.bf16.msra.mxu0 %v582
      %643 = vmatprep.subr.bf16.mxu0 0
      %644 = vmatpush1.bf16.msra.mxu0 %v583
      %645 = vmatprep.subr.bf16.mxu0 0
      %646 = vmatpush1.bf16.msra.mxu0 %v584
      %647 = vmatprep.subr.bf16.mxu0 0
      %648 = vmatpush1.bf16.msra.mxu0 %v585
      %649 = vmatprep.subr.bf16.mxu0 0
      %650 = vmatpush1.bf16.msra.mxu0 %v586
      %651 = vmatprep.mubr.bf16.mxu0 %v452
      %652 = vmatmul.mubr.bf16.gmra.mrb[0].mxu0 %v451
      %v653 = vpop.f32.mrb[0].mxu0
      %v654 = vadd.f32 0.0, %v653
      %v655 = vpop.f32.mrb[0].mxu0
      %v656 = vpop.f32.mrb[0].mxu0
      %v657 = vadd.f32 0.0, %v656
      %v658 = vpop.f32.mrb[0].mxu0
      %659 = vmatprep.mubr.bf16.mxu0 %v455
      %660 = vmatmul.mubr.bf16.gmra.mrb[0].mxu0 %v454
      %v661 = vpop.f32.mrb[0].mxu0
      %v662 = vadd.f32 0.0, %v661
      %v663 = vpop.f32.mrb[0].mxu0
      %v664 = vpop.f32.mrb[0].mxu0
      %v665 = vadd.f32 0.0, %v664
      %v666 = vpop.f32.mrb[0].mxu0
      %667 = vmatprep.mubr.bf16.mxu0 %v458
      %668 = vmatmul.mubr.bf16.gmra.mrb[0].mxu0 %v457
      %v669 = vpop.f32.mrb[0].mxu0
      %v670 = vadd.f32 0.0, %v669
      %v671 = vpop.f32.mrb[0].mxu0
      %v672 = vpop.f32.mrb[0].mxu0
      %v673 = vadd.f32 0.0, %v672
      %v674 = vpop.f32.mrb[0].mxu0
      %675 = vmatprep.mubr.bf16.mxu0 %v461
      %676 = vmatmul.mubr.bf16.gmra.mrb[0].mxu0 %v460
      %v677 = vpop.f32.mrb[0].mxu0
      %v678 = vadd.f32 0.0, %v677
      %v679 = vpop.f32.mrb[0].mxu0
      %v680 = vpop.f32.mrb[0].mxu0
      %v681 = vadd.f32 0.0, %v680
      %v682 = vpop.f32.mrb[0].mxu0
      %683 = vdwg.mxu0
      %684 = vmatprep.subr.bf16.mxu0 0
      %685 = vmatpush1.bf16.msra.mxu0 %v587
      %686 = vmatprep.subr.bf16.mxu0 0
      %687 = vmatpush1.bf16.msra.mxu0 %v588
      %688 = vmatprep.subr.bf16.mxu0 0
      %689 = vmatpush1.bf16.msra.mxu0 %v589
      %690 = vmatprep.subr.bf16.mxu0 0
      %691 = vmatpush1.bf16.msra.mxu0 %v590
      %692 = vmatprep.subr.bf16.mxu0 0
      %693 = vmatpush1.bf16.msra.mxu0 %v591
      %694 = vmatprep.subr.bf16.mxu0 0
      %695 = vmatpush1.bf16.msra.mxu0 %v592
      %696 = vmatprep.subr.bf16.mxu0 0
      %697 = vmatpush1.bf16.msra.mxu0 %v593
      %698 = vmatprep.subr.bf16.mxu0 0
      %699 = vmatpush1.bf16.msra.mxu0 %v594
      %700 = vmatprep.subr.bf16.mxu0 0
      %701 = vmatpush1.bf16.msra.mxu0 0
      %702 = vmatprep.subr.bf16.mxu0 0
      %703 = vmatpush1.bf16.msra.mxu0 0
      %704 = vmatprep.subr.bf16.mxu0 0
      %705 = vmatpush1.bf16.msra.mxu0 0
      %706 = vmatprep.subr.bf16.mxu0 0
      %707 = vmatpush1.bf16.msra.mxu0 0
      %708 = vmatprep.subr.bf16.mxu0 0
      %709 = vmatpush1.bf16.msra.mxu0 0
      %710 = vmatprep.subr.bf16.mxu0 0
      %711 = vmatpush1.bf16.msra.mxu0 0
      %712 = vmatprep.subr.bf16.mxu0 0
      %713 = vmatpush1.bf16.msra.mxu0 0
      %714 = vmatprep.subr.bf16.mxu0 0
      %715 = vmatpush1.bf16.msra.mxu0 0
      %716 = vmatprep.mubr.bf16.mxu0 0
      %717 = vmatmul.mubr.bf16.gmra.mrb[0].mxu0 %v453
      %v718 = vpop.f32.mrb[0].mxu0
      %v719 = vadd.f32 %v654, %v718
      %v720 = vpop.f32.mrb[0].mxu0
      %v721 = vpop.f32.mrb[0].mxu0
      %v722 = vadd.f32 %v657, %v721
      %v723 = vpop.f32.mrb[0].mxu0
      %724 = vmatprep.mubr.bf16.mxu0 0
      %725 = vmatmul.mubr.bf16.gmra.mrb[0].mxu0 %v456
      %v726 = vpop.f32.mrb[0].mxu0
      %v727 = vadd.f32 %v662, %v726
      %v728 = vpop.f32.mrb[0].mxu0
      %v729 = vpop.f32.mrb[0].mxu0
      %v730 = vadd.f32 %v665, %v729
      %v731 = vpop.f32.mrb[0].mxu0
      %732 = vmatprep.mubr.bf16.mxu0 0
      %733 = vmatmul.mubr.bf16.gmra.mrb[0].mxu0 %v459
      %v734 = vpop.f32.mrb[0].mxu0
      %v735 = vadd.f32 %v670, %v734
      %v736 = vpop.f32.mrb[0].mxu0
      %v737 = vpop.f32.mrb[0].mxu0
      %v738 = vadd.f32 %v673, %v737
      %v739 = vpop.f32.mrb[0].mxu0
      %740 = vmatprep.mubr.bf16.mxu0 0
      %741 = vmatmul.mubr.bf16.gmra.mrb[0].mxu0 %v462
      %v742 = vpop.f32.mrb[0].mxu0
      %v743 = vadd.f32 %v678, %v742
      %v744 = vpop.f32.mrb[0].mxu0
      %v745 = vpop.f32.mrb[0].mxu0
      %v746 = vadd.f32 %v681, %v745
      %v747 = vpop.f32.mrb[0].mxu0
      %748 = vdwg.mxu0
      %v765 = vunpack.c.l.b16 %v281
      %v766 = vunpack.c.h.b16 %v281
      %v767 = vunpack.c.l.b16 %v282
      %v768 = vunpack.c.l.b16 %v283
      %v769 = vunpack.c.h.b16 %v283
      %v770 = vunpack.c.l.b16 %v284
      %v771 = vunpack.c.l.b16 %v285
      %v772 = vunpack.c.h.b16 %v285
      %v773 = vunpack.c.l.b16 %v286
      %v774 = vunpack.c.l.b16 %v287
      %v775 = vunpack.c.h.b16 %v287
      %v776 = vunpack.c.l.b16 %v288
      %v777 = vunpack.c.l.b16 %v289
      %v778 = vunpack.c.h.b16 %v289
      %v779 = vunpack.c.l.b16 %v290
      %v780 = vunpack.c.l.b16 %v291
      %v781 = vunpack.c.h.b16 %v291
      %v782 = vunpack.c.l.b16 %v292
      %v783 = vunpack.c.l.b16 %v293
      %v784 = vunpack.c.h.b16 %v293
      %v785 = vunpack.c.l.b16 %v294
      %v786 = vunpack.c.l.b16 %v295
      %v787 = vunpack.c.h.b16 %v295
      %v788 = vunpack.c.l.b16 %v296
      %v789 = vpack.c.b16 %v768, %v765
      %v790 = vpack.c.b16 %v769, %v766
      %v791 = vpack.c.b16 %v770, %v767
      %v792 = vpack.c.b16 %v774, %v771
      %v793 = vpack.c.b16 %v775, %v772
      %v794 = vpack.c.b16 %v776, %v773
      %v795 = vpack.c.b16 %v780, %v777
      %v796 = vpack.c.b16 %v781, %v778
      %v797 = vpack.c.b16 %v782, %v779
      %v798 = vpack.c.b16 %v786, %v783
      %v799 = vpack.c.b16 %v787, %v784
      %v800 = vpack.c.b16 %v788, %v785
      %v861 = vunpack.c.l.b16 %v297
      %v862 = vunpack.c.l.b16 %v298
      %v863 = vunpack.c.l.b16 %v299
      %v864 = vunpack.c.l.b16 %v300
      %v865 = vunpack.c.l.b16 %v301
      %v866 = vunpack.c.l.b16 %v302
      %v867 = vunpack.c.l.b16 %v303
      %v868 = vunpack.c.l.b16 %v304
      %v869 = vunpack.c.l.b16 %v305
      %v870 = vunpack.c.l.b16 %v306
      %v871 = vunpack.c.l.b16 %v307
      %v872 = vunpack.c.l.b16 %v308
      %v873 = vunpack.c.l.b16 %v309
      %v874 = vunpack.c.l.b16 %v310
      %v875 = vunpack.c.l.b16 %v311
      %v876 = vunpack.c.l.b16 %v312
      %v877 = vunpack.c.l.b16 %v313
      %v878 = vunpack.c.l.b16 %v314
      %v879 = vunpack.c.l.b16 %v315
      %v880 = vunpack.c.l.b16 %v316
      %v881 = vunpack.c.l.b16 %v317
      %v882 = vunpack.c.l.b16 %v318
      %v883 = vunpack.c.l.b16 %v319
      %v884 = vunpack.c.l.b16 %v320
      %v885 = vunpack.c.l.b16 %v321
      %v886 = vunpack.c.l.b16 %v322
      %v887 = vunpack.c.l.b16 %v323
      %v888 = vunpack.c.l.b16 %v324
      %v889 = vunpack.c.l.b16 %v325
      %v890 = vunpack.c.l.b16 %v326
      %v891 = vunpack.c.l.b16 %v327
      %v892 = vunpack.c.l.b16 %v328
      %v893 = vunpack.c.l.b16 %v329
      %v894 = vunpack.c.l.b16 %v330
      %v895 = vunpack.c.l.b16 %v331
      %v896 = vunpack.c.l.b16 %v332
      %v897 = vunpack.c.l.b16 %v333
      %v898 = vunpack.c.l.b16 %v334
      %v899 = vunpack.c.l.b16 %v335
      %v900 = vunpack.c.l.b16 %v336
      %v901 = vunpack.c.l.b16 %v337
      %v902 = vunpack.c.l.b16 %v338
      %v903 = vunpack.c.l.b16 %v339
      %v904 = vunpack.c.l.b16 %v340
      %v905 = vunpack.c.l.b16 %v341
      %v906 = vunpack.c.l.b16 %v342
      %v907 = vunpack.c.l.b16 %v343
      %v908 = vunpack.c.l.b16 %v344
      %v909 = vpack.c.b16 %v862, %v861
      %v910 = vpack.c.b16 %v864, %v863
      %v911 = vpack.c.b16 %v866, %v865
      %v912 = vpack.c.b16 %v868, %v867
      %v913 = vpack.c.b16 %v870, %v869
      %v914 = vpack.c.b16 %v872, %v871
      %v915 = vpack.c.b16 %v874, %v873
      %v916 = vpack.c.b16 %v876, %v875
      %v917 = vpack.c.b16 %v878, %v877
      %v918 = vpack.c.b16 %v880, %v879
      %v919 = vpack.c.b16 %v882, %v881
      %v920 = vpack.c.b16 %v884, %v883
      %v921 = vpack.c.b16 %v886, %v885
      %v922 = vpack.c.b16 %v888, %v887
      %v923 = vpack.c.b16 %v890, %v889
      %v924 = vpack.c.b16 %v892, %v891
      %v925 = vpack.c.b16 %v894, %v893
      %v926 = vpack.c.b16 %v896, %v895
      %v927 = vpack.c.b16 %v898, %v897
      %v928 = vpack.c.b16 %v900, %v899
      %v929 = vpack.c.b16 %v902, %v901
      %v930 = vpack.c.b16 %v904, %v903
      %v931 = vpack.c.b16 %v906, %v905
      %v932 = vpack.c.b16 %v908, %v907
      %957 = vmatprep.subr.bf16.mxu0 0
      %958 = vmatpush1.bf16.msra.mxu0 %v909
      %959 = vmatprep.subr.bf16.mxu0 0
      %960 = vmatpush1.bf16.msra.mxu0 %v910
      %961 = vmatprep.subr.bf16.mxu0 0
      %962 = vmatpush1.bf16.msra.mxu0 %v911
      %963 = vmatprep.subr.bf16.mxu0 0
      %964 = vmatpush1.bf16.msra.mxu0 %v912
      %965 = vmatprep.subr.bf16.mxu0 0
      %966 = vmatpush1.bf16.msra.mxu0 %v913
      %967 = vmatprep.subr.bf16.mxu0 0
      %968 = vmatpush1.bf16.msra.mxu0 %v914
      %969 = vmatprep.subr.bf16.mxu0 0
      %970 = vmatpush1.bf16.msra.mxu0 %v915
      %971 = vmatprep.subr.bf16.mxu0 0
      %972 = vmatpush1.bf16.msra.mxu0 %v916
      %973 = vmatprep.subr.bf16.mxu0 0
      %974 = vmatpush1.bf16.msra.mxu0 %v917
      %975 = vmatprep.subr.bf16.mxu0 0
      %976 = vmatpush1.bf16.msra.mxu0 %v918
      %977 = vmatprep.subr.bf16.mxu0 0
      %978 = vmatpush1.bf16.msra.mxu0 %v919
      %979 = vmatprep.subr.bf16.mxu0 0
      %980 = vmatpush1.bf16.msra.mxu0 %v920
      %981 = vmatprep.subr.bf16.mxu0 0
      %982 = vmatpush1.bf16.msra.mxu0 %v921
      %983 = vmatprep.subr.bf16.mxu0 0
      %984 = vmatpush1.bf16.msra.mxu0 %v922
      %985 = vmatprep.subr.bf16.mxu0 0
      %986 = vmatpush1.bf16.msra.mxu0 %v923
      %987 = vmatprep.subr.bf16.mxu0 0
      %988 = vmatpush1.bf16.msra.mxu0 %v924
      %989 = vmatprep.mubr.bf16.mxu0 %v790
      %990 = vmatmul.mubr.bf16.gmra.mrb[0].mxu0 %v789
      %v991 = vpop.f32.mrb[0].mxu0
      %v992 = vadd.f32 %v719, %v991
      %v993 = vpop.f32.mrb[0].mxu0
      %v994 = vpop.f32.mrb[0].mxu0
      %v995 = vadd.f32 %v722, %v994
      %v996 = vpop.f32.mrb[0].mxu0
      %997 = vmatprep.mubr.bf16.mxu0 %v793
      %998 = vmatmul.mubr.bf16.gmra.mrb[0].mxu0 %v792
      %v999 = vpop.f32.mrb[0].mxu0
      %v1000 = vadd.f32 %v727, %v999
      %v1001 = vpop.f32.mrb[0].mxu0
      %v1002 = vpop.f32.mrb[0].mxu0
      %v1003 = vadd.f32 %v730, %v1002
      %v1004 = vpop.f32.mrb[0].mxu0
      %1005 = vmatprep.mubr.bf16.mxu0 %v796
      %1006 = vmatmul.mubr.bf16.gmra.mrb[0].mxu0 %v795
      %v1007 = vpop.f32.mrb[0].mxu0
      %v1008 = vadd.f32 %v735, %v1007
      %v1009 = vpop.f32.mrb[0].mxu0
      %v1010 = vpop.f32.mrb[0].mxu0
      %v1011 = vadd.f32 %v738, %v1010
      %v1012 = vpop.f32.mrb[0].mxu0
      %1013 = vmatprep.mubr.bf16.mxu0 %v799
      %1014 = vmatmul.mubr.bf16.gmra.mrb[0].mxu0 %v798
      %v1015 = vpop.f32.mrb[0].mxu0
      %v1016 = vadd.f32 %v743, %v1015
      %v1017 = vpop.f32.mrb[0].mxu0
      %v1018 = vpop.f32.mrb[0].mxu0
      %v1019 = vadd.f32 %v746, %v1018
      %v1020 = vpop.f32.mrb[0].mxu0
      %1021 = vdwg.mxu0
      %1022 = vmatprep.subr.bf16.mxu0 0
      %1023 = vmatpush1.bf16.msra.mxu0 %v925
      %1024 = vmatprep.subr.bf16.mxu0 0
      %1025 = vmatpush1.bf16.msra.mxu0 %v926
      %1026 = vmatprep.subr.bf16.mxu0 0
      %1027 = vmatpush1.bf16.msra.mxu0 %v927
      %1028 = vmatprep.subr.bf16.mxu0 0
      %1029 = vmatpush1.bf16.msra.mxu0 %v928
      %1030 = vmatprep.subr.bf16.mxu0 0
      %1031 = vmatpush1.bf16.msra.mxu0 %v929
      %1032 = vmatprep.subr.bf16.mxu0 0
      %1033 = vmatpush1.bf16.msra.mxu0 %v930
      %1034 = vmatprep.subr.bf16.mxu0 0
      %1035 = vmatpush1.bf16.msra.mxu0 %v931
      %1036 = vmatprep.subr.bf16.mxu0 0
      %1037 = vmatpush1.bf16.msra.mxu0 %v932
      %1038 = vmatprep.subr.bf16.mxu0 0
      %1039 = vmatpush1.bf16.msra.mxu0 0
      %1040 = vmatprep.subr.bf16.mxu0 0
      %1041 = vmatpush1.bf16.msra.mxu0 0
      %1042 = vmatprep.subr.bf16.mxu0 0
      %1043 = vmatpush1.bf16.msra.mxu0 0
      %1044 = vmatprep.subr.bf16.mxu0 0
      %1045 = vmatpush1.bf16.msra.mxu0 0
      %1046 = vmatprep.subr.bf16.mxu0 0
      %1047 = vmatpush1.bf16.msra.mxu0 0
      %1048 = vmatprep.subr.bf16.mxu0 0
      %1049 = vmatpush1.bf16.msra.mxu0 0
      %1050 = vmatprep.subr.bf16.mxu0 0
      %1051 = vmatpush1.bf16.msra.mxu0 0
      %1052 = vmatprep.subr.bf16.mxu0 0
      %1053 = vmatpush1.bf16.msra.mxu0 0
      %1054 = vmatprep.mubr.bf16.mxu0 0
      %1055 = vmatmul.mubr.bf16.gmra.mrb[0].mxu0 %v791
      %v1056 = vpop.f32.mrb[0].mxu0
      %v1057 = vadd.f32 %v992, %v1056
      %v1058 = vpop.f32.mrb[0].mxu0
      %v1059 = vpop.f32.mrb[0].mxu0
      %v1060 = vadd.f32 %v995, %v1059
      %v1061 = vpop.f32.mrb[0].mxu0
      %1062 = vmatprep.mubr.bf16.mxu0 0
      %1063 = vmatmul.mubr.bf16.gmra.mrb[0].mxu0 %v794
      %v1064 = vpop.f32.mrb[0].mxu0
      %v1065 = vadd.f32 %v1000, %v1064
      %v1066 = vpop.f32.mrb[0].mxu0
      %v1067 = vpop.f32.mrb[0].mxu0
      %v1068 = vadd.f32 %v1003, %v1067
      %v1069 = vpop.f32.mrb[0].mxu0
      %1070 = vmatprep.mubr.bf16.mxu0 0
      %1071 = vmatmul.mubr.bf16.gmra.mrb[0].mxu0 %v797
      %v1072 = vpop.f32.mrb[0].mxu0
      %v1073 = vadd.f32 %v1008, %v1072
      %v1074 = vpop.f32.mrb[0].mxu0
      %v1075 = vpop.f32.mrb[0].mxu0
      %v1076 = vadd.f32 %v1011, %v1075
      %v1077 = vpop.f32.mrb[0].mxu0
      %1078 = vmatprep.mubr.bf16.mxu0 0
      %1079 = vmatmul.mubr.bf16.gmra.mrb[0].mxu0 %v800
      %v1080 = vpop.f32.mrb[0].mxu0
      %v1081 = vadd.f32 %v1016, %v1080
      %v1082 = vpop.f32.mrb[0].mxu0
      %v1083 = vpop.f32.mrb[0].mxu0
      %v1084 = vadd.f32 %v1019, %v1083
      %v1085 = vpop.f32.mrb[0].mxu0
      %1086 = vdwg.mxu0
      %s1087 = scalar_lea.vmem %s256, 24
      %v1088 = vld [vmem:[%s1087] sm:$0xff]
      %v1089 = vld [vmem:[%s1087 + $0x8] sm:$0xf]
      %v1090 = vld [vmem:[%s1087 + $0xc] sm:$0xff]
      %v1091 = vld [vmem:[%s1087 + $0x14] sm:$0xf]
      %v1092 = vld [vmem:[%s1087 + $0x18] sm:$0xff]
      %v1093 = vld [vmem:[%s1087 + $0x20] sm:$0xf]
      %v1094 = vld [vmem:[%s1087 + $0x24] sm:$0xff]
      %v1095 = vld [vmem:[%s1087 + $0x2c] sm:$0xf]
      %v1096 = vld [vmem:[%s1087 + $0x30] sm:$0xff]
      %v1097 = vld [vmem:[%s1087 + $0x38] sm:$0xf]
      %v1098 = vld [vmem:[%s1087 + $0x3c] sm:$0xff]
      %v1099 = vld [vmem:[%s1087 + $0x44] sm:$0xf]
      %v1100 = vld [vmem:[%s1087 + $0x48] sm:$0xff]
      %v1101 = vld [vmem:[%s1087 + $0x50] sm:$0xf]
      %v1102 = vld [vmem:[%s1087 + $0x54] sm:$0xff]
      %v1103 = vld [vmem:[%s1087 + $0x5c] sm:$0xf]
      %s1104 = scalar_lea.vmem %s260, 384
      %v1105 = vld [vmem:[%s1104] sm:$0xf]
      %v1106 = vld [vmem:[%s1104 + $0x4] sm:$0xf]
      %v1107 = vld [vmem:[%s1104 + $0x8] sm:$0xf]
      %v1108 = vld [vmem:[%s1104 + $0xc] sm:$0xf]
      %v1109 = vld [vmem:[%s1104 + $0x10] sm:$0xf]
      %v1110 = vld [vmem:[%s1104 + $0x14] sm:$0xf]
      %v1111 = vld [vmem:[%s1104 + $0x18] sm:$0xf]
      %v1112 = vld [vmem:[%s1104 + $0x1c] sm:$0xf]
      %v1113 = vld [vmem:[%s1104 + $0x20] sm:$0xf]
      %v1114 = vld [vmem:[%s1104 + $0x24] sm:$0xf]
      %v1115 = vld [vmem:[%s1104 + $0x28] sm:$0xf]
      %v1116 = vld [vmem:[%s1104 + $0x2c] sm:$0xf]
      %v1117 = vld [vmem:[%s1104 + $0x30] sm:$0xf]
      %v1118 = vld [vmem:[%s1104 + $0x34] sm:$0xf]
      %v1119 = vld [vmem:[%s1104 + $0x38] sm:$0xf]
      %v1120 = vld [vmem:[%s1104 + $0x3c] sm:$0xf]
      %v1121 = vld [vmem:[%s1104 + $0x40] sm:$0xf]
      %v1122 = vld [vmem:[%s1104 + $0x44] sm:$0xf]
      %v1123 = vld [vmem:[%s1104 + $0x48] sm:$0xf]
      %v1124 = vld [vmem:[%s1104 + $0x4c] sm:$0xf]
      %v1125 = vld [vmem:[%s1104 + $0x50] sm:$0xf]
      %v1126 = vld [vmem:[%s1104 + $0x54] sm:$0xf]
      %v1127 = vld [vmem:[%s1104 + $0x58] sm:$0xf]
      %v1128 = vld [vmem:[%s1104 + $0x5c] sm:$0xf]
      %v1129 = vld [vmem:[%s1104 + $0x60] sm:$0xf]
      %v1130 = vld [vmem:[%s1104 + $0x64] sm:$0xf]
      %v1131 = vld [vmem:[%s1104 + $0x68] sm:$0xf]
      %v1132 = vld [vmem:[%s1104 + $0x6c] sm:$0xf]
      %v1133 = vld [vmem:[%s1104 + $0x70] sm:$0xf]
      %v1134 = vld [vmem:[%s1104 + $0x74] sm:$0xf]
      %v1135 = vld [vmem:[%s1104 + $0x78] sm:$0xf]
      %v1136 = vld [vmem:[%s1104 + $0x7c] sm:$0xf]
      %v1137 = vld [vmem:[%s1104 + $0x80] sm:$0xf]
      %v1138 = vld [vmem:[%s1104 + $0x84] sm:$0xf]
      %v1139 = vld [vmem:[%s1104 + $0x88] sm:$0xf]
      %v1140 = vld [vmem:[%s1104 + $0x8c] sm:$0xf]
      %v1141 = vld [vmem:[%s1104 + $0x90] sm:$0xf]
      %v1142 = vld [vmem:[%s1104 + $0x94] sm:$0xf]
      %v1143 = vld [vmem:[%s1104 + $0x98] sm:$0xf]
      %v1144 = vld [vmem:[%s1104 + $0x9c] sm:$0xf]
      %v1145 = vld [vmem:[%s1104 + $0xa0] sm:$0xf]
      %v1146 = vld [vmem:[%s1104 + $0xa4] sm:$0xf]
      %v1147 = vld [vmem:[%s1104 + $0xa8] sm:$0xf]
      %v1148 = vld [vmem:[%s1104 + $0xac] sm:$0xf]
      %v1149 = vld [vmem:[%s1104 + $0xb0] sm:$0xf]
      %v1150 = vld [vmem:[%s1104 + $0xb4] sm:$0xf]
      %v1151 = vld [vmem:[%s1104 + $0xb8] sm:$0xf]
      %v1152 = vld [vmem:[%s1104 + $0xbc] sm:$0xf]
      %v1169 = vunpack.c.l.b16 %v1088
      %v1170 = vunpack.c.h.b16 %v1088
      %v1171 = vunpack.c.l.b16 %v1089
      %v1172 = vunpack.c.l.b16 %v1090
      %v1173 = vunpack.c.h.b16 %v1090
      %v1174 = vunpack.c.l.b16 %v1091
      %v1175 = vunpack.c.l.b16 %v1092
      %v1176 = vunpack.c.h.b16 %v1092
      %v1177 = vunpack.c.l.b16 %v1093
      %v1178 = vunpack.c.l.b16 %v1094
      %v1179 = vunpack.c.h.b16 %v1094
      %v1180 = vunpack.c.l.b16 %v1095
      %v1181 = vunpack.c.l.b16 %v1096
      %v1182 = vunpack.c.h.b16 %v1096
      %v1183 = vunpack.c.l.b16 %v1097
      %v1184 = vunpack.c.l.b16 %v1098
      %v1185 = vunpack.c.h.b16 %v1098
      %v1186 = vunpack.c.l.b16 %v1099
      %v1187 = vunpack.c.l.b16 %v1100
      %v1188 = vunpack.c.h.b16 %v1100
      %v1189 = vunpack.c.l.b16 %v1101
      %v1190 = vunpack.c.l.b16 %v1102
      %v1191 = vunpack.c.h.b16 %v1102
      %v1192 = vunpack.c.l.b16 %v1103
      %v1193 = vpack.c.b16 %v1172, %v1169
      %v1194 = vpack.c.b16 %v1173, %v1170
      %v1195 = vpack.c.b16 %v1174, %v1171
      %v1196 = vpack.c.b16 %v1178, %v1175
      %v1197 = vpack.c.b16 %v1179, %v1176
      %v1198 = vpack.c.b16 %v1180, %v1177
      %v1199 = vpack.c.b16 %v1184, %v1181
      %v1200 = vpack.c.b16 %v1185, %v1182
      %v1201 = vpack.c.b16 %v1186, %v1183
      %v1202 = vpack.c.b16 %v1190, %v1187
      %v1203 = vpack.c.b16 %v1191, %v1188
      %v1204 = vpack.c.b16 %v1192, %v1189
      %v1265 = vunpack.c.l.b16 %v1105
      %v1266 = vunpack.c.l.b16 %v1106
      %v1267 = vunpack.c.l.b16 %v1107
      %v1268 = vunpack.c.l.b16 %v1108
      %v1269 = vunpack.c.l.b16 %v1109
      %v1270 = vunpack.c.l.b16 %v1110
      %v1271 = vunpack.c.l.b16 %v1111
      %v1272 = vunpack.c.l.b16 %v1112
      %v1273 = vunpack.c.l.b16 %v1113
      %v1274 = vunpack.c.l.b16 %v1114
      %v1275 = vunpack.c.l.b16 %v1115
      %v1276 = vunpack.c.l.b16 %v1116
      %v1277 = vunpack.c.l.b16 %v1117
      %v1278 = vunpack.c.l.b16 %v1118
      %v1279 = vunpack.c.l.b16 %v1119
      %v1280 = vunpack.c.l.b16 %v1120
      %v1281 = vunpack.c.l.b16 %v1121
      %v1282 = vunpack.c.l.b16 %v1122
      %v1283 = vunpack.c.l.b16 %v1123
      %v1284 = vunpack.c.l.b16 %v1124
      %v1285 = vunpack.c.l.b16 %v1125
      %v1286 = vunpack.c.l.b16 %v1126
      %v1287 = vunpack.c.l.b16 %v1127
      %v1288 = vunpack.c.l.b16 %v1128
      %v1289 = vunpack.c.l.b16 %v1129
      %v1290 = vunpack.c.l.b16 %v1130
      %v1291 = vunpack.c.l.b16 %v1131
      %v1292 = vunpack.c.l.b16 %v1132
      %v1293 = vunpack.c.l.b16 %v1133
      %v1294 = vunpack.c.l.b16 %v1134
      %v1295 = vunpack.c.l.b16 %v1135
      %v1296 = vunpack.c.l.b16 %v1136
      %v1297 = vunpack.c.l.b16 %v1137
      %v1298 = vunpack.c.l.b16 %v1138
      %v1299 = vunpack.c.l.b16 %v1139
      %v1300 = vunpack.c.l.b16 %v1140
      %v1301 = vunpack.c.l.b16 %v1141
      %v1302 = vunpack.c.l.b16 %v1142
      %v1303 = vunpack.c.l.b16 %v1143
      %v1304 = vunpack.c.l.b16 %v1144
      %v1305 = vunpack.c.l.b16 %v1145
      %v1306 = vunpack.c.l.b16 %v1146
      %v1307 = vunpack.c.l.b16 %v1147
      %v1308 = vunpack.c.l.b16 %v1148
      %v1309 = vunpack.c.l.b16 %v1149
      %v1310 = vunpack.c.l.b16 %v1150
      %v1311 = vunpack.c.l.b16 %v1151
      %v1312 = vunpack.c.l.b16 %v1152
      %v1313 = vpack.c.b16 %v1266, %v1265
      %v1314 = vpack.c.b16 %v1268, %v1267
      %v1315 = vpack.c.b16 %v1270, %v1269
      %v1316 = vpack.c.b16 %v1272, %v1271
      %v1317 = vpack.c.b16 %v1274, %v1273
      %v1318 = vpack.c.b16 %v1276, %v1275
      %v1319 = vpack.c.b16 %v1278, %v1277
      %v1320 = vpack.c.b16 %v1280, %v1279
      %v1321 = vpack.c.b16 %v1282, %v1281
      %v1322 = vpack.c.b16 %v1284, %v1283
      %v1323 = vpack.c.b16 %v1286, %v1285
      %v1324 = vpack.c.b16 %v1288, %v1287
      %v1325 = vpack.c.b16 %v1290, %v1289
      %v1326 = vpack.c.b16 %v1292, %v1291
      %v1327 = vpack.c.b16 %v1294, %v1293
      %v1328 = vpack.c.b16 %v1296, %v1295
      %v1329 = vpack.c.b16 %v1298, %v1297
      %v1330 = vpack.c.b16 %v1300, %v1299
      %v1331 = vpack.c.b16 %v1302, %v1301
      %v1332 = vpack.c.b16 %v1304, %v1303
      %v1333 = vpack.c.b16 %v1306, %v1305
      %v1334 = vpack.c.b16 %v1308, %v1307
      %v1335 = vpack.c.b16 %v1310, %v1309
      %v1336 = vpack.c.b16 %v1312, %v1311
      %1361 = vmatprep.subr.bf16.mxu0 0
      %1362 = vmatpush1.bf16.msra.mxu0 %v1313
      %1363 = vmatprep.subr.bf16.mxu0 0
      %1364 = vmatpush1.bf16.msra.mxu0 %v1314
      %1365 = vmatprep.subr.bf16.mxu0 0
      %1366 = vmatpush1.bf16.msra.mxu0 %v1315
      %1367 = vmatprep.subr.bf16.mxu0 0
      %1368 = vmatpush1.bf16.msra.mxu0 %v1316
      %1369 = vmatprep.subr.bf16.mxu0 0
      %1370 = vmatpush1.bf16.msra.mxu0 %v1317
      %1371 = vmatprep.subr.bf16.mxu0 0
      %1372 = vmatpush1.bf16.msra.mxu0 %v1318
      %1373 = vmatprep.subr.bf16.mxu0 0
      %1374 = vmatpush1.bf16.msra.mxu0 %v1319
      %1375 = vmatprep.subr.bf16.mxu0 0
      %1376 = vmatpush1.bf16.msra.mxu0 %v1320
      %1377 = vmatprep.subr.bf16.mxu0 0
      %1378 = vmatpush1.bf16.msra.mxu0 %v1321
      %1379 = vmatprep.subr.bf16.mxu0 0
      %1380 = vmatpush1.bf16.msra.mxu0 %v1322
      %1381 = vmatprep.subr.bf16.mxu0 0
      %1382 = vmatpush1.bf16.msra.mxu0 %v1323
      %1383 = vmatprep.subr.bf16.mxu0 0
      %1384 = vmatpush1.bf16.msra.mxu0 %v1324
      %1385 = vmatprep.subr.bf16.mxu0 0
      %1386 = vmatpush1.bf16.msra.mxu0 %v1325
      %1387 = vmatprep.subr.bf16.mxu0 0
      %1388 = vmatpush1.bf16.msra.mxu0 %v1326
      %1389 = vmatprep.subr.bf16.mxu0 0
      %1390 = vmatpush1.bf16.msra.mxu0 %v1327
      %1391 = vmatprep.subr.bf16.mxu0 0
      %1392 = vmatpush1.bf16.msra.mxu0 %v1328
      %1393 = vmatprep.mubr.bf16.mxu0 %v1194
      %1394 = vmatmul.mubr.bf16.gmra.mrb[0].mxu0 %v1193
      %v1395 = vpop.f32.mrb[0].mxu0
      %v1396 = vadd.f32 0.0, %v1395
      %v1397 = vpop.f32.mrb[0].mxu0
      %v1398 = vpop.f32.mrb[0].mxu0
      %v1399 = vadd.f32 0.0, %v1398
      %v1400 = vpop.f32.mrb[0].mxu0
      %1401 = vmatprep.mubr.bf16.mxu0 %v1197
      %1402 = vmatmul.mubr.bf16.gmra.mrb[0].mxu0 %v1196
      %v1403 = vpop.f32.mrb[0].mxu0
      %v1404 = vadd.f32 0.0, %v1403
      %v1405 = vpop.f32.mrb[0].mxu0
      %v1406 = vpop.f32.mrb[0].mxu0
      %v1407 = vadd.f32 0.0, %v1406
      %v1408 = vpop.f32.mrb[0].mxu0
      %1409 = vmatprep.mubr.bf16.mxu0 %v1200
      %1410 = vmatmul.mubr.bf16.gmra.mrb[0].mxu0 %v1199
      %v1411 = vpop.f32.mrb[0].mxu0
      %v1412 = vadd.f32 0.0, %v1411
      %v1413 = vpop.f32.mrb[0].mxu0
      %v1414 = vpop.f32.mrb[0].mxu0
      %v1415 = vadd.f32 0.0, %v1414
      %v1416 = vpop.f32.mrb[0].mxu0
      %1417 = vmatprep.mubr.bf16.mxu0 %v1203
      %1418 = vmatmul.mubr.bf16.gmra.mrb[0].mxu0 %v1202
      %v1419 = vpop.f32.mrb[0].mxu0
      %v1420 = vadd.f32 0.0, %v1419
      %v1421 = vpop.f32.mrb[0].mxu0
      %v1422 = vpop.f32.mrb[0].mxu0
      %v1423 = vadd.f32 0.0, %v1422
      %v1424 = vpop.f32.mrb[0].mxu0
      %1425 = vdwg.mxu0
      %1426 = vmatprep.subr.bf16.mxu0 0
      %1427 = vmatpush1.bf16.msra.mxu0 %v1329
      %1428 = vmatprep.subr.bf16.mxu0 0
      %1429 = vmatpush1.bf16.msra.mxu0 %v1330
      %1430 = vmatprep.subr.bf16.mxu0 0
      %1431 = vmatpush1.bf16.msra.mxu0 %v1331
      %1432 = vmatprep.subr.bf16.mxu0 0
      %1433 = vmatpush1.bf16.msra.mxu0 %v1332
      %1434 = vmatprep.subr.bf16.mxu0 0
      %1435 = vmatpush1.bf16.msra.mxu0 %v1333
      %1436 = vmatprep.subr.bf16.mxu0 0
      %1437 = vmatpush1.bf16.msra.mxu0 %v1334
      %1438 = vmatprep.subr.bf16.mxu0 0
      %1439 = vmatpush1.bf16.msra.mxu0 %v1335
      %1440 = vmatprep.subr.bf16.mxu0 0
      %1441 = vmatpush1.bf16.msra.mxu0 %v1336
      %1442 = vmatprep.subr.bf16.mxu0 0
      %1443 = vmatpush1.bf16.msra.mxu0 0
      %1444 = vmatprep.subr.bf16.mxu0 0
      %1445 = vmatpush1.bf16.msra.mxu0 0
      %1446 = vmatprep.subr.bf16.mxu0 0
      %1447 = vmatpush1.bf16.msra.mxu0 0
      %1448 = vmatprep.subr.bf16.mxu0 0
      %1449 = vmatpush1.bf16.msra.mxu0 0
      %1450 = vmatprep.subr.bf16.mxu0 0
      %1451 = vmatpush1.bf16.msra.mxu0 0
      %1452 = vmatprep.subr.bf16.mxu0 0
      %1453 = vmatpush1.bf16.msra.mxu0 0
      %1454 = vmatprep.subr.bf16.mxu0 0
      %1455 = vmatpush1.bf16.msra.mxu0 0
      %1456 = vmatprep.subr.bf16.mxu0 0
      %1457 = vmatpush1.bf16.msra.mxu0 0
      %1458 = vmatprep.mubr.bf16.mxu0 0
      %1459 = vmatmul.mubr.bf16.gmra.mrb[0].mxu0 %v1195
      %v1460 = vpop.f32.mrb[0].mxu0
      %v1461 = vadd.f32 %v1396, %v1460
      %v1462 = vpop.f32.mrb[0].mxu0
      %v1463 = vpop.f32.mrb[0].mxu0
      %v1464 = vadd.f32 %v1399, %v1463
      %v1465 = vpop.f32.mrb[0].mxu0
      %1466 = vmatprep.mubr.bf16.mxu0 0
      %1467 = vmatmul.mubr.bf16.gmra.mrb[0].mxu0 %v1198
      %v1468 = vpop.f32.mrb[0].mxu0
      %v1469 = vadd.f32 %v1404, %v1468
      %v1470 = vpop.f32.mrb[0].mxu0
      %v1471 = vpop.f32.mrb[0].mxu0
      %v1472 = vadd.f32 %v1407, %v1471
      %v1473 = vpop.f32.mrb[0].mxu0
      %1474 = vmatprep.mubr.bf16.mxu0 0
      %1475 = vmatmul.mubr.bf16.gmra.mrb[0].mxu0 %v1201
      %v1476 = vpop.f32.mrb[0].mxu0
      %v1477 = vadd.f32 %v1412, %v1476
      %v1478 = vpop.f32.mrb[0].mxu0
      %v1479 = vpop.f32.mrb[0].mxu0
      %v1480 = vadd.f32 %v1415, %v1479
      %v1481 = vpop.f32.mrb[0].mxu0
      %1482 = vmatprep.mubr.bf16.mxu0 0
      %1483 = vmatmul.mubr.bf16.gmra.mrb[0].mxu0 %v1204
      %v1484 = vpop.f32.mrb[0].mxu0
      %v1485 = vadd.f32 %v1420, %v1484
      %v1486 = vpop.f32.mrb[0].mxu0
      %v1487 = vpop.f32.mrb[0].mxu0
      %v1488 = vadd.f32 %v1423, %v1487
      %v1489 = vpop.f32.mrb[0].mxu0
      %1490 = vdwg.mxu0
      %v1491 = vadd.f32 %v1057, %v1461
      %v1492 = vadd.f32 %v1060, %v1464
      %v1493 = vadd.f32 %v1065, %v1469
      %v1494 = vadd.f32 %v1068, %v1472
      %v1495 = vadd.f32 %v1073, %v1477
      %v1496 = vadd.f32 %v1076, %v1480
      %v1497 = vadd.f32 %v1081, %v1485
      %v1498 = vadd.f32 %v1084, %v1488
      %v1499 = vld [vmem:[%s263] sm:$0x1]
      %v1501 = vlaneseq
      %v1502 = vshrl.u32 %v1501, 7
      %v1503 = vsub.s32 0, %v1502
      %v1504 = vrot.slane %v1499, %v1503
      %v1506 = vadd.f32 %v1491, %v1504
      %v1507 = vadd.f32 %v1492, %v1504
      %v1508 = vadd.f32 %v1493, %v1504
      %v1509 = vadd.f32 %v1494, %v1504
      %v1510 = vadd.f32 %v1495, %v1504
      %v1511 = vadd.f32 %v1496, %v1504
      %v1512 = vadd.f32 %v1497, %v1504
      %v1513 = vadd.f32 %v1498, %v1504
      %v1514 = vld [vmem:[%s271] sm:$0xf]
      %v1515 = vld [vmem:[%s271 + $0x4] sm:$0xf]
      %v1516 = vld [vmem:[%s271 + $0x8] sm:$0xf]
      %v1517 = vld [vmem:[%s271 + $0xc] sm:$0xf]
      %v1518 = vld [vmem:[%s271 + $0x10] sm:$0xf]
      %v1519 = vld [vmem:[%s271 + $0x14] sm:$0xf]
      %v1520 = vld [vmem:[%s271 + $0x18] sm:$0xf]
      %v1521 = vld [vmem:[%s271 + $0x1c] sm:$0xf]
      %v1522 = vunpack.c.l.bf16 %v1514
      %v1523 = vunpack.c.l.bf16 %v1515
      %v1524 = vunpack.c.l.bf16 %v1516
      %v1525 = vunpack.c.l.bf16 %v1517
      %v1526 = vunpack.c.l.bf16 %v1518
      %v1527 = vunpack.c.l.bf16 %v1519
      %v1528 = vunpack.c.l.bf16 %v1520
      %v1529 = vunpack.c.l.bf16 %v1521
      %v1530 = vadd.f32 %v1506, %v1522
      %v1531 = vadd.f32 %v1507, %v1523
      %v1532 = vadd.f32 %v1508, %v1524
      %v1533 = vadd.f32 %v1509, %v1525
      %v1534 = vadd.f32 %v1510, %v1526
      %v1535 = vadd.f32 %v1511, %v1527
      %v1536 = vadd.f32 %v1512, %v1528
      %v1537 = vadd.f32 %v1513, %v1529
      %v1538 = vmax.f32 %v1530, 0.0
      %v1539 = vmax.f32 %v1531, 0.0
      %v1540 = vmax.f32 %v1532, 0.0
      %v1541 = vmax.f32 %v1533, 0.0
      %v1542 = vmax.f32 %v1534, 0.0
      %v1543 = vmax.f32 %v1535, 0.0
      %v1544 = vmax.f32 %v1536, 0.0
      %v1545 = vmax.f32 %v1537, 0.0
      %v1546 = vpack.c.bf16 %v1538, %v1538
      %v1547 = vpack.c.bf16 %v1539, %v1539
      %v1548 = vpack.c.bf16 %v1540, %v1540
      %v1549 = vpack.c.bf16 %v1541, %v1541
      %v1550 = vpack.c.bf16 %v1542, %v1542
      %v1551 = vpack.c.bf16 %v1543, %v1543
      %v1552 = vpack.c.bf16 %v1544, %v1544
      %v1553 = vpack.c.bf16 %v1545, %v1545
      %1554 = vst [vmem:[%s279] sm:$0xf] %v1546
      %1555 = vst [vmem:[%s279 + $0x4] sm:$0xf] %v1547
      %1556 = vst [vmem:[%s279 + $0x8] sm:$0xf] %v1548
      %1557 = vst [vmem:[%s279 + $0xc] sm:$0xf] %v1549
      %1558 = vst [vmem:[%s279 + $0x10] sm:$0xf] %v1550
      %1559 = vst [vmem:[%s279 + $0x14] sm:$0xf] %v1551
      %1560 = vst [vmem:[%s279 + $0x18] sm:$0xf] %v1552
      %1561 = vst [vmem:[%s279 + $0x1c] sm:$0xf] %v1553
      %p1562 = scmp.lt.s32.totalorder %s19, 1
      %s1563 = scalar_select %p1562, %s19, 1
      %p1564 = scmp.lt.s32.totalorder %s20, 0
      %s1565 = scalar_select %p1564, %s20, 0
      %s1566 = smul.addr %s1563, 8
      %s1567 = sadd.s32 %s1565, %s1566
      %s1568 = smul.addr %s1567, 4
      %s1569 = scalar_lea.vmem %s4, %s1568
      // Predicated region
      $region37: #{_lambda_.7} parent=35 // pred_check
        %p1570 = pneg %p153
      $region38: #{_lambda_.7} parent=35 // pred_check_branch
        %1572 = sbr.rel (%p1570) target = $region40
      $region39: #{_lambda_.7} parent=35 // pred_region
        _
      $region40: #{_lambda_.7} parent=35 // pred_fallthru
        _
    $region36: #{_lambda_.7} parent=5 // pred_fallthru
      _
    %p1573 = scmp.le.s32.totalorder 2, %s10
    // Predicated region
    $region41: #{_lambda_.7} parent=5 // pred_check
      %p1574 = pneg %p1573
    $region42: #{_lambda_.7} parent=5 // pred_check_branch
      %1576 = sbr.rel (%p1574) target = $region44
    $region43: #{_lambda_.7} parent=5 // pred_region
      %s1577 = ssub.s32 %s10, 2
      // Predicated region
      $region45: #{_lambda_.7} parent=43 // pred_check
        %p1578 = pneg %p159
      $region46: #{_lambda_.7} parent=43 // pred_check_branch
        %1580 = sbr.rel (%p1578) target = $region48
      $region47: #{_lambda_.7} parent=43 // pred_region
        %p1581 = scmp.lt.s32.totalorder %s21, 1
        %s1582 = scalar_select %p1581, %s21, 1
        %p1583 = scmp.lt.s32.totalorder %s22, 0
        %s1584 = scalar_select %p1583, %s22, 0
        %s1585 = smul.addr %s1582, 8
        %s1586 = sadd.s32 %s1584, %s1585
        %s1587 = smul.addr %s1586, 4
        %s1588 = scalar_lea.vmem %s4, %s1587
      $region48: #{_lambda_.7} parent=43 // pred_fallthru
        _
    $region44: #{_lambda_.7} parent=5 // pred_fallthru
      _
  $region6: #{_lambda_.7} parent=0 // loop_footer
    %s14 = sadd.s32 1, %s10
  $region7: #{_lambda_.7} parent=0 // loop_footer_branch
    %9 = sbr.rel target = $region3
  $region8: #{_lambda_.7} parent=0 // loop_exit
    _

// kernel: _lambda_.5
$region0: #{_lambda_.5}
  #allocation0 [shape = 'u32[]', space=smem, size = 0x4, offset = 0x4, fixed_abs, tag = 'smem constant byte address 0x4 - core index']
  #allocation1 [shape = 'u32[144,128]{1,0:T(1,128)}', space=vmem, size = 0x12000, scoped, tag = 'internal scratch']
  %s0 = inlined_call_operand.vmem [shape: bf16[2,10,8,384], index: 0, kind: input, shape index: {}]
  %s1 = inlined_call_operand.vmem [shape: bf16[3,384,128], index: 1, kind: input, shape index: {}]
  %s2 = inlined_call_operand.vmem [shape: f32[1,128], index: 2, kind: input, shape index: {}]
  %s3 = inlined_call_operand.vmem [shape: bf16[2,8,8,128], index: 3, kind: input, shape index: {}]
  %s4 = inlined_call_operand.vmem [shape: bf16[128,128], index: 4, kind: input, shape index: {}]
  %s5 = inlined_call_operand.vmem [shape: f32[1,128], index: 5, kind: input, shape index: {}]
  %s6 = inlined_call_operand.vmem [shape: bf16[2,8,8,128], index: 6, kind: output, shape index: {}]
  %s7 = sld [smem:[#allocation0]]
  $region57: #{_lambda_.5} parent=0
    _
  %s9 = ssub.s32 1, %s7
  %s10 = scalar_select 0, %s9, %s7
  loop: start=0, step=1, limit=4
  $region2: #{_lambda_.5} parent=0 // loop_pre_header
    _
  $region3: #{_lambda_.5} parent=0 // loop_header
    %s12 = sphi 0, %s16
    %p13 = scmp.ge.s32.totalorder %s12, 4
    %s19 = sphi 0, %s31
    %s20 = sphi 0, %s27
    %s21 = sphi 0, %s19
    %s22 = sphi 0, %s20
    %s23 = sphi 0, %s21
    %s24 = sphi 0, %s22
    %s34 = sphi 0, %s36
    %s37 = sphi 0, %s34
    %s38 = sphi 0, %s37
    %s54 = sphi 0, %s38
    %s60 = sphi 0, %s62
    %s63 = sphi 0, %s60
    %s64 = sphi 0, %s63
    %s80 = sphi 0, %s64
    %s86 = sphi 0, %s88
    %s89 = sphi 0, %s86
    %s90 = sphi 0, %s89
    %s106 = sphi 0, %s90
    %s112 = sphi 0, %s114
    %s115 = sphi 0, %s112
    %s116 = sphi 0, %s115
    %s132 = sphi 0, %s116
    %s138 = sphi 0, %s140
    %s141 = sphi 0, %s138
    %s142 = sphi 0, %s141
    %s158 = sphi 0, %s142
    %s164 = sphi 0, %s166
    %s167 = sphi 0, %s164
    %s168 = sphi 0, %s167
    %s184 = sphi 0, %s168
    %s192 = sphi 0, %s194
    %s195 = sphi 0, %s192
    %s196 = sphi 0, %s195
    %s212 = sphi 0, %s196
  $region4: #{_lambda_.5} parent=0 // loop_header_branch
    %15 = sbr.rel (%p13) target = $region8
  $region5: #{_lambda_.5} parent=0 // loop_body
    %s17 = ssub.s32 %s12, 1
    %s18 = ssub.s32 %s12, 2
    %s25 = sadd.s32 1, %s20
    %p26 = scmp.ge.s32.totalorder %s25, 1
    %s27 = scalar_select %p26, 0, %s25
    %s28 = sadd.s32 1, %s19
    %s29 = scalar_select %p26, %s28, %s19
    %p30 = scmp.ge.s32.totalorder %s29, 2
    %s31 = scalar_select %p30, 0, %s29
    %s32 = ssub.s32 %s19, %s31
    %p33 = scmp.eq.s32.totalorder %s32, 0
    %s35 = sadd.s32 %s34, 1
    %s36 = scalar_select %p33, %s34, %s35
    %p39 = pneg %p33
    %p40 = scmp.eq.s32.totalorder %s12, 1
    %p41 = por %p39, %p40
    %p42 = scmp.ne.s32.totalorder %s34, %s37
    %p43 = scmp.eq.s32.totalorder %s12, 0
    %p44 = por %p42, %p43
    %p45 = scmp.ne.s32.totalorder %s34, %s37
    %p46 = scmp.eq.s32.totalorder %s17, 1
    %p47 = por %p45, %p46
    %p48 = scmp.ne.s32.totalorder %s37, %s38
    %p49 = scmp.eq.s32.totalorder %s17, 0
    %p50 = por %p48, %p49
    %p51 = scmp.ne.s32.totalorder %s37, %s38
    %p52 = scmp.eq.s32.totalorder %s18, 1
    %p53 = por %p51, %p52
    %p55 = scmp.ne.s32.totalorder %s38, %s54
    %p56 = scmp.eq.s32.totalorder %s18, 0
    %p57 = por %p55, %p56
    %s58 = ssub.s32 %s20, %s27
    %p59 = scmp.eq.s32.totalorder %s58, 0
    %s61 = sadd.s32 %s60, 1
    %s62 = scalar_select %p59, %s60, %s61
    %p65 = pneg %p59
    %p66 = scmp.eq.s32.totalorder %s12, 1
    %p67 = por %p65, %p66
    %p68 = scmp.ne.s32.totalorder %s60, %s63
    %p69 = scmp.eq.s32.totalorder %s12, 0
    %p70 = por %p68, %p69
    %p71 = scmp.ne.s32.totalorder %s60, %s63
    %p72 = scmp.eq.s32.totalorder %s17, 1
    %p73 = por %p71, %p72
    %p74 = scmp.ne.s32.totalorder %s63, %s64
    %p75 = scmp.eq.s32.totalorder %s17, 0
    %p76 = por %p74, %p75
    %p77 = scmp.ne.s32.totalorder %s63, %s64
    %p78 = scmp.eq.s32.totalorder %s18, 1
    %p79 = por %p77, %p78
    %p81 = scmp.ne.s32.totalorder %s64, %s80
    %p82 = scmp.eq.s32.totalorder %s18, 0
    %p83 = por %p81, %p82
    %s84 = ssub.s32 %s20, %s27
    %p85 = scmp.eq.s32.totalorder %s84, 0
    %s87 = sadd.s32 %s86, 1
    %s88 = scalar_select %p85, %s86, %s87
    %p91 = pneg %p85
    %p92 = scmp.eq.s32.totalorder %s12, 1
    %p93 = por %p91, %p92
    %p94 = scmp.ne.s32.totalorder %s86, %s89
    %p95 = scmp.eq.s32.totalorder %s12, 0
    %p96 = por %p94, %p95
    %p97 = scmp.ne.s32.totalorder %s86, %s89
    %p98 = scmp.eq.s32.totalorder %s17, 1
    %p99 = por %p97, %p98
    %p100 = scmp.ne.s32.totalorder %s89, %s90
    %p101 = scmp.eq.s32.totalorder %s17, 0
    %p102 = por %p100, %p101
    %p103 = scmp.ne.s32.totalorder %s89, %s90
    %p104 = scmp.eq.s32.totalorder %s18, 1
    %p105 = por %p103, %p104
    %p107 = scmp.ne.s32.totalorder %s90, %s106
    %p108 = scmp.eq.s32.totalorder %s18, 0
    %p109 = por %p107, %p108
    %s110 = ssub.s32 %s19, %s31
    %p111 = scmp.eq.s32.totalorder %s110, 0
    %s113 = sadd.s32 %s112, 1
    %s114 = scalar_select %p111, %s112, %s113
    %p117 = pneg %p111
    %p118 = scmp.eq.s32.totalorder %s12, 1
    %p119 = por %p117, %p118
    %p120 = scmp.ne.s32.totalorder %s112, %s115
    %p121 = scmp.eq.s32.totalorder %s12, 0
    %p122 = por %p120, %p121
    %p123 = scmp.ne.s32.totalorder %s112, %s115
    %p124 = scmp.eq.s32.totalorder %s17, 1
    %p125 = por %p123, %p124
    %p126 = scmp.ne.s32.totalorder %s115, %s116
    %p127 = scmp.eq.s32.totalorder %s17, 0
    %p128 = por %p126, %p127
    %p129 = scmp.ne.s32.totalorder %s115, %s116
    %p130 = scmp.eq.s32.totalorder %s18, 1
    %p131 = por %p129, %p130
    %p133 = scmp.ne.s32.totalorder %s116, %s132
    %p134 = scmp.eq.s32.totalorder %s18, 0
    %p135 = por %p133, %p134
    %s136 = ssub.s32 %s20, %s27
    %p137 = scmp.eq.s32.totalorder %s136, 0
    %s139 = sadd.s32 %s138, 1
    %s140 = scalar_select %p137, %s138, %s139
    %p143 = pneg %p137
    %p144 = scmp.eq.s32.totalorder %s12, 1
    %p145 = por %p143, %p144
    %p146 = scmp.ne.s32.totalorder %s138, %s141
    %p147 = scmp.eq.s32.totalorder %s12, 0
    %p148 = por %p146, %p147
    %p149 = scmp.ne.s32.totalorder %s138, %s141
    %p150 = scmp.eq.s32.totalorder %s17, 1
    %p151 = por %p149, %p150
    %p152 = scmp.ne.s32.totalorder %s141, %s142
    %p153 = scmp.eq.s32.totalorder %s17, 0
    %p154 = por %p152, %p153
    %p155 = scmp.ne.s32.totalorder %s141, %s142
    %p156 = scmp.eq.s32.totalorder %s18, 1
    %p157 = por %p155, %p156
    %p159 = scmp.ne.s32.totalorder %s142, %s158
    %p160 = scmp.eq.s32.totalorder %s18, 0
    %p161 = por %p159, %p160
    %s162 = ssub.s32 %s20, %s27
    %p163 = scmp.eq.s32.totalorder %s162, 0
    %s165 = sadd.s32 %s164, 1
    %s166 = scalar_select %p163, %s164, %s165
    %p169 = pneg %p163
    %p170 = scmp.eq.s32.totalorder %s12, 1
    %p171 = por %p169, %p170
    %p172 = scmp.ne.s32.totalorder %s164, %s167
    %p173 = scmp.eq.s32.totalorder %s12, 0
    %p174 = por %p172, %p173
    %p175 = scmp.ne.s32.totalorder %s164, %s167
    %p176 = scmp.eq.s32.totalorder %s17, 1
    %p177 = por %p175, %p176
    %p178 = scmp.ne.s32.totalorder %s167, %s168
    %p179 = scmp.eq.s32.totalorder %s17, 0
    %p180 = por %p178, %p179
    %p181 = scmp.ne.s32.totalorder %s167, %s168
    %p182 = scmp.eq.s32.totalorder %s18, 1
    %p183 = por %p181, %p182
    %p185 = scmp.ne.s32.totalorder %s168, %s184
    %p186 = scmp.eq.s32.totalorder %s18, 0
    %p187 = por %p185, %p186
    %s188 = ssub.s32 %s19, %s31
    %s189 = ssub.s32 %s20, %s27
    %s190 = sor.u32 %s188, %s189
    %p191 = scmp.eq.s32.totalorder %s190, 0
    %s193 = sadd.s32 %s192, 1
    %s194 = scalar_select %p191, %s192, %s193
    %p197 = pneg %p191
    %p198 = scmp.eq.s32.totalorder %s12, 1
    %p199 = por %p197, %p198
    %p200 = scmp.ne.s32.totalorder %s192, %s195
    %p201 = scmp.eq.s32.totalorder %s12, 0
    %p202 = por %p200, %p201
    %p203 = scmp.ne.s32.totalorder %s192, %s195
    %p204 = scmp.eq.s32.totalorder %s17, 1
    %p205 = por %p203, %p204
    %p206 = scmp.ne.s32.totalorder %s195, %s196
    %p207 = scmp.eq.s32.totalorder %s17, 0
    %p208 = por %p206, %p207
    %p209 = scmp.ne.s32.totalorder %s195, %s196
    %p210 = scmp.eq.s32.totalorder %s18, 1
    %p211 = por %p209, %p210
    %p213 = scmp.ne.s32.totalorder %s196, %s212
    %p214 = scmp.eq.s32.totalorder %s18, 0
    %p215 = por %p213, %p214
    %p216 = scmp.le.s32.totalorder 1, %s12
    %p217 = scmp.lt.s32.totalorder %s12, 3
    %p218 = pnand %p216, %p217
    %p219 = pneg %p218
    // Predicated region
    $region9: #{_lambda_.5} parent=5 // pred_check
      _
    $region10: #{_lambda_.5} parent=5 // pred_check_branch
      %221 = sbr.rel (%p218) target = $region12
    $region11: #{_lambda_.5} parent=5 // pred_region
      %s222 = ssub.s32 %s12, 1
      // Predicated region
      $region13: #{_lambda_.5} parent=11 // pred_check
        %p223 = pneg %p76
      $region14: #{_lambda_.5} parent=11 // pred_check_branch
        %225 = sbr.rel (%p223) target = $region16
      $region15: #{_lambda_.5} parent=11 // pred_region
        %p226 = scmp.lt.s32.totalorder %s22, 0
        %s227 = scalar_select %p226, %s22, 0
        %s228 = smul.addr %s227, 4
        %s229 = scalar_lea.vmem %s1, %s228
      $region16: #{_lambda_.5} parent=11 // pred_fallthru
        _
      // Predicated region
      $region17: #{_lambda_.5} parent=11 // pred_check
        %p230 = pneg %p102
      $region18: #{_lambda_.5} parent=11 // pred_check_branch
        %232 = sbr.rel (%p230) target = $region20
      $region19: #{_lambda_.5} parent=11 // pred_region
        %p233 = scmp.lt.s32.totalorder %s22, 0
        %s234 = scalar_select %p233, %s22, 0
        %s235 = scalar_lea.vmem %s2, %s234
      $region20: #{_lambda_.5} parent=11 // pred_fallthru
        _
      // Predicated region
      $region21: #{_lambda_.5} parent=11 // pred_check
        %p236 = pneg %p154
      $region22: #{_lambda_.5} parent=11 // pred_check_branch
        %238 = sbr.rel (%p236) target = $region24
      $region23: #{_lambda_.5} parent=11 // pred_region
        %p239 = scmp.lt.s32.totalorder %s22, 0
        %s240 = scalar_select %p239, %s22, 0
        %s241 = smul.addr %s240, 4
        %s242 = scalar_lea.vmem %s4, %s241
      $region24: #{_lambda_.5} parent=11 // pred_fallthru
        _
      // Predicated region
      $region25: #{_lambda_.5} parent=11 // pred_check
        %p243 = pneg %p180
      $region26: #{_lambda_.5} parent=11 // pred_check_branch
        %245 = sbr.rel (%p243) target = $region28
      $region27: #{_lambda_.5} parent=11 // pred_region
        %p246 = scmp.lt.s32.totalorder %s22, 0
        %s247 = scalar_select %p246, %s22, 0
        %s248 = scalar_lea.vmem %s5, %s247
      $region28: #{_lambda_.5} parent=11 // pred_fallthru
        _
    $region12: #{_lambda_.5} parent=5 // pred_fallthru
      _
    %p249 = scmp.lt.s32.totalorder %s12, 2
    // Predicated region
    $region29: #{_lambda_.5} parent=5 // pred_check
      %p250 = pneg %p249
    $region30: #{_lambda_.5} parent=5 // pred_check_branch
      %252 = sbr.rel (%p250) target = $region32
    $region31: #{_lambda_.5} parent=5 // pred_region
      // Predicated region
      $region33: #{_lambda_.5} parent=31 // pred_check
        %p253 = pneg %p44
      $region34: #{_lambda_.5} parent=31 // pred_check_branch
        %255 = sbr.rel (%p253) target = $region36
      $region35: #{_lambda_.5} parent=31 // pred_region
        %p256 = scmp.lt.s32.totalorder %s19, 1
        %s257 = scalar_select %p256, %s19, 1
        %s258 = smul.addr %s257, 30
        %s259 = smul.addr %s258, 4
        %s260 = scalar_lea.vmem %s0, %s259
      $region36: #{_lambda_.5} parent=31 // pred_fallthru
        _
      // Predicated region
      $region37: #{_lambda_.5} parent=31 // pred_check
        %p261 = pneg %p122
      $region38: #{_lambda_.5} parent=31 // pred_check_branch
        %263 = sbr.rel (%p261) target = $region40
      $region39: #{_lambda_.5} parent=31 // pred_region
        %p264 = scmp.lt.s32.totalorder %s19, 1
        %s265 = scalar_select %p264, %s19, 1
        %s266 = smul.addr %s265, 8
        %s267 = smul.addr %s266, 4
        %s268 = scalar_lea.vmem %s3, %s267
      $region40: #{_lambda_.5} parent=31 // pred_fallthru
        _
    $region32: #{_lambda_.5} parent=5 // pred_fallthru
      _
    %p269 = scmp.le.s32.totalorder 1, %s12
    %p270 = scmp.lt.s32.totalorder %s12, 3
    %p271 = pnand %p269, %p270
    %p272 = pneg %p271
    // Predicated region
    $region41: #{_lambda_.5} parent=5 // pred_check
      _
    $region42: #{_lambda_.5} parent=5 // pred_check_branch
      %274 = sbr.rel (%p271) target = $region44
    $region43: #{_lambda_.5} parent=5 // pred_region
      %s275 = ssub.s32 %s12, 1
      %p276 = scmp.lt.s32.totalorder %s21, 1
      %s277 = scalar_select %p276, %s21, 1
      %s278 = smul.addr %s277, 30
      %s279 = smul.addr %s278, 4
      %s280 = scalar_lea.vmem %s0, %s279
      %p281 = pneg %p50
      %p282 = pneg %p47
      %p283 = scmp.lt.s32.totalorder %s22, 0
      %s284 = scalar_select %p283, %s22, 0
      %s285 = smul.addr %s284, 4
      %s286 = scalar_lea.vmem %s1, %s285
      %p287 = pneg %p76
      %p288 = pneg %p73
      %p289 = scmp.lt.s32.totalorder %s22, 0
      %s290 = scalar_select %p289, %s22, 0
      %s291 = scalar_lea.vmem %s2, %s290
      %p292 = pneg %p102
      %p293 = pneg %p99
      %p294 = scmp.lt.s32.totalorder %s21, 1
      %s295 = scalar_select %p294, %s21, 1
      %s296 = smul.addr %s295, 8
      %s297 = smul.addr %s296, 4
      %s298 = scalar_lea.vmem %s3, %s297
      %p299 = pneg %p128
      %p300 = pneg %p125
      %p301 = scmp.lt.s32.totalorder %s22, 0
      %s302 = scalar_select %p301, %s22, 0
      %s303 = smul.addr %s302, 4
      %s304 = scalar_lea.vmem %s4, %s303
      %p305 = pneg %p154
      %p306 = pneg %p151
      %p307 = scmp.lt.s32.totalorder %s22, 0
      %s308 = scalar_select %p307, %s22, 0
      %s309 = scalar_lea.vmem %s5, %s308
      %p310 = pneg %p180
      %p311 = pneg %p177
      %p312 = pneg %p208
      %p313 = pneg %p205
      %p314 = scmp.lt.s32.totalorder %s21, 1
      %s315 = scalar_select %p314, %s21, 1
      %p316 = scmp.lt.s32.totalorder %s22, 0
      %s317 = scalar_select %p316, %s22, 0
      %s318 = smul.addr %s315, 8
      %s319 = sadd.s32 %s317, %s318
      %s320 = smul.addr %s319, 4
      %s321 = scalar_lea.vmem %s6, %s320
      %p322 = scmp.lt.s32.totalorder %s21, 1
      %s323 = scalar_select %p322, %s21, 1
      %s324 = smul.addr %s323, 30
      %s325 = smul.addr %s324, 4
      %s326 = scalar_lea.vmem %s0, %s325
      %p327 = scmp.lt.s32.totalorder %s22, 0
      %s328 = scalar_select %p327, %s22, 0
      %s329 = smul.addr %s328, 4
      %s330 = scalar_lea.vmem %s1, %s329
      %p331 = scmp.lt.s32.totalorder %s22, 0
      %s332 = scalar_select %p331, %s22, 0
      %s333 = scalar_lea.vmem %s2, %s332
      %p334 = scmp.lt.s32.totalorder %s21, 1
      %s335 = scalar_select %p334, %s21, 1
      %s336 = smul.addr %s335, 8
      %s337 = smul.addr %s336, 4
      %s338 = scalar_lea.vmem %s3, %s337
      %p339 = scmp.lt.s32.totalorder %s22, 0
      %s340 = scalar_select %p339, %s22, 0
      %s341 = smul.addr %s340, 4
      %s342 = scalar_lea.vmem %s4, %s341
      %p343 = scmp.lt.s32.totalorder %s22, 0
      %s344 = scalar_select %p343, %s22, 0
      %s345 = scalar_lea.vmem %s5, %s344
      %p346 = scmp.lt.s32.totalorder %s21, 1
      %s347 = scalar_select %p346, %s21, 1
      %p348 = scmp.lt.s32.totalorder %s22, 0
      %s349 = scalar_select %p348, %s22, 0
      %s350 = smul.addr %s347, 8
      %s351 = sadd.s32 %s349, %s350
      %s352 = smul.addr %s351, 4
      %s353 = scalar_lea.vmem %s6, %s352
      %v355 = vld [vmem:[%s326] sm:$0xff]
      %v356 = vld [vmem:[%s326 + $0x8] sm:$0xf]
      %v357 = vld [vmem:[%s326 + $0xc] sm:$0xff]
      %v358 = vld [vmem:[%s326 + $0x14] sm:$0xf]
      %v359 = vld [vmem:[%s326 + $0x18] sm:$0xff]
      %v360 = vld [vmem:[%s326 + $0x20] sm:$0xf]
      %v361 = vld [vmem:[%s326 + $0x24] sm:$0xff]
      %v362 = vld [vmem:[%s326 + $0x2c] sm:$0xf]
      %v363 = vld [vmem:[%s326 + $0x30] sm:$0xff]
      %v364 = vld [vmem:[%s326 + $0x38] sm:$0xf]
      %v365 = vld [vmem:[%s326 + $0x3c] sm:$0xff]
      %v366 = vld [vmem:[%s326 + $0x44] sm:$0xf]
      %v367 = vld [vmem:[%s326 + $0x48] sm:$0xff]
      %v368 = vld [vmem:[%s326 + $0x50] sm:$0xf]
      %v369 = vld [vmem:[%s326 + $0x54] sm:$0xff]
      %v370 = vld [vmem:[%s326 + $0x5c] sm:$0xf]
      %v371 = vld [vmem:[%s330] sm:$0xf]
      %v372 = vld [vmem:[%s330 + $0x4] sm:$0xf]
      %v373 = vld [vmem:[%s330 + $0x8] sm:$0xf]
      %v374 = vld [vmem:[%s330 + $0xc] sm:$0xf]
      %v375 = vld [vmem:[%s330 + $0x10] sm:$0xf]
      %v376 = vld [vmem:[%s330 + $0x14] sm:$0xf]
      %v377 = vld [vmem:[%s330 + $0x18] sm:$0xf]
      %v378 = vld [vmem:[%s330 + $0x1c] sm:$0xf]
      %v379 = vld [vmem:[%s330 + $0x20] sm:$0xf]
      %v380 = vld [vmem:[%s330 + $0x24] sm:$0xf]
      %v381 = vld [vmem:[%s330 + $0x28] sm:$0xf]
      %v382 = vld [vmem:[%s330 + $0x2c] sm:$0xf]
      %v383 = vld [vmem:[%s330 + $0x30] sm:$0xf]
      %v384 = vld [vmem:[%s330 + $0x34] sm:$0xf]
      %v385 = vld [vmem:[%s330 + $0x38] sm:$0xf]
      %v386 = vld [vmem:[%s330 + $0x3c] sm:$0xf]
      %v387 = vld [vmem:[%s330 + $0x40] sm:$0xf]
      %v388 = vld [vmem:[%s330 + $0x44] sm:$0xf]
      %v389 = vld [vmem:[%s330 + $0x48] sm:$0xf]
      %v390 = vld [vmem:[%s330 + $0x4c] sm:$0xf]
      %v391 = vld [vmem:[%s330 + $0x50] sm:$0xf]
      %v392 = vld [vmem:[%s330 + $0x54] sm:$0xf]
      %v393 = vld [vmem:[%s330 + $0x58] sm:$0xf]
      %v394 = vld [vmem:[%s330 + $0x5c] sm:$0xf]
      %v395 = vld [vmem:[%s330 + $0x60] sm:$0xf]
      %v396 = vld [vmem:[%s330 + $0x64] sm:$0xf]
      %v397 = vld [vmem:[%s330 + $0x68] sm:$0xf]
      %v398 = vld [vmem:[%s330 + $0x6c] sm:$0xf]
      %v399 = vld [vmem:[%s330 + $0x70] sm:$0xf]
      %v400 = vld [vmem:[%s330 + $0x74] sm:$0xf]
      %v401 = vld [vmem:[%s330 + $0x78] sm:$0xf]
      %v402 = vld [vmem:[%s330 + $0x7c] sm:$0xf]
      %v403 = vld [vmem:[%s330 + $0x80] sm:$0xf]
      %v404 = vld [vmem:[%s330 + $0x84] sm:$0xf]
      %v405 = vld [vmem:[%s330 + $0x88] sm:$0xf]
      %v406 = vld [vmem:[%s330 + $0x8c] sm:$0xf]
      %v407 = vld [vmem:[%s330 + $0x90] sm:$0xf]
      %v408 = vld [vmem:[%s330 + $0x94] sm:$0xf]
      %v409 = vld [vmem:[%s330 + $0x98] sm:$0xf]
      %v410 = vld [vmem:[%s330 + $0x9c] sm:$0xf]
      %v411 = vld [vmem:[%s330 + $0xa0] sm:$0xf]
      %v412 = vld [vmem:[%s330 + $0xa4] sm:$0xf]
      %v413 = vld [vmem:[%s330 + $0xa8] sm:$0xf]
      %v414 = vld [vmem:[%s330 + $0xac] sm:$0xf]
      %v415 = vld [vmem:[%s330 + $0xb0] sm:$0xf]
      %v416 = vld [vmem:[%s330 + $0xb4] sm:$0xf]
      %v417 = vld [vmem:[%s330 + $0xb8] sm:$0xf]
      %v418 = vld [vmem:[%s330 + $0xbc] sm:$0xf]
      %s419 = scalar_lea.vmem %s326, 12
      %v420 = vld [vmem:[%s419] sm:$0xff]
      %v421 = vld [vmem:[%s419 + $0x8] sm:$0xf]
      %v422 = vld [vmem:[%s419 + $0xc] sm:$0xff]
      %v423 = vld [vmem:[%s419 + $0x14] sm:$0xf]
      %v424 = vld [vmem:[%s419 + $0x18] sm:$0xff]
      %v425 = vld [vmem:[%s419 + $0x20] sm:$0xf]
      %v426 = vld [vmem:[%s419 + $0x24] sm:$0xff]
      %v427 = vld [vmem:[%s419 + $0x2c] sm:$0xf]
      %v428 = vld [vmem:[%s419 + $0x30] sm:$0xff]
      %v429 = vld [vmem:[%s419 + $0x38] sm:$0xf]
      %v430 = vld [vmem:[%s419 + $0x3c] sm:$0xff]
      %v431 = vld [vmem:[%s419 + $0x44] sm:$0xf]
      %v432 = vld [vmem:[%s419 + $0x48] sm:$0xff]
      %v433 = vld [vmem:[%s419 + $0x50] sm:$0xf]
      %v434 = vld [vmem:[%s419 + $0x54] sm:$0xff]
      %v435 = vld [vmem:[%s419 + $0x5c] sm:$0xf]
      %s436 = scalar_lea.vmem %s330, 192
      %v437 = vld [vmem:[%s436] sm:$0xf]
      %v438 = vld [vmem:[%s436 + $0x4] sm:$0xf]
      %v439 = vld [vmem:[%s436 + $0x8] sm:$0xf]
      %v440 = vld [vmem:[%s436 + $0xc] sm:$0xf]
      %v441 = vld [vmem:[%s436 + $0x10] sm:$0xf]
      %v442 = vld [vmem:[%s436 + $0x14] sm:$0xf]
      %v443 = vld [vmem:[%s436 + $0x18] sm:$0xf]
      %v444 = vld [vmem:[%s436 + $0x1c] sm:$0xf]
      %v445 = vld [vmem:[%s436 + $0x20] sm:$0xf]
      %v446 = vld [vmem:[%s436 + $0x24] sm:$0xf]
      %v447 = vld [vmem:[%s436 + $0x28] sm:$0xf]
      %v448 = vld [vmem:[%s436 + $0x2c] sm:$0xf]
      %v449 = vld [vmem:[%s436 + $0x30] sm:$0xf]
      %v450 = vld [vmem:[%s436 + $0x34] sm:$0xf]
      %v451 = vld [vmem:[%s436 + $0x38] sm:$0xf]
      %v452 = vld [vmem:[%s436 + $0x3c] sm:$0xf]
      %v453 = vld [vmem:[%s436 + $0x40] sm:$0xf]
      %v454 = vld [vmem:[%s436 + $0x44] sm:$0xf]
      %v455 = vld [vmem:[%s436 + $0x48] sm:$0xf]
      %v456 = vld [vmem:[%s436 + $0x4c] sm:$0xf]
      %v457 = vld [vmem:[%s436 + $0x50] sm:$0xf]
      %v458 = vld [vmem:[%s436 + $0x54] sm:$0xf]
      %v459 = vld [vmem:[%s436 + $0x58] sm:$0xf]
      %v460 = vld [vmem:[%s436 + $0x5c] sm:$0xf]
      %v461 = vld [vmem:[%s436 + $0x60] sm:$0xf]
      %v462 = vld [vmem:[%s436 + $0x64] sm:$0xf]
      %v463 = vld [vmem:[%s436 + $0x68] sm:$0xf]
      %v464 = vld [vmem:[%s436 + $0x6c] sm:$0xf]
      %v465 = vld [vmem:[%s436 + $0x70] sm:$0xf]
      %v466 = vld [vmem:[%s436 + $0x74] sm:$0xf]
      %v467 = vld [vmem:[%s436 + $0x78] sm:$0xf]
      %v468 = vld [vmem:[%s436 + $0x7c] sm:$0xf]
      %v469 = vld [vmem:[%s436 + $0x80] sm:$0xf]
      %v470 = vld [vmem:[%s436 + $0x84] sm:$0xf]
      %v471 = vld [vmem:[%s436 + $0x88] sm:$0xf]
      %v472 = vld [vmem:[%s436 + $0x8c] sm:$0xf]
      %v473 = vld [vmem:[%s436 + $0x90] sm:$0xf]
      %v474 = vld [vmem:[%s436 + $0x94] sm:$0xf]
      %v475 = vld [vmem:[%s436 + $0x98] sm:$0xf]
      %v476 = vld [vmem:[%s436 + $0x9c] sm:$0xf]
      %v477 = vld [vmem:[%s436 + $0xa0] sm:$0xf]
      %v478 = vld [vmem:[%s436 + $0xa4] sm:$0xf]
      %v479 = vld [vmem:[%s436 + $0xa8] sm:$0xf]
      %v480 = vld [vmem:[%s436 + $0xac] sm:$0xf]
      %v481 = vld [vmem:[%s436 + $0xb0] sm:$0xf]
      %v482 = vld [vmem:[%s436 + $0xb4] sm:$0xf]
      %v483 = vld [vmem:[%s436 + $0xb8] sm:$0xf]
      %v484 = vld [vmem:[%s436 + $0xbc] sm:$0xf]
      %v501 = vunpack.c.l.b16 %v420
      %v502 = vunpack.c.h.b16 %v420
      %v503 = vunpack.c.l.b16 %v421
      %v504 = vunpack.c.l.b16 %v422
      %v505 = vunpack.c.h.b16 %v422
      %v506 = vunpack.c.l.b16 %v423
      %v507 = vunpack.c.l.b16 %v424
      %v508 = vunpack.c.h.b16 %v424
      %v509 = vunpack.c.l.b16 %v425
      %v510 = vunpack.c.l.b16 %v426
      %v511 = vunpack.c.h.b16 %v426
      %v512 = vunpack.c.l.b16 %v427
      %v513 = vunpack.c.l.b16 %v428
      %v514 = vunpack.c.h.b16 %v428
      %v515 = vunpack.c.l.b16 %v429
      %v516 = vunpack.c.l.b16 %v430
      %v517 = vunpack.c.h.b16 %v430
      %v518 = vunpack.c.l.b16 %v431
      %v519 = vunpack.c.l.b16 %v432
      %v520 = vunpack.c.h.b16 %v432
      %v521 = vunpack.c.l.b16 %v433
      %v522 = vunpack.c.l.b16 %v434
      %v523 = vunpack.c.h.b16 %v434
      %v524 = vunpack.c.l.b16 %v435
      %v525 = vpack.c.b16 %v504, %v501
      %v526 = vpack.c.b16 %v505, %v502
      %v527 = vpack.c.b16 %v506, %v503
      %v528 = vpack.c.b16 %v510, %v507
      %v529 = vpack.c.b16 %v511, %v508
      %v530 = vpack.c.b16 %v512, %v509
      %v531 = vpack.c.b16 %v516, %v513
      %v532 = vpack.c.b16 %v517, %v514
      %v533 = vpack.c.b16 %v518, %v515
      %v534 = vpack.c.b16 %v522, %v519
      %v535 = vpack.c.b16 %v523, %v520
      %v536 = vpack.c.b16 %v524, %v521
      %v597 = vunpack.c.l.b16 %v437
      %v598 = vunpack.c.l.b16 %v438
      %v599 = vunpack.c.l.b16 %v439
      %v600 = vunpack.c.l.b16 %v440
      %v601 = vunpack.c.l.b16 %v441
      %v602 = vunpack.c.l.b16 %v442
      %v603 = vunpack.c.l.b16 %v443
      %v604 = vunpack.c.l.b16 %v444
      %v605 = vunpack.c.l.b16 %v445
      %v606 = vunpack.c.l.b16 %v446
      %v607 = vunpack.c.l.b16 %v447
      %v608 = vunpack.c.l.b16 %v448
      %v609 = vunpack.c.l.b16 %v449
      %v610 = vunpack.c.l.b16 %v450
      %v611 = vunpack.c.l.b16 %v451
      %v612 = vunpack.c.l.b16 %v452
      %v613 = vunpack.c.l.b16 %v453
      %v614 = vunpack.c.l.b16 %v454
      %v615 = vunpack.c.l.b16 %v455
      %v616 = vunpack.c.l.b16 %v456
      %v617 = vunpack.c.l.b16 %v457
      %v618 = vunpack.c.l.b16 %v458
      %v619 = vunpack.c.l.b16 %v459
      %v620 = vunpack.c.l.b16 %v460
      %v621 = vunpack.c.l.b16 %v461
      %v622 = vunpack.c.l.b16 %v462
      %v623 = vunpack.c.l.b16 %v463
      %v624 = vunpack.c.l.b16 %v464
      %v625 = vunpack.c.l.b16 %v465
      %v626 = vunpack.c.l.b16 %v466
      %v627 = vunpack.c.l.b16 %v467
      %v628 = vunpack.c.l.b16 %v468
      %v629 = vunpack.c.l.b16 %v469
      %v630 = vunpack.c.l.b16 %v470
      %v631 = vunpack.c.l.b16 %v471
      %v632 = vunpack.c.l.b16 %v472
      %v633 = vunpack.c.l.b16 %v473
      %v634 = vunpack.c.l.b16 %v474
      %v635 = vunpack.c.l.b16 %v475
      %v636 = vunpack.c.l.b16 %v476
      %v637 = vunpack.c.l.b16 %v477
      %v638 = vunpack.c.l.b16 %v478
      %v639 = vunpack.c.l.b16 %v479
      %v640 = vunpack.c.l.b16 %v480
      %v641 = vunpack.c.l.b16 %v481
      %v642 = vunpack.c.l.b16 %v482
      %v643 = vunpack.c.l.b16 %v483
      %v644 = vunpack.c.l.b16 %v484
      %v645 = vpack.c.b16 %v598, %v597
      %v646 = vpack.c.b16 %v600, %v599
      %v647 = vpack.c.b16 %v602, %v601
      %v648 = vpack.c.b16 %v604, %v603
      %v649 = vpack.c.b16 %v606, %v605
      %v650 = vpack.c.b16 %v608, %v607
      %v651 = vpack.c.b16 %v610, %v609
      %v652 = vpack.c.b16 %v612, %v611
      %v653 = vpack.c.b16 %v614, %v613
      %v654 = vpack.c.b16 %v616, %v615
      %v655 = vpack.c.b16 %v618, %v617
      %v656 = vpack.c.b16 %v620, %v619
      %v657 = vpack.c.b16 %v622, %v621
      %v658 = vpack.c.b16 %v624, %v623
      %v659 = vpack.c.b16 %v626, %v625
      %v660 = vpack.c.b16 %v628, %v627
      %v661 = vpack.c.b16 %v630, %v629
      %v662 = vpack.c.b16 %v632, %v631
      %v663 = vpack.c.b16 %v634, %v633
      %v664 = vpack.c.b16 %v636, %v635
      %v665 = vpack.c.b16 %v638, %v637
      %v666 = vpack.c.b16 %v640, %v639
      %v667 = vpack.c.b16 %v642, %v641
      %v668 = vpack.c.b16 %v644, %v643
      %693 = vmatprep.subr.bf16.mxu0 0
      %694 = vmatpush1.bf16.msra.mxu0 %v645
      %695 = vmatprep.subr.bf16.mxu0 0
      %696 = vmatpush1.bf16.msra.mxu0 %v646
      %697 = vmatprep.subr.bf16.mxu0 0
      %698 = vmatpush1.bf16.msra.mxu0 %v647
      %699 = vmatprep.subr.bf16.mxu0 0
      %700 = vmatpush1.bf16.msra.mxu0 %v648
      %701 = vmatprep.subr.bf16.mxu0 0
      %702 = vmatpush1.bf16.msra.mxu0 %v649
      %703 = vmatprep.subr.bf16.mxu0 0
      %704 = vmatpush1.bf16.msra.mxu0 %v650
      %705 = vmatprep.subr.bf16.mxu0 0
      %706 = vmatpush1.bf16.msra.mxu0 %v651
      %707 = vmatprep.subr.bf16.mxu0 0
      %708 = vmatpush1.bf16.msra.mxu0 %v652
      %709 = vmatprep.subr.bf16.mxu0 0
      %710 = vmatpush1.bf16.msra.mxu0 %v653
      %711 = vmatprep.subr.bf16.mxu0 0
      %712 = vmatpush1.bf16.msra.mxu0 %v654
      %713 = vmatprep.subr.bf16.mxu0 0
      %714 = vmatpush1.bf16.msra.mxu0 %v655
      %715 = vmatprep.subr.bf16.mxu0 0
      %716 = vmatpush1.bf16.msra.mxu0 %v656
      %717 = vmatprep.subr.bf16.mxu0 0
      %718 = vmatpush1.bf16.msra.mxu0 %v657
      %719 = vmatprep.subr.bf16.mxu0 0
      %720 = vmatpush1.bf16.msra.mxu0 %v658
      %721 = vmatprep.subr.bf16.mxu0 0
      %722 = vmatpush1.bf16.msra.mxu0 %v659
      %723 = vmatprep.subr.bf16.mxu0 0
      %724 = vmatpush1.bf16.msra.mxu0 %v660
      %725 = vmatprep.mubr.bf16.mxu0 %v526
      %726 = vmatmul.mubr.bf16.gmra.mrb[0].mxu0 %v525
      %v727 = vpop.f32.mrb[0].mxu0
      %v728 = vadd.f32 0.0, %v727
      %v729 = vpop.f32.mrb[0].mxu0
      %v730 = vpop.f32.mrb[0].mxu0
      %v731 = vadd.f32 0.0, %v730
      %v732 = vpop.f32.mrb[0].mxu0
      %733 = vmatprep.mubr.bf16.mxu0 %v529
      %734 = vmatmul.mubr.bf16.gmra.mrb[0].mxu0 %v528
      %v735 = vpop.f32.mrb[0].mxu0
      %v736 = vadd.f32 0.0, %v735
      %v737 = vpop.f32.mrb[0].mxu0
      %v738 = vpop.f32.mrb[0].mxu0
      %v739 = vadd.f32 0.0, %v738
      %v740 = vpop.f32.mrb[0].mxu0
      %741 = vmatprep.mubr.bf16.mxu0 %v532
      %742 = vmatmul.mubr.bf16.gmra.mrb[0].mxu0 %v531
      %v743 = vpop.f32.mrb[0].mxu0
      %v744 = vadd.f32 0.0, %v743
      %v745 = vpop.f32.mrb[0].mxu0
      %v746 = vpop.f32.mrb[0].mxu0
      %v747 = vadd.f32 0.0, %v746
      %v748 = vpop.f32.mrb[0].mxu0
      %749 = vmatprep.mubr.bf16.mxu0 %v535
      %750 = vmatmul.mubr.bf16.gmra.mrb[0].mxu0 %v534
      %v751 = vpop.f32.mrb[0].mxu0
      %v752 = vadd.f32 0.0, %v751
      %v753 = vpop.f32.mrb[0].mxu0
      %v754 = vpop.f32.mrb[0].mxu0
      %v755 = vadd.f32 0.0, %v754
      %v756 = vpop.f32.mrb[0].mxu0
      %757 = vdwg.mxu0
      %758 = vmatprep.subr.bf16.mxu0 0
      %759 = vmatpush1.bf16.msra.mxu0 %v661
      %760 = vmatprep.subr.bf16.mxu0 0
      %761 = vmatpush1.bf16.msra.mxu0 %v662
      %762 = vmatprep.subr.bf16.mxu0 0
      %763 = vmatpush1.bf16.msra.mxu0 %v663
      %764 = vmatprep.subr.bf16.mxu0 0
      %765 = vmatpush1.bf16.msra.mxu0 %v664
      %766 = vmatprep.subr.bf16.mxu0 0
      %767 = vmatpush1.bf16.msra.mxu0 %v665
      %768 = vmatprep.subr.bf16.mxu0 0
      %769 = vmatpush1.bf16.msra.mxu0 %v666
      %770 = vmatprep.subr.bf16.mxu0 0
      %771 = vmatpush1.bf16.msra.mxu0 %v667
      %772 = vmatprep.subr.bf16.mxu0 0
      %773 = vmatpush1.bf16.msra.mxu0 %v668
      %774 = vmatprep.subr.bf16.mxu0 0
      %775 = vmatpush1.bf16.msra.mxu0 0
      %776 = vmatprep.subr.bf16.mxu0 0
      %777 = vmatpush1.bf16.msra.mxu0 0
      %778 = vmatprep.subr.bf16.mxu0 0
      %779 = vmatpush1.bf16.msra.mxu0 0
      %780 = vmatprep.subr.bf16.mxu0 0
      %781 = vmatpush1.bf16.msra.mxu0 0
      %782 = vmatprep.subr.bf16.mxu0 0
      %783 = vmatpush1.bf16.msra.mxu0 0
      %784 = vmatprep.subr.bf16.mxu0 0
      %785 = vmatpush1.bf16.msra.mxu0 0
      %786 = vmatprep.subr.bf16.mxu0 0
      %787 = vmatpush1.bf16.msra.mxu0 0
      %788 = vmatprep.subr.bf16.mxu0 0
      %789 = vmatpush1.bf16.msra.mxu0 0
      %790 = vmatprep.mubr.bf16.mxu0 0
      %791 = vmatmul.mubr.bf16.gmra.mrb[0].mxu0 %v527
      %v792 = vpop.f32.mrb[0].mxu0
      %v793 = vadd.f32 %v728, %v792
      %v794 = vpop.f32.mrb[0].mxu0
      %v795 = vpop.f32.mrb[0].mxu0
      %v796 = vadd.f32 %v731, %v795
      %v797 = vpop.f32.mrb[0].mxu0
      %798 = vmatprep.mubr.bf16.mxu0 0
      %799 = vmatmul.mubr.bf16.gmra.mrb[0].mxu0 %v530
      %v800 = vpop.f32.mrb[0].mxu0
      %v801 = vadd.f32 %v736, %v800
      %v802 = vpop.f32.mrb[0].mxu0
      %v803 = vpop.f32.mrb[0].mxu0
      %v804 = vadd.f32 %v739, %v803
      %v805 = vpop.f32.mrb[0].mxu0
      %806 = vmatprep.mubr.bf16.mxu0 0
      %807 = vmatmul.mubr.bf16.gmra.mrb[0].mxu0 %v533
      %v808 = vpop.f32.mrb[0].mxu0
      %v809 = vadd.f32 %v744, %v808
      %v810 = vpop.f32.mrb[0].mxu0
      %v811 = vpop.f32.mrb[0].mxu0
      %v812 = vadd.f32 %v747, %v811
      %v813 = vpop.f32.mrb[0].mxu0
      %814 = vmatprep.mubr.bf16.mxu0 0
      %815 = vmatmul.mubr.bf16.gmra.mrb[0].mxu0 %v536
      %v816 = vpop.f32.mrb[0].mxu0
      %v817 = vadd.f32 %v752, %v816
      %v818 = vpop.f32.mrb[0].mxu0
      %v819 = vpop.f32.mrb[0].mxu0
      %v820 = vadd.f32 %v755, %v819
      %v821 = vpop.f32.mrb[0].mxu0
      %822 = vdwg.mxu0
      %v839 = vunpack.c.l.b16 %v355
      %v840 = vunpack.c.h.b16 %v355
      %v841 = vunpack.c.l.b16 %v356
      %v842 = vunpack.c.l.b16 %v357
      %v843 = vunpack.c.h.b16 %v357
      %v844 = vunpack.c.l.b16 %v358
      %v845 = vunpack.c.l.b16 %v359
      %v846 = vunpack.c.h.b16 %v359
      %v847 = vunpack.c.l.b16 %v360
      %v848 = vunpack.c.l.b16 %v361
      %v849 = vunpack.c.h.b16 %v361
      %v850 = vunpack.c.l.b16 %v362
      %v851 = vunpack.c.l.b16 %v363
      %v852 = vunpack.c.h.b16 %v363
      %v853 = vunpack.c.l.b16 %v364
      %v854 = vunpack.c.l.b16 %v365
      %v855 = vunpack.c.h.b16 %v365
      %v856 = vunpack.c.l.b16 %v366
      %v857 = vunpack.c.l.b16 %v367
      %v858 = vunpack.c.h.b16 %v367
      %v859 = vunpack.c.l.b16 %v368
      %v860 = vunpack.c.l.b16 %v369
      %v861 = vunpack.c.h.b16 %v369
      %v862 = vunpack.c.l.b16 %v370
      %v863 = vpack.c.b16 %v842, %v839
      %v864 = vpack.c.b16 %v843, %v840
      %v865 = vpack.c.b16 %v844, %v841
      %v866 = vpack.c.b16 %v848, %v845
      %v867 = vpack.c.b16 %v849, %v846
      %v868 = vpack.c.b16 %v850, %v847
      %v869 = vpack.c.b16 %v854, %v851
      %v870 = vpack.c.b16 %v855, %v852
      %v871 = vpack.c.b16 %v856, %v853
      %v872 = vpack.c.b16 %v860, %v857
      %v873 = vpack.c.b16 %v861, %v858
      %v874 = vpack.c.b16 %v862, %v859
      %v935 = vunpack.c.l.b16 %v371
      %v936 = vunpack.c.l.b16 %v372
      %v937 = vunpack.c.l.b16 %v373
      %v938 = vunpack.c.l.b16 %v374
      %v939 = vunpack.c.l.b16 %v375
      %v940 = vunpack.c.l.b16 %v376
      %v941 = vunpack.c.l.b16 %v377
      %v942 = vunpack.c.l.b16 %v378
      %v943 = vunpack.c.l.b16 %v379
      %v944 = vunpack.c.l.b16 %v380
      %v945 = vunpack.c.l.b16 %v381
      %v946 = vunpack.c.l.b16 %v382
      %v947 = vunpack.c.l.b16 %v383
      %v948 = vunpack.c.l.b16 %v384
      %v949 = vunpack.c.l.b16 %v385
      %v950 = vunpack.c.l.b16 %v386
      %v951 = vunpack.c.l.b16 %v387
      %v952 = vunpack.c.l.b16 %v388
      %v953 = vunpack.c.l.b16 %v389
      %v954 = vunpack.c.l.b16 %v390
      %v955 = vunpack.c.l.b16 %v391
      %v956 = vunpack.c.l.b16 %v392
      %v957 = vunpack.c.l.b16 %v393
      %v958 = vunpack.c.l.b16 %v394
      %v959 = vunpack.c.l.b16 %v395
      %v960 = vunpack.c.l.b16 %v396
      %v961 = vunpack.c.l.b16 %v397
      %v962 = vunpack.c.l.b16 %v398
      %v963 = vunpack.c.l.b16 %v399
      %v964 = vunpack.c.l.b16 %v400
      %v965 = vunpack.c.l.b16 %v401
      %v966 = vunpack.c.l.b16 %v402
      %v967 = vunpack.c.l.b16 %v403
      %v968 = vunpack.c.l.b16 %v404
      %v969 = vunpack.c.l.b16 %v405
      %v970 = vunpack.c.l.b16 %v406
      %v971 = vunpack.c.l.b16 %v407
      %v972 = vunpack.c.l.b16 %v408
      %v973 = vunpack.c.l.b16 %v409
      %v974 = vunpack.c.l.b16 %v410
      %v975 = vunpack.c.l.b16 %v411
      %v976 = vunpack.c.l.b16 %v412
      %v977 = vunpack.c.l.b16 %v413
      %v978 = vunpack.c.l.b16 %v414
      %v979 = vunpack.c.l.b16 %v415
      %v980 = vunpack.c.l.b16 %v416
      %v981 = vunpack.c.l.b16 %v417
      %v982 = vunpack.c.l.b16 %v418
      %v983 = vpack.c.b16 %v936, %v935
      %v984 = vpack.c.b16 %v938, %v937
      %v985 = vpack.c.b16 %v940, %v939
      %v986 = vpack.c.b16 %v942, %v941
      %v987 = vpack.c.b16 %v944, %v943
      %v988 = vpack.c.b16 %v946, %v945
      %v989 = vpack.c.b16 %v948, %v947
      %v990 = vpack.c.b16 %v950, %v949
      %v991 = vpack.c.b16 %v952, %v951
      %v992 = vpack.c.b16 %v954, %v953
      %v993 = vpack.c.b16 %v956, %v955
      %v994 = vpack.c.b16 %v958, %v957
      %v995 = vpack.c.b16 %v960, %v959
      %v996 = vpack.c.b16 %v962, %v961
      %v997 = vpack.c.b16 %v964, %v963
      %v998 = vpack.c.b16 %v966, %v965
      %v999 = vpack.c.b16 %v968, %v967
      %v1000 = vpack.c.b16 %v970, %v969
      %v1001 = vpack.c.b16 %v972, %v971
      %v1002 = vpack.c.b16 %v974, %v973
      %v1003 = vpack.c.b16 %v976, %v975
      %v1004 = vpack.c.b16 %v978, %v977
      %v1005 = vpack.c.b16 %v980, %v979
      %v1006 = vpack.c.b16 %v982, %v981
      %1031 = vmatprep.subr.bf16.mxu0 0
      %1032 = vmatpush1.bf16.msra.mxu0 %v983
      %1033 = vmatprep.subr.bf16.mxu0 0
      %1034 = vmatpush1.bf16.msra.mxu0 %v984
      %1035 = vmatprep.subr.bf16.mxu0 0
      %1036 = vmatpush1.bf16.msra.mxu0 %v985
      %1037 = vmatprep.subr.bf16.mxu0 0
      %1038 = vmatpush1.bf16.msra.mxu0 %v986
      %1039 = vmatprep.subr.bf16.mxu0 0
      %1040 = vmatpush1.bf16.msra.mxu0 %v987
      %1041 = vmatprep.subr.bf16.mxu0 0
      %1042 = vmatpush1.bf16.msra.mxu0 %v988
      %1043 = vmatprep.subr.bf16.mxu0 0
      %1044 = vmatpush1.bf16.msra.mxu0 %v989
      %1045 = vmatprep.subr.bf16.mxu0 0
      %1046 = vmatpush1.bf16.msra.mxu0 %v990
      %1047 = vmatprep.subr.bf16.mxu0 0
      %1048 = vmatpush1.bf16.msra.mxu0 %v991
      %1049 = vmatprep.subr.bf16.mxu0 0
      %1050 = vmatpush1.bf16.msra.mxu0 %v992
      %1051 = vmatprep.subr.bf16.mxu0 0
      %1052 = vmatpush1.bf16.msra.mxu0 %v993
      %1053 = vmatprep.subr.bf16.mxu0 0
      %1054 = vmatpush1.bf16.msra.mxu0 %v994
      %1055 = vmatprep.subr.bf16.mxu0 0
      %1056 = vmatpush1.bf16.msra.mxu0 %v995
      %1057 = vmatprep.subr.bf16.mxu0 0
      %1058 = vmatpush1.bf16.msra.mxu0 %v996
      %1059 = vmatprep.subr.bf16.mxu0 0
      %1060 = vmatpush1.bf16.msra.mxu0 %v997
      %1061 = vmatprep.subr.bf16.mxu0 0
      %1062 = vmatpush1.bf16.msra.mxu0 %v998
      %1063 = vmatprep.mubr.bf16.mxu0 %v864
      %1064 = vmatmul.mubr.bf16.gmra.mrb[0].mxu0 %v863
      %v1065 = vpop.f32.mrb[0].mxu0
      %v1066 = vadd.f32 %v793, %v1065
      %v1067 = vpop.f32.mrb[0].mxu0
      %v1068 = vpop.f32.mrb[0].mxu0
      %v1069 = vadd.f32 %v796, %v1068
      %v1070 = vpop.f32.mrb[0].mxu0
      %1071 = vmatprep.mubr.bf16.mxu0 %v867
      %1072 = vmatmul.mubr.bf16.gmra.mrb[0].mxu0 %v866
      %v1073 = vpop.f32.mrb[0].mxu0
      %v1074 = vadd.f32 %v801, %v1073
      %v1075 = vpop.f32.mrb[0].mxu0
      %v1076 = vpop.f32.mrb[0].mxu0
      %v1077 = vadd.f32 %v804, %v1076
      %v1078 = vpop.f32.mrb[0].mxu0
      %1079 = vmatprep.mubr.bf16.mxu0 %v870
      %1080 = vmatmul.mubr.bf16.gmra.mrb[0].mxu0 %v869
      %v1081 = vpop.f32.mrb[0].mxu0
      %v1082 = vadd.f32 %v809, %v1081
      %v1083 = vpop.f32.mrb[0].mxu0
      %v1084 = vpop.f32.mrb[0].mxu0
      %v1085 = vadd.f32 %v812, %v1084
      %v1086 = vpop.f32.mrb[0].mxu0
      %1087 = vmatprep.mubr.bf16.mxu0 %v873
      %1088 = vmatmul.mubr.bf16.gmra.mrb[0].mxu0 %v872
      %v1089 = vpop.f32.mrb[0].mxu0
      %v1090 = vadd.f32 %v817, %v1089
      %v1091 = vpop.f32.mrb[0].mxu0
      %v1092 = vpop.f32.mrb[0].mxu0
      %v1093 = vadd.f32 %v820, %v1092
      %v1094 = vpop.f32.mrb[0].mxu0
      %1095 = vdwg.mxu0
      %1096 = vmatprep.subr.bf16.mxu0 0
      %1097 = vmatpush1.bf16.msra.mxu0 %v999
      %1098 = vmatprep.subr.bf16.mxu0 0
      %1099 = vmatpush1.bf16.msra.mxu0 %v1000
      %1100 = vmatprep.subr.bf16.mxu0 0
      %1101 = vmatpush1.bf16.msra.mxu0 %v1001
      %1102 = vmatprep.subr.bf16.mxu0 0
      %1103 = vmatpush1.bf16.msra.mxu0 %v1002
      %1104 = vmatprep.subr.bf16.mxu0 0
      %1105 = vmatpush1.bf16.msra.mxu0 %v1003
      %1106 = vmatprep.subr.bf16.mxu0 0
      %1107 = vmatpush1.bf16.msra.mxu0 %v1004
      %1108 = vmatprep.subr.bf16.mxu0 0
      %1109 = vmatpush1.bf16.msra.mxu0 %v1005
      %1110 = vmatprep.subr.bf16.mxu0 0
      %1111 = vmatpush1.bf16.msra.mxu0 %v1006
      %1112 = vmatprep.subr.bf16.mxu0 0
      %1113 = vmatpush1.bf16.msra.mxu0 0
      %1114 = vmatprep.subr.bf16.mxu0 0
      %1115 = vmatpush1.bf16.msra.mxu0 0
      %1116 = vmatprep.subr.bf16.mxu0 0
      %1117 = vmatpush1.bf16.msra.mxu0 0
      %1118 = vmatprep.subr.bf16.mxu0 0
      %1119 = vmatpush1.bf16.msra.mxu0 0
      %1120 = vmatprep.subr.bf16.mxu0 0
      %1121 = vmatpush1.bf16.msra.mxu0 0
      %1122 = vmatprep.subr.bf16.mxu0 0
      %1123 = vmatpush1.bf16.msra.mxu0 0
      %1124 = vmatprep.subr.bf16.mxu0 0
      %1125 = vmatpush1.bf16.msra.mxu0 0
      %1126 = vmatprep.subr.bf16.mxu0 0
      %1127 = vmatpush1.bf16.msra.mxu0 0
      %1128 = vmatprep.mubr.bf16.mxu0 0
      %1129 = vmatmul.mubr.bf16.gmra.mrb[0].mxu0 %v865
      %v1130 = vpop.f32.mrb[0].mxu0
      %v1131 = vadd.f32 %v1066, %v1130
      %v1132 = vpop.f32.mrb[0].mxu0
      %v1133 = vpop.f32.mrb[0].mxu0
      %v1134 = vadd.f32 %v1069, %v1133
      %v1135 = vpop.f32.mrb[0].mxu0
      %1136 = vmatprep.mubr.bf16.mxu0 0
      %1137 = vmatmul.mubr.bf16.gmra.mrb[0].mxu0 %v868
      %v1138 = vpop.f32.mrb[0].mxu0
      %v1139 = vadd.f32 %v1074, %v1138
      %v1140 = vpop.f32.mrb[0].mxu0
      %v1141 = vpop.f32.mrb[0].mxu0
      %v1142 = vadd.f32 %v1077, %v1141
      %v1143 = vpop.f32.mrb[0].mxu0
      %1144 = vmatprep.mubr.bf16.mxu0 0
      %1145 = vmatmul.mubr.bf16.gmra.mrb[0].mxu0 %v871
      %v1146 = vpop.f32.mrb[0].mxu0
      %v1147 = vadd.f32 %v1082, %v1146
      %v1148 = vpop.f32.mrb[0].mxu0
      %v1149 = vpop.f32.mrb[0].mxu0
      %v1150 = vadd.f32 %v1085, %v1149
      %v1151 = vpop.f32.mrb[0].mxu0
      %1152 = vmatprep.mubr.bf16.mxu0 0
      %1153 = vmatmul.mubr.bf16.gmra.mrb[0].mxu0 %v874
      %v1154 = vpop.f32.mrb[0].mxu0
      %v1155 = vadd.f32 %v1090, %v1154
      %v1156 = vpop.f32.mrb[0].mxu0
      %v1157 = vpop.f32.mrb[0].mxu0
      %v1158 = vadd.f32 %v1093, %v1157
      %v1159 = vpop.f32.mrb[0].mxu0
      %1160 = vdwg.mxu0
      %s1161 = scalar_lea.vmem %s326, 24
      %v1162 = vld [vmem:[%s1161] sm:$0xff]
      %v1163 = vld [vmem:[%s1161 + $0x8] sm:$0xf]
      %v1164 = vld [vmem:[%s1161 + $0xc] sm:$0xff]
      %v1165 = vld [vmem:[%s1161 + $0x14] sm:$0xf]
      %v1166 = vld [vmem:[%s1161 + $0x18] sm:$0xff]
      %v1167 = vld [vmem:[%s1161 + $0x20] sm:$0xf]
      %v1168 = vld [vmem:[%s1161 + $0x24] sm:$0xff]
      %v1169 = vld [vmem:[%s1161 + $0x2c] sm:$0xf]
      %v1170 = vld [vmem:[%s1161 + $0x30] sm:$0xff]
      %v1171 = vld [vmem:[%s1161 + $0x38] sm:$0xf]
      %v1172 = vld [vmem:[%s1161 + $0x3c] sm:$0xff]
      %v1173 = vld [vmem:[%s1161 + $0x44] sm:$0xf]
      %v1174 = vld [vmem:[%s1161 + $0x48] sm:$0xff]
      %v1175 = vld [vmem:[%s1161 + $0x50] sm:$0xf]
      %v1176 = vld [vmem:[%s1161 + $0x54] sm:$0xff]
      %v1177 = vld [vmem:[%s1161 + $0x5c] sm:$0xf]
      %s1178 = scalar_lea.vmem %s330, 384
      %v1179 = vld [vmem:[%s1178] sm:$0xf]
      %v1180 = vld [vmem:[%s1178 + $0x4] sm:$0xf]
      %v1181 = vld [vmem:[%s1178 + $0x8] sm:$0xf]
      %v1182 = vld [vmem:[%s1178 + $0xc] sm:$0xf]
      %v1183 = vld [vmem:[%s1178 + $0x10] sm:$0xf]
      %v1184 = vld [vmem:[%s1178 + $0x14] sm:$0xf]
      %v1185 = vld [vmem:[%s1178 + $0x18] sm:$0xf]
      %v1186 = vld [vmem:[%s1178 + $0x1c] sm:$0xf]
      %v1187 = vld [vmem:[%s1178 + $0x20] sm:$0xf]
      %v1188 = vld [vmem:[%s1178 + $0x24] sm:$0xf]
      %v1189 = vld [vmem:[%s1178 + $0x28] sm:$0xf]
      %v1190 = vld [vmem:[%s1178 + $0x2c] sm:$0xf]
      %v1191 = vld [vmem:[%s1178 + $0x30] sm:$0xf]
      %v1192 = vld [vmem:[%s1178 + $0x34] sm:$0xf]
      %v1193 = vld [vmem:[%s1178 + $0x38] sm:$0xf]
      %v1194 = vld [vmem:[%s1178 + $0x3c] sm:$0xf]
      %v1195 = vld [vmem:[%s1178 + $0x40] sm:$0xf]
      %v1196 = vld [vmem:[%s1178 + $0x44] sm:$0xf]
      %v1197 = vld [vmem:[%s1178 + $0x48] sm:$0xf]
      %v1198 = vld [vmem:[%s1178 + $0x4c] sm:$0xf]
      %v1199 = vld [vmem:[%s1178 + $0x50] sm:$0xf]
      %v1200 = vld [vmem:[%s1178 + $0x54] sm:$0xf]
      %v1201 = vld [vmem:[%s1178 + $0x58] sm:$0xf]
      %v1202 = vld [vmem:[%s1178 + $0x5c] sm:$0xf]
      %v1203 = vld [vmem:[%s1178 + $0x60] sm:$0xf]
      %v1204 = vld [vmem:[%s1178 + $0x64] sm:$0xf]
      %v1205 = vld [vmem:[%s1178 + $0x68] sm:$0xf]
      %v1206 = vld [vmem:[%s1178 + $0x6c] sm:$0xf]
      %v1207 = vld [vmem:[%s1178 + $0x70] sm:$0xf]
      %v1208 = vld [vmem:[%s1178 + $0x74] sm:$0xf]
      %v1209 = vld [vmem:[%s1178 + $0x78] sm:$0xf]
      %v1210 = vld [vmem:[%s1178 + $0x7c] sm:$0xf]
      %v1211 = vld [vmem:[%s1178 + $0x80] sm:$0xf]
      %v1212 = vld [vmem:[%s1178 + $0x84] sm:$0xf]
      %v1213 = vld [vmem:[%s1178 + $0x88] sm:$0xf]
      %v1214 = vld [vmem:[%s1178 + $0x8c] sm:$0xf]
      %v1215 = vld [vmem:[%s1178 + $0x90] sm:$0xf]
      %v1216 = vld [vmem:[%s1178 + $0x94] sm:$0xf]
      %v1217 = vld [vmem:[%s1178 + $0x98] sm:$0xf]
      %v1218 = vld [vmem:[%s1178 + $0x9c] sm:$0xf]
      %v1219 = vld [vmem:[%s1178 + $0xa0] sm:$0xf]
      %v1220 = vld [vmem:[%s1178 + $0xa4] sm:$0xf]
      %v1221 = vld [vmem:[%s1178 + $0xa8] sm:$0xf]
      %v1222 = vld [vmem:[%s1178 + $0xac] sm:$0xf]
      %v1223 = vld [vmem:[%s1178 + $0xb0] sm:$0xf]
      %v1224 = vld [vmem:[%s1178 + $0xb4] sm:$0xf]
      %v1225 = vld [vmem:[%s1178 + $0xb8] sm:$0xf]
      %v1226 = vld [vmem:[%s1178 + $0xbc] sm:$0xf]
      %v1243 = vunpack.c.l.b16 %v1162
      %v1244 = vunpack.c.h.b16 %v1162
      %v1245 = vunpack.c.l.b16 %v1163
      %v1246 = vunpack.c.l.b16 %v1164
      %v1247 = vunpack.c.h.b16 %v1164
      %v1248 = vunpack.c.l.b16 %v1165
      %v1249 = vunpack.c.l.b16 %v1166
      %v1250 = vunpack.c.h.b16 %v1166
      %v1251 = vunpack.c.l.b16 %v1167
      %v1252 = vunpack.c.l.b16 %v1168
      %v1253 = vunpack.c.h.b16 %v1168
      %v1254 = vunpack.c.l.b16 %v1169
      %v1255 = vunpack.c.l.b16 %v1170
      %v1256 = vunpack.c.h.b16 %v1170
      %v1257 = vunpack.c.l.b16 %v1171
      %v1258 = vunpack.c.l.b16 %v1172
      %v1259 = vunpack.c.h.b16 %v1172
      %v1260 = vunpack.c.l.b16 %v1173
      %v1261 = vunpack.c.l.b16 %v1174
      %v1262 = vunpack.c.h.b16 %v1174
      %v1263 = vunpack.c.l.b16 %v1175
      %v1264 = vunpack.c.l.b16 %v1176
      %v1265 = vunpack.c.h.b16 %v1176
      %v1266 = vunpack.c.l.b16 %v1177
      %v1267 = vpack.c.b16 %v1246, %v1243
      %v1268 = vpack.c.b16 %v1247, %v1244
      %v1269 = vpack.c.b16 %v1248, %v1245
      %v1270 = vpack.c.b16 %v1252, %v1249
      %v1271 = vpack.c.b16 %v1253, %v1250
      %v1272 = vpack.c.b16 %v1254, %v1251
      %v1273 = vpack.c.b16 %v1258, %v1255
      %v1274 = vpack.c.b16 %v1259, %v1256
      %v1275 = vpack.c.b16 %v1260, %v1257
      %v1276 = vpack.c.b16 %v1264, %v1261
      %v1277 = vpack.c.b16 %v1265, %v1262
      %v1278 = vpack.c.b16 %v1266, %v1263
      %v1339 = vunpack.c.l.b16 %v1179
      %v1340 = vunpack.c.l.b16 %v1180
      %v1341 = vunpack.c.l.b16 %v1181
      %v1342 = vunpack.c.l.b16 %v1182
      %v1343 = vunpack.c.l.b16 %v1183
      %v1344 = vunpack.c.l.b16 %v1184
      %v1345 = vunpack.c.l.b16 %v1185
      %v1346 = vunpack.c.l.b16 %v1186
      %v1347 = vunpack.c.l.b16 %v1187
      %v1348 = vunpack.c.l.b16 %v1188
      %v1349 = vunpack.c.l.b16 %v1189
      %v1350 = vunpack.c.l.b16 %v1190
      %v1351 = vunpack.c.l.b16 %v1191
      %v1352 = vunpack.c.l.b16 %v1192
      %v1353 = vunpack.c.l.b16 %v1193
      %v1354 = vunpack.c.l.b16 %v1194
      %v1355 = vunpack.c.l.b16 %v1195
      %v1356 = vunpack.c.l.b16 %v1196
      %v1357 = vunpack.c.l.b16 %v1197
      %v1358 = vunpack.c.l.b16 %v1198
      %v1359 = vunpack.c.l.b16 %v1199
      %v1360 = vunpack.c.l.b16 %v1200
      %v1361 = vunpack.c.l.b16 %v1201
      %v1362 = vunpack.c.l.b16 %v1202
      %v1363 = vunpack.c.l.b16 %v1203
      %v1364 = vunpack.c.l.b16 %v1204
      %v1365 = vunpack.c.l.b16 %v1205
      %v1366 = vunpack.c.l.b16 %v1206
      %v1367 = vunpack.c.l.b16 %v1207
      %v1368 = vunpack.c.l.b16 %v1208
      %v1369 = vunpack.c.l.b16 %v1209
      %v1370 = vunpack.c.l.b16 %v1210
      %v1371 = vunpack.c.l.b16 %v1211
      %v1372 = vunpack.c.l.b16 %v1212
      %v1373 = vunpack.c.l.b16 %v1213
      %v1374 = vunpack.c.l.b16 %v1214
      %v1375 = vunpack.c.l.b16 %v1215
      %v1376 = vunpack.c.l.b16 %v1216
      %v1377 = vunpack.c.l.b16 %v1217
      %v1378 = vunpack.c.l.b16 %v1218
      %v1379 = vunpack.c.l.b16 %v1219
      %v1380 = vunpack.c.l.b16 %v1220
      %v1381 = vunpack.c.l.b16 %v1221
      %v1382 = vunpack.c.l.b16 %v1222
      %v1383 = vunpack.c.l.b16 %v1223
      %v1384 = vunpack.c.l.b16 %v1224
      %v1385 = vunpack.c.l.b16 %v1225
      %v1386 = vunpack.c.l.b16 %v1226
      %v1387 = vpack.c.b16 %v1340, %v1339
      %v1388 = vpack.c.b16 %v1342, %v1341
      %v1389 = vpack.c.b16 %v1344, %v1343
      %v1390 = vpack.c.b16 %v1346, %v1345
      %v1391 = vpack.c.b16 %v1348, %v1347
      %v1392 = vpack.c.b16 %v1350, %v1349
      %v1393 = vpack.c.b16 %v1352, %v1351
      %v1394 = vpack.c.b16 %v1354, %v1353
      %v1395 = vpack.c.b16 %v1356, %v1355
      %v1396 = vpack.c.b16 %v1358, %v1357
      %v1397 = vpack.c.b16 %v1360, %v1359
      %v1398 = vpack.c.b16 %v1362, %v1361
      %v1399 = vpack.c.b16 %v1364, %v1363
      %v1400 = vpack.c.b16 %v1366, %v1365
      %v1401 = vpack.c.b16 %v1368, %v1367
      %v1402 = vpack.c.b16 %v1370, %v1369
      %v1403 = vpack.c.b16 %v1372, %v1371
      %v1404 = vpack.c.b16 %v1374, %v1373
      %v1405 = vpack.c.b16 %v1376, %v1375
      %v1406 = vpack.c.b16 %v1378, %v1377
      %v1407 = vpack.c.b16 %v1380, %v1379
      %v1408 = vpack.c.b16 %v1382, %v1381
      %v1409 = vpack.c.b16 %v1384, %v1383
      %v1410 = vpack.c.b16 %v1386, %v1385
      %1435 = vmatprep.subr.bf16.mxu0 0
      %1436 = vmatpush1.bf16.msra.mxu0 %v1387
      %1437 = vmatprep.subr.bf16.mxu0 0
      %1438 = vmatpush1.bf16.msra.mxu0 %v1388
      %1439 = vmatprep.subr.bf16.mxu0 0
      %1440 = vmatpush1.bf16.msra.mxu0 %v1389
      %1441 = vmatprep.subr.bf16.mxu0 0
      %1442 = vmatpush1.bf16.msra.mxu0 %v1390
      %1443 = vmatprep.subr.bf16.mxu0 0
      %1444 = vmatpush1.bf16.msra.mxu0 %v1391
      %1445 = vmatprep.subr.bf16.mxu0 0
      %1446 = vmatpush1.bf16.msra.mxu0 %v1392
      %1447 = vmatprep.subr.bf16.mxu0 0
      %1448 = vmatpush1.bf16.msra.mxu0 %v1393
      %1449 = vmatprep.subr.bf16.mxu0 0
      %1450 = vmatpush1.bf16.msra.mxu0 %v1394
      %1451 = vmatprep.subr.bf16.mxu0 0
      %1452 = vmatpush1.bf16.msra.mxu0 %v1395
      %1453 = vmatprep.subr.bf16.mxu0 0
      %1454 = vmatpush1.bf16.msra.mxu0 %v1396
      %1455 = vmatprep.subr.bf16.mxu0 0
      %1456 = vmatpush1.bf16.msra.mxu0 %v1397
      %1457 = vmatprep.subr.bf16.mxu0 0
      %1458 = vmatpush1.bf16.msra.mxu0 %v1398
      %1459 = vmatprep.subr.bf16.mxu0 0
      %1460 = vmatpush1.bf16.msra.mxu0 %v1399
      %1461 = vmatprep.subr.bf16.mxu0 0
      %1462 = vmatpush1.bf16.msra.mxu0 %v1400
      %1463 = vmatprep.subr.bf16.mxu0 0
      %1464 = vmatpush1.bf16.msra.mxu0 %v1401
      %1465 = vmatprep.subr.bf16.mxu0 0
      %1466 = vmatpush1.bf16.msra.mxu0 %v1402
      %1467 = vmatprep.mubr.bf16.mxu0 %v1268
      %1468 = vmatmul.mubr.bf16.gmra.mrb[0].mxu0 %v1267
      %v1469 = vpop.f32.mrb[0].mxu0
      %v1470 = vadd.f32 0.0, %v1469
      %v1471 = vpop.f32.mrb[0].mxu0
      %v1472 = vpop.f32.mrb[0].mxu0
      %v1473 = vadd.f32 0.0, %v1472
      %v1474 = vpop.f32.mrb[0].mxu0
      %1475 = vmatprep.mubr.bf16.mxu0 %v1271
      %1476 = vmatmul.mubr.bf16.gmra.mrb[0].mxu0 %v1270
      %v1477 = vpop.f32.mrb[0].mxu0
      %v1478 = vadd.f32 0.0, %v1477
      %v1479 = vpop.f32.mrb[0].mxu0
      %v1480 = vpop.f32.mrb[0].mxu0
      %v1481 = vadd.f32 0.0, %v1480
      %v1482 = vpop.f32.mrb[0].mxu0
      %1483 = vmatprep.mubr.bf16.mxu0 %v1274
      %1484 = vmatmul.mubr.bf16.gmra.mrb[0].mxu0 %v1273
      %v1485 = vpop.f32.mrb[0].mxu0
      %v1486 = vadd.f32 0.0, %v1485
      %v1487 = vpop.f32.mrb[0].mxu0
      %v1488 = vpop.f32.mrb[0].mxu0
      %v1489 = vadd.f32 0.0, %v1488
      %v1490 = vpop.f32.mrb[0].mxu0
      %1491 = vmatprep.mubr.bf16.mxu0 %v1277
      %1492 = vmatmul.mubr.bf16.gmra.mrb[0].mxu0 %v1276
      %v1493 = vpop.f32.mrb[0].mxu0
      %v1494 = vadd.f32 0.0, %v1493
      %v1495 = vpop.f32.mrb[0].mxu0
      %v1496 = vpop.f32.mrb[0].mxu0
      %v1497 = vadd.f32 0.0, %v1496
      %v1498 = vpop.f32.mrb[0].mxu0
      %1499 = vdwg.mxu0
      %1500 = vmatprep.subr.bf16.mxu0 0
      %1501 = vmatpush1.bf16.msra.mxu0 %v1403
      %1502 = vmatprep.subr.bf16.mxu0 0
      %1503 = vmatpush1.bf16.msra.mxu0 %v1404
      %1504 = vmatprep.subr.bf16.mxu0 0
      %1505 = vmatpush1.bf16.msra.mxu0 %v1405
      %1506 = vmatprep.subr.bf16.mxu0 0
      %1507 = vmatpush1.bf16.msra.mxu0 %v1406
      %1508 = vmatprep.subr.bf16.mxu0 0
      %1509 = vmatpush1.bf16.msra.mxu0 %v1407
      %1510 = vmatprep.subr.bf16.mxu0 0
      %1511 = vmatpush1.bf16.msra.mxu0 %v1408
      %1512 = vmatprep.subr.bf16.mxu0 0
      %1513 = vmatpush1.bf16.msra.mxu0 %v1409
      %1514 = vmatprep.subr.bf16.mxu0 0
      %1515 = vmatpush1.bf16.msra.mxu0 %v1410
      %1516 = vmatprep.subr.bf16.mxu0 0
      %1517 = vmatpush1.bf16.msra.mxu0 0
      %1518 = vmatprep.subr.bf16.mxu0 0
      %1519 = vmatpush1.bf16.msra.mxu0 0
      %1520 = vmatprep.subr.bf16.mxu0 0
      %1521 = vmatpush1.bf16.msra.mxu0 0
      %1522 = vmatprep.subr.bf16.mxu0 0
      %1523 = vmatpush1.bf16.msra.mxu0 0
      %1524 = vmatprep.subr.bf16.mxu0 0
      %1525 = vmatpush1.bf16.msra.mxu0 0
      %1526 = vmatprep.subr.bf16.mxu0 0
      %1527 = vmatpush1.bf16.msra.mxu0 0
      %1528 = vmatprep.subr.bf16.mxu0 0
      %1529 = vmatpush1.bf16.msra.mxu0 0
      %1530 = vmatprep.subr.bf16.mxu0 0
      %1531 = vmatpush1.bf16.msra.mxu0 0
      %1532 = vmatprep.mubr.bf16.mxu0 0
      %1533 = vmatmul.mubr.bf16.gmra.mrb[0].mxu0 %v1269
      %v1534 = vpop.f32.mrb[0].mxu0
      %v1535 = vadd.f32 %v1470, %v1534
      %v1536 = vpop.f32.mrb[0].mxu0
      %v1537 = vpop.f32.mrb[0].mxu0
      %v1538 = vadd.f32 %v1473, %v1537
      %v1539 = vpop.f32.mrb[0].mxu0
      %1540 = vmatprep.mubr.bf16.mxu0 0
      %1541 = vmatmul.mubr.bf16.gmra.mrb[0].mxu0 %v1272
      %v1542 = vpop.f32.mrb[0].mxu0
      %v1543 = vadd.f32 %v1478, %v1542
      %v1544 = vpop.f32.mrb[0].mxu0
      %v1545 = vpop.f32.mrb[0].mxu0
      %v1546 = vadd.f32 %v1481, %v1545
      %v1547 = vpop.f32.mrb[0].mxu0
      %1548 = vmatprep.mubr.bf16.mxu0 0
      %1549 = vmatmul.mubr.bf16.gmra.mrb[0].mxu0 %v1275
      %v1550 = vpop.f32.mrb[0].mxu0
      %v1551 = vadd.f32 %v1486, %v1550
      %v1552 = vpop.f32.mrb[0].mxu0
      %v1553 = vpop.f32.mrb[0].mxu0
      %v1554 = vadd.f32 %v1489, %v1553
      %v1555 = vpop.f32.mrb[0].mxu0
      %1556 = vmatprep.mubr.bf16.mxu0 0
      %1557 = vmatmul.mubr.bf16.gmra.mrb[0].mxu0 %v1278
      %v1558 = vpop.f32.mrb[0].mxu0
      %v1559 = vadd.f32 %v1494, %v1558
      %v1560 = vpop.f32.mrb[0].mxu0
      %v1561 = vpop.f32.mrb[0].mxu0
      %v1562 = vadd.f32 %v1497, %v1561
      %v1563 = vpop.f32.mrb[0].mxu0
      %1564 = vdwg.mxu0
      %v1565 = vadd.f32 %v1131, %v1535
      %v1566 = vadd.f32 %v1134, %v1538
      %v1567 = vadd.f32 %v1139, %v1543
      %v1568 = vadd.f32 %v1142, %v1546
      %v1569 = vadd.f32 %v1147, %v1551
      %v1570 = vadd.f32 %v1150, %v1554
      %v1571 = vadd.f32 %v1155, %v1559
      %v1572 = vadd.f32 %v1158, %v1562
      %v1573 = vld [vmem:[%s333] sm:$0x1]
      %v1575 = vlaneseq
      %v1576 = vshrl.u32 %v1575, 7
      %v1577 = vsub.s32 0, %v1576
      %v1578 = vrot.slane %v1573, %v1577
      %v1580 = vadd.f32 %v1565, %v1578
      %v1581 = vadd.f32 %v1566, %v1578
      %v1582 = vadd.f32 %v1567, %v1578
      %v1583 = vadd.f32 %v1568, %v1578
      %v1584 = vadd.f32 %v1569, %v1578
      %v1585 = vadd.f32 %v1570, %v1578
      %v1586 = vadd.f32 %v1571, %v1578
      %v1587 = vadd.f32 %v1572, %v1578
      %v1588 = vld [vmem:[%s338] sm:$0xf]
      %v1589 = vld [vmem:[%s338 + $0x4] sm:$0xf]
      %v1590 = vld [vmem:[%s338 + $0x8] sm:$0xf]
      %v1591 = vld [vmem:[%s338 + $0xc] sm:$0xf]
      %v1592 = vld [vmem:[%s338 + $0x10] sm:$0xf]
      %v1593 = vld [vmem:[%s338 + $0x14] sm:$0xf]
      %v1594 = vld [vmem:[%s338 + $0x18] sm:$0xf]
      %v1595 = vld [vmem:[%s338 + $0x1c] sm:$0xf]
      %v1596 = vld [vmem:[%s342] sm:$0xf]
      %v1597 = vld [vmem:[%s342 + $0x4] sm:$0xf]
      %v1598 = vld [vmem:[%s342 + $0x8] sm:$0xf]
      %v1599 = vld [vmem:[%s342 + $0xc] sm:$0xf]
      %v1600 = vld [vmem:[%s342 + $0x10] sm:$0xf]
      %v1601 = vld [vmem:[%s342 + $0x14] sm:$0xf]
      %v1602 = vld [vmem:[%s342 + $0x18] sm:$0xf]
      %v1603 = vld [vmem:[%s342 + $0x1c] sm:$0xf]
      %v1604 = vld [vmem:[%s342 + $0x20] sm:$0xf]
      %v1605 = vld [vmem:[%s342 + $0x24] sm:$0xf]
      %v1606 = vld [vmem:[%s342 + $0x28] sm:$0xf]
      %v1607 = vld [vmem:[%s342 + $0x2c] sm:$0xf]
      %v1608 = vld [vmem:[%s342 + $0x30] sm:$0xf]
      %v1609 = vld [vmem:[%s342 + $0x34] sm:$0xf]
      %v1610 = vld [vmem:[%s342 + $0x38] sm:$0xf]
      %v1611 = vld [vmem:[%s342 + $0x3c] sm:$0xf]
      %v1612 = vld [vmem:[%s345] sm:$0x1]
      %v1614 = vlaneseq
      %v1615 = vshrl.u32 %v1614, 7
      %v1616 = vsub.s32 0, %v1615
      %v1617 = vrot.slane %v1612, %v1616
      %v1627 = vunpack.c.l.b16 %v1588
      %v1628 = vunpack.c.l.b16 %v1589
      %v1629 = vunpack.c.l.b16 %v1590
      %v1630 = vunpack.c.l.b16 %v1591
      %v1631 = vunpack.c.l.b16 %v1592
      %v1632 = vunpack.c.l.b16 %v1593
      %v1633 = vunpack.c.l.b16 %v1594
      %v1634 = vunpack.c.l.b16 %v1595
      %v1635 = vpack.c.b16 %v1628, %v1627
      %v1636 = vpack.c.b16 %v1630, %v1629
      %v1637 = vpack.c.b16 %v1632, %v1631
      %v1638 = vpack.c.b16 %v1634, %v1633
      %v1659 = vunpack.c.l.b16 %v1596
      %v1660 = vunpack.c.l.b16 %v1597
      %v1661 = vunpack.c.l.b16 %v1598
      %v1662 = vunpack.c.l.b16 %v1599
      %v1663 = vunpack.c.l.b16 %v1600
      %v1664 = vunpack.c.l.b16 %v1601
      %v1665 = vunpack.c.l.b16 %v1602
      %v1666 = vunpack.c.l.b16 %v1603
      %v1667 = vunpack.c.l.b16 %v1604
      %v1668 = vunpack.c.l.b16 %v1605
      %v1669 = vunpack.c.l.b16 %v1606
      %v1670 = vunpack.c.l.b16 %v1607
      %v1671 = vunpack.c.l.b16 %v1608
      %v1672 = vunpack.c.l.b16 %v1609
      %v1673 = vunpack.c.l.b16 %v1610
      %v1674 = vunpack.c.l.b16 %v1611
      %v1675 = vpack.c.b16 %v1660, %v1659
      %v1676 = vpack.c.b16 %v1662, %v1661
      %v1677 = vpack.c.b16 %v1664, %v1663
      %v1678 = vpack.c.b16 %v1666, %v1665
      %v1679 = vpack.c.b16 %v1668, %v1667
      %v1680 = vpack.c.b16 %v1670, %v1669
      %v1681 = vpack.c.b16 %v1672, %v1671
      %v1682 = vpack.c.b16 %v1674, %v1673
      %1691 = vmatprep.subr.bf16.mxu0 0
      %1692 = vmatpush1.bf16.msra.mxu0 %v1675
      %1693 = vmatprep.subr.bf16.mxu0 0
      %1694 = vmatpush1.bf16.msra.mxu0 %v1676
      %1695 = vmatprep.subr.bf16.mxu0 0
      %1696 = vmatpush1.bf16.msra.mxu0 %v1677
      %1697 = vmatprep.subr.bf16.mxu0 0
      %1698 = vmatpush1.bf16.msra.mxu0 %v1678
      %1699 = vmatprep.subr.bf16.mxu0 0
      %1700 = vmatpush1.bf16.msra.mxu0 %v1679
      %1701 = vmatprep.subr.bf16.mxu0 0
      %1702 = vmatpush1.bf16.msra.mxu0 %v1680
      %1703 = vmatprep.subr.bf16.mxu0 0
      %1704 = vmatpush1.bf16.msra.mxu0 %v1681
      %1705 = vmatprep.subr.bf16.mxu0 0
      %1706 = vmatpush1.bf16.msra.mxu0 %v1682
      %1707 = vmatprep.subr.bf16.mxu0 0
      %1708 = vmatpush1.bf16.msra.mxu0 0
      %1709 = vmatprep.subr.bf16.mxu0 0
      %1710 = vmatpush1.bf16.msra.mxu0 0
      %1711 = vmatprep.subr.bf16.mxu0 0
      %1712 = vmatpush1.bf16.msra.mxu0 0
      %1713 = vmatprep.subr.bf16.mxu0 0
      %1714 = vmatpush1.bf16.msra.mxu0 0
      %1715 = vmatprep.subr.bf16.mxu0 0
      %1716 = vmatpush1.bf16.msra.mxu0 0
      %1717 = vmatprep.subr.bf16.mxu0 0
      %1718 = vmatpush1.bf16.msra.mxu0 0
      %1719 = vmatprep.subr.bf16.mxu0 0
      %1720 = vmatpush1.bf16.msra.mxu0 0
      %1721 = vmatprep.subr.bf16.mxu0 0
      %1722 = vmatpush1.bf16.msra.mxu0 0
      %1723 = vmatprep.mubr.bf16.mxu0 0
      %1724 = vmatmul.mubr.bf16.gmra.mrb[0].mxu0 %v1635
      %v1725 = vpop.f32.mrb[0].mxu0
      %v1726 = vadd.f32 %v1617, %v1725
      %v1727 = vpop.f32.mrb[0].mxu0
      %v1728 = vpop.f32.mrb[0].mxu0
      %v1729 = vadd.f32 %v1617, %v1728
      %v1730 = vpop.f32.mrb[0].mxu0
      %1731 = vmatprep.mubr.bf16.mxu0 0
      %1732 = vmatmul.mubr.bf16.gmra.mrb[0].mxu0 %v1636
      %v1733 = vpop.f32.mrb[0].mxu0
      %v1734 = vadd.f32 %v1617, %v1733
      %v1735 = vpop.f32.mrb[0].mxu0
      %v1736 = vpop.f32.mrb[0].mxu0
      %v1737 = vadd.f32 %v1617, %v1736
      %v1738 = vpop.f32.mrb[0].mxu0
      %1739 = vmatprep.mubr.bf16.mxu0 0
      %1740 = vmatmul.mubr.bf16.gmra.mrb[0].mxu0 %v1637
      %v1741 = vpop.f32.mrb[0].mxu0
      %v1742 = vadd.f32 %v1617, %v1741
      %v1743 = vpop.f32.mrb[0].mxu0
      %v1744 = vpop.f32.mrb[0].mxu0
      %v1745 = vadd.f32 %v1617, %v1744
      %v1746 = vpop.f32.mrb[0].mxu0
      %1747 = vmatprep.mubr.bf16.mxu0 0
      %1748 = vmatmul.mubr.bf16.gmra.mrb[0].mxu0 %v1638
      %v1749 = vpop.f32.mrb[0].mxu0
      %v1750 = vadd.f32 %v1617, %v1749
      %v1751 = vpop.f32.mrb[0].mxu0
      %v1752 = vpop.f32.mrb[0].mxu0
      %v1753 = vadd.f32 %v1617, %v1752
      %v1754 = vpop.f32.mrb[0].mxu0
      %1755 = vdwg.mxu0
      %v1756 = vadd.f32 %v1580, %v1726
      %v1757 = vadd.f32 %v1581, %v1729
      %v1758 = vadd.f32 %v1582, %v1734
      %v1759 = vadd.f32 %v1583, %v1737
      %v1760 = vadd.f32 %v1584, %v1742
      %v1761 = vadd.f32 %v1585, %v1745
      %v1762 = vadd.f32 %v1586, %v1750
      %v1763 = vadd.f32 %v1587, %v1753
      %v1764 = vmax.f32 %v1756, 0.0
      %v1765 = vmax.f32 %v1757, 0.0
      %v1766 = vmax.f32 %v1758, 0.0
      %v1767 = vmax.f32 %v1759, 0.0
      %v1768 = vmax.f32 %v1760, 0.0
      %v1769 = vmax.f32 %v1761, 0.0
      %v1770 = vmax.f32 %v1762, 0.0
      %v1771 = vmax.f32 %v1763, 0.0
      %v1772 = vpack.c.bf16 %v1764, %v1764
      %v1773 = vpack.c.bf16 %v1765, %v1765
      %v1774 = vpack.c.bf16 %v1766, %v1766
      %v1775 = vpack.c.bf16 %v1767, %v1767
      %v1776 = vpack.c.bf16 %v1768, %v1768
      %v1777 = vpack.c.bf16 %v1769, %v1769
      %v1778 = vpack.c.bf16 %v1770, %v1770
      %v1779 = vpack.c.bf16 %v1771, %v1771
      %1780 = vst [vmem:[%s353] sm:$0xf] %v1772
      %1781 = vst [vmem:[%s353 + $0x4] sm:$0xf] %v1773
      %1782 = vst [vmem:[%s353 + $0x8] sm:$0xf] %v1774
      %1783 = vst [vmem:[%s353 + $0xc] sm:$0xf] %v1775
      %1784 = vst [vmem:[%s353 + $0x10] sm:$0xf] %v1776
      %1785 = vst [vmem:[%s353 + $0x14] sm:$0xf] %v1777
      %1786 = vst [vmem:[%s353 + $0x18] sm:$0xf] %v1778
      %1787 = vst [vmem:[%s353 + $0x1c] sm:$0xf] %v1779
      %p1788 = scmp.lt.s32.totalorder %s21, 1
      %s1789 = scalar_select %p1788, %s21, 1
      %p1790 = scmp.lt.s32.totalorder %s22, 0
      %s1791 = scalar_select %p1790, %s22, 0
      %s1792 = smul.addr %s1789, 8
      %s1793 = sadd.s32 %s1791, %s1792
      %s1794 = smul.addr %s1793, 4
      %s1795 = scalar_lea.vmem %s6, %s1794
      // Predicated region
      $region45: #{_lambda_.5} parent=43 // pred_check
        %p1796 = pneg %p205
      $region46: #{_lambda_.5} parent=43 // pred_check_branch
        %1798 = sbr.rel (%p1796) target = $region48
      $region47: #{_lambda_.5} parent=43 // pred_region
        _
      $region48: #{_lambda_.5} parent=43 // pred_fallthru
        _
    $region44: #{_lambda_.5} parent=5 // pred_fallthru
      _
    %p1799 = scmp.le.s32.totalorder 2, %s12
    // Predicated region
    $region49: #{_lambda_.5} parent=5 // pred_check
      %p1800 = pneg %p1799
    $region50: #{_lambda_.5} parent=5 // pred_check_branch
      %1802 = sbr.rel (%p1800) target = $region52
    $region51: #{_lambda_.5} parent=5 // pred_region
      %s1803 = ssub.s32 %s12, 2
      // Predicated region
      $region53: #{_lambda_.5} parent=51 // pred_check
        %p1804 = pneg %p211
      $region54: #{_lambda_.5} parent=51 // pred_check_branch
        %1806 = sbr.rel (%p1804) target = $region56
      $region55: #{_lambda_.5} parent=51 // pred_region
        %p1807 = scmp.lt.s32.totalorder %s23, 1
        %s1808 = scalar_select %p1807, %s23, 1
        %p1809 = scmp.lt.s32.totalorder %s24, 0
        %s1810 = scalar_select %p1809, %s24, 0
        %s1811 = smul.addr %s1808, 8
        %s1812 = sadd.s32 %s1810, %s1811
        %s1813 = smul.addr %s1812, 4
        %s1814 = scalar_lea.vmem %s6, %s1813
      $region56: #{_lambda_.5} parent=51 // pred_fallthru
        _
    $region52: #{_lambda_.5} parent=5 // pred_fallthru
      _
  $region6: #{_lambda_.5} parent=0 // loop_footer
    %s16 = sadd.s32 1, %s12
  $region7: #{_lambda_.5} parent=0 // loop_footer_branch
    %11 = sbr.rel target = $region3
  $region8: #{_lambda_.5} parent=0 // loop_exit
    _

// kernel: _lambda_.6
$region0: #{_lambda_.6}
  #allocation0 [shape = 'u32[]', space=smem, size = 0x4, offset = 0x4, fixed_abs, tag = 'smem constant byte address 0x4 - core index']
  #allocation1 [shape = 'u32[144,128]{1,0:T(1,128)}', space=vmem, size = 0x12000, scoped, tag = 'internal scratch']
  %s0 = inlined_call_operand.vmem [shape: bf16[2,10,8,384], index: 0, kind: input, shape index: {}]
  %s1 = inlined_call_operand.vmem [shape: bf16[3,384,128], index: 1, kind: input, shape index: {}]
  %s2 = inlined_call_operand.vmem [shape: f32[1,128], index: 2, kind: input, shape index: {}]
  %s3 = inlined_call_operand.vmem [shape: bf16[2,8,8,128], index: 3, kind: output, shape index: {}]
  %s4 = sld [smem:[#allocation0]]
  $region45: #{_lambda_.6} parent=0
    _
  %s6 = ssub.s32 1, %s4
  %s7 = scalar_select 0, %s6, %s4
  loop: start=0, step=1, limit=4
  $region2: #{_lambda_.6} parent=0 // loop_pre_header
    _
  $region3: #{_lambda_.6} parent=0 // loop_header
    %s9 = sphi 0, %s13
    %p10 = scmp.ge.s32.totalorder %s9, 4
    %s16 = sphi 0, %s28
    %s17 = sphi 0, %s24
    %s18 = sphi 0, %s16
    %s19 = sphi 0, %s17
    %s20 = sphi 0, %s18
    %s21 = sphi 0, %s19
    %s31 = sphi 0, %s33
    %s34 = sphi 0, %s31
    %s35 = sphi 0, %s34
    %s51 = sphi 0, %s35
    %s57 = sphi 0, %s59
    %s60 = sphi 0, %s57
    %s61 = sphi 0, %s60
    %s77 = sphi 0, %s61
    %s83 = sphi 0, %s85
    %s86 = sphi 0, %s83
    %s87 = sphi 0, %s86
    %s103 = sphi 0, %s87
    %s111 = sphi 0, %s113
    %s114 = sphi 0, %s111
    %s115 = sphi 0, %s114
    %s131 = sphi 0, %s115
  $region4: #{_lambda_.6} parent=0 // loop_header_branch
    %12 = sbr.rel (%p10) target = $region8
  $region5: #{_lambda_.6} parent=0 // loop_body
    %s14 = ssub.s32 %s9, 1
    %s15 = ssub.s32 %s9, 2
    %s22 = sadd.s32 1, %s17
    %p23 = scmp.ge.s32.totalorder %s22, 1
    %s24 = scalar_select %p23, 0, %s22
    %s25 = sadd.s32 1, %s16
    %s26 = scalar_select %p23, %s25, %s16
    %p27 = scmp.ge.s32.totalorder %s26, 2
    %s28 = scalar_select %p27, 0, %s26
    %s29 = ssub.s32 %s16, %s28
    %p30 = scmp.eq.s32.totalorder %s29, 0
    %s32 = sadd.s32 %s31, 1
    %s33 = scalar_select %p30, %s31, %s32
    %p36 = pneg %p30
    %p37 = scmp.eq.s32.totalorder %s9, 1
    %p38 = por %p36, %p37
    %p39 = scmp.ne.s32.totalorder %s31, %s34
    %p40 = scmp.eq.s32.totalorder %s9, 0
    %p41 = por %p39, %p40
    %p42 = scmp.ne.s32.totalorder %s31, %s34
    %p43 = scmp.eq.s32.totalorder %s14, 1
    %p44 = por %p42, %p43
    %p45 = scmp.ne.s32.totalorder %s34, %s35
    %p46 = scmp.eq.s32.totalorder %s14, 0
    %p47 = por %p45, %p46
    %p48 = scmp.ne.s32.totalorder %s34, %s35
    %p49 = scmp.eq.s32.totalorder %s15, 1
    %p50 = por %p48, %p49
    %p52 = scmp.ne.s32.totalorder %s35, %s51
    %p53 = scmp.eq.s32.totalorder %s15, 0
    %p54 = por %p52, %p53
    %s55 = ssub.s32 %s17, %s24
    %p56 = scmp.eq.s32.totalorder %s55, 0
    %s58 = sadd.s32 %s57, 1
    %s59 = scalar_select %p56, %s57, %s58
    %p62 = pneg %p56
    %p63 = scmp.eq.s32.totalorder %s9, 1
    %p64 = por %p62, %p63
    %p65 = scmp.ne.s32.totalorder %s57, %s60
    %p66 = scmp.eq.s32.totalorder %s9, 0
    %p67 = por %p65, %p66
    %p68 = scmp.ne.s32.totalorder %s57, %s60
    %p69 = scmp.eq.s32.totalorder %s14, 1
    %p70 = por %p68, %p69
    %p71 = scmp.ne.s32.totalorder %s60, %s61
    %p72 = scmp.eq.s32.totalorder %s14, 0
    %p73 = por %p71, %p72
    %p74 = scmp.ne.s32.totalorder %s60, %s61
    %p75 = scmp.eq.s32.totalorder %s15, 1
    %p76 = por %p74, %p75
    %p78 = scmp.ne.s32.totalorder %s61, %s77
    %p79 = scmp.eq.s32.totalorder %s15, 0
    %p80 = por %p78, %p79
    %s81 = ssub.s32 %s17, %s24
    %p82 = scmp.eq.s32.totalorder %s81, 0
    %s84 = sadd.s32 %s83, 1
    %s85 = scalar_select %p82, %s83, %s84
    %p88 = pneg %p82
    %p89 = scmp.eq.s32.totalorder %s9, 1
    %p90 = por %p88, %p89
    %p91 = scmp.ne.s32.totalorder %s83, %s86
    %p92 = scmp.eq.s32.totalorder %s9, 0
    %p93 = por %p91, %p92
    %p94 = scmp.ne.s32.totalorder %s83, %s86
    %p95 = scmp.eq.s32.totalorder %s14, 1
    %p96 = por %p94, %p95
    %p97 = scmp.ne.s32.totalorder %s86, %s87
    %p98 = scmp.eq.s32.totalorder %s14, 0
    %p99 = por %p97, %p98
    %p100 = scmp.ne.s32.totalorder %s86, %s87
    %p101 = scmp.eq.s32.totalorder %s15, 1
    %p102 = por %p100, %p101
    %p104 = scmp.ne.s32.totalorder %s87, %s103
    %p105 = scmp.eq.s32.totalorder %s15, 0
    %p106 = por %p104, %p105
    %s107 = ssub.s32 %s16, %s28
    %s108 = ssub.s32 %s17, %s24
    %s109 = sor.u32 %s107, %s108
    %p110 = scmp.eq.s32.totalorder %s109, 0
    %s112 = sadd.s32 %s111, 1
    %s113 = scalar_select %p110, %s111, %s112
    %p116 = pneg %p110
    %p117 = scmp.eq.s32.totalorder %s9, 1
    %p118 = por %p116, %p117
    %p119 = scmp.ne.s32.totalorder %s111, %s114
    %p120 = scmp.eq.s32.totalorder %s9, 0
    %p121 = por %p119, %p120
    %p122 = scmp.ne.s32.totalorder %s111, %s114
    %p123 = scmp.eq.s32.totalorder %s14, 1
    %p124 = por %p122, %p123
    %p125 = scmp.ne.s32.totalorder %s114, %s115
    %p126 = scmp.eq.s32.totalorder %s14, 0
    %p127 = por %p125, %p126
    %p128 = scmp.ne.s32.totalorder %s114, %s115
    %p129 = scmp.eq.s32.totalorder %s15, 1
    %p130 = por %p128, %p129
    %p132 = scmp.ne.s32.totalorder %s115, %s131
    %p133 = scmp.eq.s32.totalorder %s15, 0
    %p134 = por %p132, %p133
    %p135 = scmp.le.s32.totalorder 1, %s9
    %p136 = scmp.lt.s32.totalorder %s9, 3
    %p137 = pnand %p135, %p136
    %p138 = pneg %p137
    // Predicated region
    $region9: #{_lambda_.6} parent=5 // pred_check
      _
    $region10: #{_lambda_.6} parent=5 // pred_check_branch
      %140 = sbr.rel (%p137) target = $region12
    $region11: #{_lambda_.6} parent=5 // pred_region
      %s141 = ssub.s32 %s9, 1
      // Predicated region
      $region13: #{_lambda_.6} parent=11 // pred_check
        %p142 = pneg %p73
      $region14: #{_lambda_.6} parent=11 // pred_check_branch
        %144 = sbr.rel (%p142) target = $region16
      $region15: #{_lambda_.6} parent=11 // pred_region
        %p145 = scmp.lt.s32.totalorder %s19, 0
        %s146 = scalar_select %p145, %s19, 0
        %s147 = smul.addr %s146, 4
        %s148 = scalar_lea.vmem %s1, %s147
      $region16: #{_lambda_.6} parent=11 // pred_fallthru
        _
      // Predicated region
      $region17: #{_lambda_.6} parent=11 // pred_check
        %p149 = pneg %p99
      $region18: #{_lambda_.6} parent=11 // pred_check_branch
        %151 = sbr.rel (%p149) target = $region20
      $region19: #{_lambda_.6} parent=11 // pred_region
        %p152 = scmp.lt.s32.totalorder %s19, 0
        %s153 = scalar_select %p152, %s19, 0
        %s154 = scalar_lea.vmem %s2, %s153
      $region20: #{_lambda_.6} parent=11 // pred_fallthru
        _
    $region12: #{_lambda_.6} parent=5 // pred_fallthru
      _
    %p155 = scmp.lt.s32.totalorder %s9, 2
    // Predicated region
    $region21: #{_lambda_.6} parent=5 // pred_check
      %p156 = pneg %p155
    $region22: #{_lambda_.6} parent=5 // pred_check_branch
      %158 = sbr.rel (%p156) target = $region24
    $region23: #{_lambda_.6} parent=5 // pred_region
      // Predicated region
      $region25: #{_lambda_.6} parent=23 // pred_check
        %p159 = pneg %p41
      $region26: #{_lambda_.6} parent=23 // pred_check_branch
        %161 = sbr.rel (%p159) target = $region28
      $region27: #{_lambda_.6} parent=23 // pred_region
        %p162 = scmp.lt.s32.totalorder %s16, 1
        %s163 = scalar_select %p162, %s16, 1
        %s164 = smul.addr %s163, 30
        %s165 = smul.addr %s164, 4
        %s166 = scalar_lea.vmem %s0, %s165
      $region28: #{_lambda_.6} parent=23 // pred_fallthru
        _
    $region24: #{_lambda_.6} parent=5 // pred_fallthru
      _
    %p167 = scmp.le.s32.totalorder 1, %s9
    %p168 = scmp.lt.s32.totalorder %s9, 3
    %p169 = pnand %p167, %p168
    %p170 = pneg %p169
    // Predicated region
    $region29: #{_lambda_.6} parent=5 // pred_check
      _
    $region30: #{_lambda_.6} parent=5 // pred_check_branch
      %172 = sbr.rel (%p169) target = $region32
    $region31: #{_lambda_.6} parent=5 // pred_region
      %s173 = ssub.s32 %s9, 1
      %p174 = scmp.lt.s32.totalorder %s18, 1
      %s175 = scalar_select %p174, %s18, 1
      %s176 = smul.addr %s175, 30
      %s177 = smul.addr %s176, 4
      %s178 = scalar_lea.vmem %s0, %s177
      %p179 = pneg %p47
      %p180 = pneg %p44
      %p181 = scmp.lt.s32.totalorder %s19, 0
      %s182 = scalar_select %p181, %s19, 0
      %s183 = smul.addr %s182, 4
      %s184 = scalar_lea.vmem %s1, %s183
      %p185 = pneg %p73
      %p186 = pneg %p70
      %p187 = scmp.lt.s32.totalorder %s19, 0
      %s188 = scalar_select %p187, %s19, 0
      %s189 = scalar_lea.vmem %s2, %s188
      %p190 = pneg %p99
      %p191 = pneg %p96
      %p192 = pneg %p127
      %p193 = pneg %p124
      %p194 = scmp.lt.s32.totalorder %s18, 1
      %s195 = scalar_select %p194, %s18, 1
      %p196 = scmp.lt.s32.totalorder %s19, 0
      %s197 = scalar_select %p196, %s19, 0
      %s198 = smul.addr %s195, 8
      %s199 = sadd.s32 %s197, %s198
      %s200 = smul.addr %s199, 4
      %s201 = scalar_lea.vmem %s3, %s200
      %p202 = scmp.lt.s32.totalorder %s18, 1
      %s203 = scalar_select %p202, %s18, 1
      %s204 = smul.addr %s203, 30
      %s205 = smul.addr %s204, 4
      %s206 = scalar_lea.vmem %s0, %s205
      %p207 = scmp.lt.s32.totalorder %s19, 0
      %s208 = scalar_select %p207, %s19, 0
      %s209 = smul.addr %s208, 4
      %s210 = scalar_lea.vmem %s1, %s209
      %p211 = scmp.lt.s32.totalorder %s19, 0
      %s212 = scalar_select %p211, %s19, 0
      %s213 = scalar_lea.vmem %s2, %s212
      %p214 = scmp.lt.s32.totalorder %s18, 1
      %s215 = scalar_select %p214, %s18, 1
      %p216 = scmp.lt.s32.totalorder %s19, 0
      %s217 = scalar_select %p216, %s19, 0
      %s218 = smul.addr %s215, 8
      %s219 = sadd.s32 %s217, %s218
      %s220 = smul.addr %s219, 4
      %s221 = scalar_lea.vmem %s3, %s220
      %v223 = vld [vmem:[%s206] sm:$0xff]
      %v224 = vld [vmem:[%s206 + $0x8] sm:$0xf]
      %v225 = vld [vmem:[%s206 + $0xc] sm:$0xff]
      %v226 = vld [vmem:[%s206 + $0x14] sm:$0xf]
      %v227 = vld [vmem:[%s206 + $0x18] sm:$0xff]
      %v228 = vld [vmem:[%s206 + $0x20] sm:$0xf]
      %v229 = vld [vmem:[%s206 + $0x24] sm:$0xff]
      %v230 = vld [vmem:[%s206 + $0x2c] sm:$0xf]
      %v231 = vld [vmem:[%s206 + $0x30] sm:$0xff]
      %v232 = vld [vmem:[%s206 + $0x38] sm:$0xf]
      %v233 = vld [vmem:[%s206 + $0x3c] sm:$0xff]
      %v234 = vld [vmem:[%s206 + $0x44] sm:$0xf]
      %v235 = vld [vmem:[%s206 + $0x48] sm:$0xff]
      %v236 = vld [vmem:[%s206 + $0x50] sm:$0xf]
      %v237 = vld [vmem:[%s206 + $0x54] sm:$0xff]
      %v238 = vld [vmem:[%s206 + $0x5c] sm:$0xf]
      %v239 = vld [vmem:[%s210] sm:$0xf]
      %v240 = vld [vmem:[%s210 + $0x4] sm:$0xf]
      %v241 = vld [vmem:[%s210 + $0x8] sm:$0xf]
      %v242 = vld [vmem:[%s210 + $0xc] sm:$0xf]
      %v243 = vld [vmem:[%s210 + $0x10] sm:$0xf]
      %v244 = vld [vmem:[%s210 + $0x14] sm:$0xf]
      %v245 = vld [vmem:[%s210 + $0x18] sm:$0xf]
      %v246 = vld [vmem:[%s210 + $0x1c] sm:$0xf]
      %v247 = vld [vmem:[%s210 + $0x20] sm:$0xf]
      %v248 = vld [vmem:[%s210 + $0x24] sm:$0xf]
      %v249 = vld [vmem:[%s210 + $0x28] sm:$0xf]
      %v250 = vld [vmem:[%s210 + $0x2c] sm:$0xf]
      %v251 = vld [vmem:[%s210 + $0x30] sm:$0xf]
      %v252 = vld [vmem:[%s210 + $0x34] sm:$0xf]
      %v253 = vld [vmem:[%s210 + $0x38] sm:$0xf]
      %v254 = vld [vmem:[%s210 + $0x3c] sm:$0xf]
      %v255 = vld [vmem:[%s210 + $0x40] sm:$0xf]
      %v256 = vld [vmem:[%s210 + $0x44] sm:$0xf]
      %v257 = vld [vmem:[%s210 + $0x48] sm:$0xf]
      %v258 = vld [vmem:[%s210 + $0x4c] sm:$0xf]
      %v259 = vld [vmem:[%s210 + $0x50] sm:$0xf]
      %v260 = vld [vmem:[%s210 + $0x54] sm:$0xf]
      %v261 = vld [vmem:[%s210 + $0x58] sm:$0xf]
      %v262 = vld [vmem:[%s210 + $0x5c] sm:$0xf]
      %v263 = vld [vmem:[%s210 + $0x60] sm:$0xf]
      %v264 = vld [vmem:[%s210 + $0x64] sm:$0xf]
      %v265 = vld [vmem:[%s210 + $0x68] sm:$0xf]
      %v266 = vld [vmem:[%s210 + $0x6c] sm:$0xf]
      %v267 = vld [vmem:[%s210 + $0x70] sm:$0xf]
      %v268 = vld [vmem:[%s210 + $0x74] sm:$0xf]
      %v269 = vld [vmem:[%s210 + $0x78] sm:$0xf]
      %v270 = vld [vmem:[%s210 + $0x7c] sm:$0xf]
      %v271 = vld [vmem:[%s210 + $0x80] sm:$0xf]
      %v272 = vld [vmem:[%s210 + $0x84] sm:$0xf]
      %v273 = vld [vmem:[%s210 + $0x88] sm:$0xf]
      %v274 = vld [vmem:[%s210 + $0x8c] sm:$0xf]
      %v275 = vld [vmem:[%s210 + $0x90] sm:$0xf]
      %v276 = vld [vmem:[%s210 + $0x94] sm:$0xf]
      %v277 = vld [vmem:[%s210 + $0x98] sm:$0xf]
      %v278 = vld [vmem:[%s210 + $0x9c] sm:$0xf]
      %v279 = vld [vmem:[%s210 + $0xa0] sm:$0xf]
      %v280 = vld [vmem:[%s210 + $0xa4] sm:$0xf]
      %v281 = vld [vmem:[%s210 + $0xa8] sm:$0xf]
      %v282 = vld [vmem:[%s210 + $0xac] sm:$0xf]
      %v283 = vld [vmem:[%s210 + $0xb0] sm:$0xf]
      %v284 = vld [vmem:[%s210 + $0xb4] sm:$0xf]
      %v285 = vld [vmem:[%s210 + $0xb8] sm:$0xf]
      %v286 = vld [vmem:[%s210 + $0xbc] sm:$0xf]
      %s287 = scalar_lea.vmem %s206, 12
      %v288 = vld [vmem:[%s287] sm:$0xff]
      %v289 = vld [vmem:[%s287 + $0x8] sm:$0xf]
      %v290 = vld [vmem:[%s287 + $0xc] sm:$0xff]
      %v291 = vld [vmem:[%s287 + $0x14] sm:$0xf]
      %v292 = vld [vmem:[%s287 + $0x18] sm:$0xff]
      %v293 = vld [vmem:[%s287 + $0x20] sm:$0xf]
      %v294 = vld [vmem:[%s287 + $0x24] sm:$0xff]
      %v295 = vld [vmem:[%s287 + $0x2c] sm:$0xf]
      %v296 = vld [vmem:[%s287 + $0x30] sm:$0xff]
      %v297 = vld [vmem:[%s287 + $0x38] sm:$0xf]
      %v298 = vld [vmem:[%s287 + $0x3c] sm:$0xff]
      %v299 = vld [vmem:[%s287 + $0x44] sm:$0xf]
      %v300 = vld [vmem:[%s287 + $0x48] sm:$0xff]
      %v301 = vld [vmem:[%s287 + $0x50] sm:$0xf]
      %v302 = vld [vmem:[%s287 + $0x54] sm:$0xff]
      %v303 = vld [vmem:[%s287 + $0x5c] sm:$0xf]
      %s304 = scalar_lea.vmem %s210, 192
      %v305 = vld [vmem:[%s304] sm:$0xf]
      %v306 = vld [vmem:[%s304 + $0x4] sm:$0xf]
      %v307 = vld [vmem:[%s304 + $0x8] sm:$0xf]
      %v308 = vld [vmem:[%s304 + $0xc] sm:$0xf]
      %v309 = vld [vmem:[%s304 + $0x10] sm:$0xf]
      %v310 = vld [vmem:[%s304 + $0x14] sm:$0xf]
      %v311 = vld [vmem:[%s304 + $0x18] sm:$0xf]
      %v312 = vld [vmem:[%s304 + $0x1c] sm:$0xf]
      %v313 = vld [vmem:[%s304 + $0x20] sm:$0xf]
      %v314 = vld [vmem:[%s304 + $0x24] sm:$0xf]
      %v315 = vld [vmem:[%s304 + $0x28] sm:$0xf]
      %v316 = vld [vmem:[%s304 + $0x2c] sm:$0xf]
      %v317 = vld [vmem:[%s304 + $0x30] sm:$0xf]
      %v318 = vld [vmem:[%s304 + $0x34] sm:$0xf]
      %v319 = vld [vmem:[%s304 + $0x38] sm:$0xf]
      %v320 = vld [vmem:[%s304 + $0x3c] sm:$0xf]
      %v321 = vld [vmem:[%s304 + $0x40] sm:$0xf]
      %v322 = vld [vmem:[%s304 + $0x44] sm:$0xf]
      %v323 = vld [vmem:[%s304 + $0x48] sm:$0xf]
      %v324 = vld [vmem:[%s304 + $0x4c] sm:$0xf]
      %v325 = vld [vmem:[%s304 + $0x50] sm:$0xf]
      %v326 = vld [vmem:[%s304 + $0x54] sm:$0xf]
      %v327 = vld [vmem:[%s304 + $0x58] sm:$0xf]
      %v328 = vld [vmem:[%s304 + $0x5c] sm:$0xf]
      %v329 = vld [vmem:[%s304 + $0x60] sm:$0xf]
      %v330 = vld [vmem:[%s304 + $0x64] sm:$0xf]
      %v331 = vld [vmem:[%s304 + $0x68] sm:$0xf]
      %v332 = vld [vmem:[%s304 + $0x6c] sm:$0xf]
      %v333 = vld [vmem:[%s304 + $0x70] sm:$0xf]
      %v334 = vld [vmem:[%s304 + $0x74] sm:$0xf]
      %v335 = vld [vmem:[%s304 + $0x78] sm:$0xf]
      %v336 = vld [vmem:[%s304 + $0x7c] sm:$0xf]
      %v337 = vld [vmem:[%s304 + $0x80] sm:$0xf]
      %v338 = vld [vmem:[%s304 + $0x84] sm:$0xf]
      %v339 = vld [vmem:[%s304 + $0x88] sm:$0xf]
      %v340 = vld [vmem:[%s304 + $0x8c] sm:$0xf]
      %v341 = vld [vmem:[%s304 + $0x90] sm:$0xf]
      %v342 = vld [vmem:[%s304 + $0x94] sm:$0xf]
      %v343 = vld [vmem:[%s304 + $0x98] sm:$0xf]
      %v344 = vld [vmem:[%s304 + $0x9c] sm:$0xf]
      %v345 = vld [vmem:[%s304 + $0xa0] sm:$0xf]
      %v346 = vld [vmem:[%s304 + $0xa4] sm:$0xf]
      %v347 = vld [vmem:[%s304 + $0xa8] sm:$0xf]
      %v348 = vld [vmem:[%s304 + $0xac] sm:$0xf]
      %v349 = vld [vmem:[%s304 + $0xb0] sm:$0xf]
      %v350 = vld [vmem:[%s304 + $0xb4] sm:$0xf]
      %v351 = vld [vmem:[%s304 + $0xb8] sm:$0xf]
      %v352 = vld [vmem:[%s304 + $0xbc] sm:$0xf]
      %v369 = vunpack.c.l.b16 %v288
      %v370 = vunpack.c.h.b16 %v288
      %v371 = vunpack.c.l.b16 %v289
      %v372 = vunpack.c.l.b16 %v290
      %v373 = vunpack.c.h.b16 %v290
      %v374 = vunpack.c.l.b16 %v291
      %v375 = vunpack.c.l.b16 %v292
      %v376 = vunpack.c.h.b16 %v292
      %v377 = vunpack.c.l.b16 %v293
      %v378 = vunpack.c.l.b16 %v294
      %v379 = vunpack.c.h.b16 %v294
      %v380 = vunpack.c.l.b16 %v295
      %v381 = vunpack.c.l.b16 %v296
      %v382 = vunpack.c.h.b16 %v296
      %v383 = vunpack.c.l.b16 %v297
      %v384 = vunpack.c.l.b16 %v298
      %v385 = vunpack.c.h.b16 %v298
      %v386 = vunpack.c.l.b16 %v299
      %v387 = vunpack.c.l.b16 %v300
      %v388 = vunpack.c.h.b16 %v300
      %v389 = vunpack.c.l.b16 %v301
      %v390 = vunpack.c.l.b16 %v302
      %v391 = vunpack.c.h.b16 %v302
      %v392 = vunpack.c.l.b16 %v303
      %v393 = vpack.c.b16 %v372, %v369
      %v394 = vpack.c.b16 %v373, %v370
      %v395 = vpack.c.b16 %v374, %v371
      %v396 = vpack.c.b16 %v378, %v375
      %v397 = vpack.c.b16 %v379, %v376
      %v398 = vpack.c.b16 %v380, %v377
      %v399 = vpack.c.b16 %v384, %v381
      %v400 = vpack.c.b16 %v385, %v382
      %v401 = vpack.c.b16 %v386, %v383
      %v402 = vpack.c.b16 %v390, %v387
      %v403 = vpack.c.b16 %v391, %v388
      %v404 = vpack.c.b16 %v392, %v389
      %v465 = vunpack.c.l.b16 %v305
      %v466 = vunpack.c.l.b16 %v306
      %v467 = vunpack.c.l.b16 %v307
      %v468 = vunpack.c.l.b16 %v308
      %v469 = vunpack.c.l.b16 %v309
      %v470 = vunpack.c.l.b16 %v310
      %v471 = vunpack.c.l.b16 %v311
      %v472 = vunpack.c.l.b16 %v312
      %v473 = vunpack.c.l.b16 %v313
      %v474 = vunpack.c.l.b16 %v314
      %v475 = vunpack.c.l.b16 %v315
      %v476 = vunpack.c.l.b16 %v316
      %v477 = vunpack.c.l.b16 %v317
      %v478 = vunpack.c.l.b16 %v318
      %v479 = vunpack.c.l.b16 %v319
      %v480 = vunpack.c.l.b16 %v320
      %v481 = vunpack.c.l.b16 %v321
      %v482 = vunpack.c.l.b16 %v322
      %v483 = vunpack.c.l.b16 %v323
      %v484 = vunpack.c.l.b16 %v324
      %v485 = vunpack.c.l.b16 %v325
      %v486 = vunpack.c.l.b16 %v326
      %v487 = vunpack.c.l.b16 %v327
      %v488 = vunpack.c.l.b16 %v328
      %v489 = vunpack.c.l.b16 %v329
      %v490 = vunpack.c.l.b16 %v330
      %v491 = vunpack.c.l.b16 %v331
      %v492 = vunpack.c.l.b16 %v332
      %v493 = vunpack.c.l.b16 %v333
      %v494 = vunpack.c.l.b16 %v334
      %v495 = vunpack.c.l.b16 %v335
      %v496 = vunpack.c.l.b16 %v336
      %v497 = vunpack.c.l.b16 %v337
      %v498 = vunpack.c.l.b16 %v338
      %v499 = vunpack.c.l.b16 %v339
      %v500 = vunpack.c.l.b16 %v340
      %v501 = vunpack.c.l.b16 %v341
      %v502 = vunpack.c.l.b16 %v342
      %v503 = vunpack.c.l.b16 %v343
      %v504 = vunpack.c.l.b16 %v344
      %v505 = vunpack.c.l.b16 %v345
      %v506 = vunpack.c.l.b16 %v346
      %v507 = vunpack.c.l.b16 %v347
      %v508 = vunpack.c.l.b16 %v348
      %v509 = vunpack.c.l.b16 %v349
      %v510 = vunpack.c.l.b16 %v350
      %v511 = vunpack.c.l.b16 %v351
      %v512 = vunpack.c.l.b16 %v352
      %v513 = vpack.c.b16 %v466, %v465
      %v514 = vpack.c.b16 %v468, %v467
      %v515 = vpack.c.b16 %v470, %v469
      %v516 = vpack.c.b16 %v472, %v471
      %v517 = vpack.c.b16 %v474, %v473
      %v518 = vpack.c.b16 %v476, %v475
      %v519 = vpack.c.b16 %v478, %v477
      %v520 = vpack.c.b16 %v480, %v479
      %v521 = vpack.c.b16 %v482, %v481
      %v522 = vpack.c.b16 %v484, %v483
      %v523 = vpack.c.b16 %v486, %v485
      %v524 = vpack.c.b16 %v488, %v487
      %v525 = vpack.c.b16 %v490, %v489
      %v526 = vpack.c.b16 %v492, %v491
      %v527 = vpack.c.b16 %v494, %v493
      %v528 = vpack.c.b16 %v496, %v495
      %v529 = vpack.c.b16 %v498, %v497
      %v530 = vpack.c.b16 %v500, %v499
      %v531 = vpack.c.b16 %v502, %v501
      %v532 = vpack.c.b16 %v504, %v503
      %v533 = vpack.c.b16 %v506, %v505
      %v534 = vpack.c.b16 %v508, %v507
      %v535 = vpack.c.b16 %v510, %v509
      %v536 = vpack.c.b16 %v512, %v511
      %561 = vmatprep.subr.bf16.mxu0 0
      %562 = vmatpush1.bf16.msra.mxu0 %v513
      %563 = vmatprep.subr.bf16.mxu0 0
      %564 = vmatpush1.bf16.msra.mxu0 %v514
      %565 = vmatprep.subr.bf16.mxu0 0
      %566 = vmatpush1.bf16.msra.mxu0 %v515
      %567 = vmatprep.subr.bf16.mxu0 0
      %568 = vmatpush1.bf16.msra.mxu0 %v516
      %569 = vmatprep.subr.bf16.mxu0 0
      %570 = vmatpush1.bf16.msra.mxu0 %v517
      %571 = vmatprep.subr.bf16.mxu0 0
      %572 = vmatpush1.bf16.msra.mxu0 %v518
      %573 = vmatprep.subr.bf16.mxu0 0
      %574 = vmatpush1.bf16.msra.mxu0 %v519
      %575 = vmatprep.subr.bf16.mxu0 0
      %576 = vmatpush1.bf16.msra.mxu0 %v520
      %577 = vmatprep.subr.bf16.mxu0 0
      %578 = vmatpush1.bf16.msra.mxu0 %v521
      %579 = vmatprep.subr.bf16.mxu0 0
      %580 = vmatpush1.bf16.msra.mxu0 %v522
      %581 = vmatprep.subr.bf16.mxu0 0
      %582 = vmatpush1.bf16.msra.mxu0 %v523
      %583 = vmatprep.subr.bf16.mxu0 0
      %584 = vmatpush1.bf16.msra.mxu0 %v524
      %585 = vmatprep.subr.bf16.mxu0 0
      %586 = vmatpush1.bf16.msra.mxu0 %v525
      %587 = vmatprep.subr.bf16.mxu0 0
      %588 = vmatpush1.bf16.msra.mxu0 %v526
      %589 = vmatprep.subr.bf16.mxu0 0
      %590 = vmatpush1.bf16.msra.mxu0 %v527
      %591 = vmatprep.subr.bf16.mxu0 0
      %592 = vmatpush1.bf16.msra.mxu0 %v528
      %593 = vmatprep.mubr.bf16.mxu0 %v394
      %594 = vmatmul.mubr.bf16.gmra.mrb[0].mxu0 %v393
      %v595 = vpop.f32.mrb[0].mxu0
      %v596 = vadd.f32 0.0, %v595
      %v597 = vpop.f32.mrb[0].mxu0
      %v598 = vpop.f32.mrb[0].mxu0
      %v599 = vadd.f32 0.0, %v598
      %v600 = vpop.f32.mrb[0].mxu0
      %601 = vmatprep.mubr.bf16.mxu0 %v397
      %602 = vmatmul.mubr.bf16.gmra.mrb[0].mxu0 %v396
      %v603 = vpop.f32.mrb[0].mxu0
      %v604 = vadd.f32 0.0, %v603
      %v605 = vpop.f32.mrb[0].mxu0
      %v606 = vpop.f32.mrb[0].mxu0
      %v607 = vadd.f32 0.0, %v606
      %v608 = vpop.f32.mrb[0].mxu0
      %609 = vmatprep.mubr.bf16.mxu0 %v400
      %610 = vmatmul.mubr.bf16.gmra.mrb[0].mxu0 %v399
      %v611 = vpop.f32.mrb[0].mxu0
      %v612 = vadd.f32 0.0, %v611
      %v613 = vpop.f32.mrb[0].mxu0
      %v614 = vpop.f32.mrb[0].mxu0
      %v615 = vadd.f32 0.0, %v614
      %v616 = vpop.f32.mrb[0].mxu0
      %617 = vmatprep.mubr.bf16.mxu0 %v403
      %618 = vmatmul.mubr.bf16.gmra.mrb[0].mxu0 %v402
      %v619 = vpop.f32.mrb[0].mxu0
      %v620 = vadd.f32 0.0, %v619
      %v621 = vpop.f32.mrb[0].mxu0
      %v622 = vpop.f32.mrb[0].mxu0
      %v623 = vadd.f32 0.0, %v622
      %v624 = vpop.f32.mrb[0].mxu0
      %625 = vdwg.mxu0
      %626 = vmatprep.subr.bf16.mxu0 0
      %627 = vmatpush1.bf16.msra.mxu0 %v529
      %628 = vmatprep.subr.bf16.mxu0 0
      %629 = vmatpush1.bf16.msra.mxu0 %v530
      %630 = vmatprep.subr.bf16.mxu0 0
      %631 = vmatpush1.bf16.msra.mxu0 %v531
      %632 = vmatprep.subr.bf16.mxu0 0
      %633 = vmatpush1.bf16.msra.mxu0 %v532
      %634 = vmatprep.subr.bf16.mxu0 0
      %635 = vmatpush1.bf16.msra.mxu0 %v533
      %636 = vmatprep.subr.bf16.mxu0 0
      %637 = vmatpush1.bf16.msra.mxu0 %v534
      %638 = vmatprep.subr.bf16.mxu0 0
      %639 = vmatpush1.bf16.msra.mxu0 %v535
      %640 = vmatprep.subr.bf16.mxu0 0
      %641 = vmatpush1.bf16.msra.mxu0 %v536
      %642 = vmatprep.subr.bf16.mxu0 0
      %643 = vmatpush1.bf16.msra.mxu0 0
      %644 = vmatprep.subr.bf16.mxu0 0
      %645 = vmatpush1.bf16.msra.mxu0 0
      %646 = vmatprep.subr.bf16.mxu0 0
      %647 = vmatpush1.bf16.msra.mxu0 0
      %648 = vmatprep.subr.bf16.mxu0 0
      %649 = vmatpush1.bf16.msra.mxu0 0
      %650 = vmatprep.subr.bf16.mxu0 0
      %651 = vmatpush1.bf16.msra.mxu0 0
      %652 = vmatprep.subr.bf16.mxu0 0
      %653 = vmatpush1.bf16.msra.mxu0 0
      %654 = vmatprep.subr.bf16.mxu0 0
      %655 = vmatpush1.bf16.msra.mxu0 0
      %656 = vmatprep.subr.bf16.mxu0 0
      %657 = vmatpush1.bf16.msra.mxu0 0
      %658 = vmatprep.mubr.bf16.mxu0 0
      %659 = vmatmul.mubr.bf16.gmra.mrb[0].mxu0 %v395
      %v660 = vpop.f32.mrb[0].mxu0
      %v661 = vadd.f32 %v596, %v660
      %v662 = vpop.f32.mrb[0].mxu0
      %v663 = vpop.f32.mrb[0].mxu0
      %v664 = vadd.f32 %v599, %v663
      %v665 = vpop.f32.mrb[0].mxu0
      %666 = vmatprep.mubr.bf16.mxu0 0
      %667 = vmatmul.mubr.bf16.gmra.mrb[0].mxu0 %v398
      %v668 = vpop.f32.mrb[0].mxu0
      %v669 = vadd.f32 %v604, %v668
      %v670 = vpop.f32.mrb[0].mxu0
      %v671 = vpop.f32.mrb[0].mxu0
      %v672 = vadd.f32 %v607, %v671
      %v673 = vpop.f32.mrb[0].mxu0
      %674 = vmatprep.mubr.bf16.mxu0 0
      %675 = vmatmul.mubr.bf16.gmra.mrb[0].mxu0 %v401
      %v676 = vpop.f32.mrb[0].mxu0
      %v677 = vadd.f32 %v612, %v676
      %v678 = vpop.f32.mrb[0].mxu0
      %v679 = vpop.f32.mrb[0].mxu0
      %v680 = vadd.f32 %v615, %v679
      %v681 = vpop.f32.mrb[0].mxu0
      %682 = vmatprep.mubr.bf16.mxu0 0
      %683 = vmatmul.mubr.bf16.gmra.mrb[0].mxu0 %v404
      %v684 = vpop.f32.mrb[0].mxu0
      %v685 = vadd.f32 %v620, %v684
      %v686 = vpop.f32.mrb[0].mxu0
      %v687 = vpop.f32.mrb[0].mxu0
      %v688 = vadd.f32 %v623, %v687
      %v689 = vpop.f32.mrb[0].mxu0
      %690 = vdwg.mxu0
      %v707 = vunpack.c.l.b16 %v223
      %v708 = vunpack.c.h.b16 %v223
      %v709 = vunpack.c.l.b16 %v224
      %v710 = vunpack.c.l.b16 %v225
      %v711 = vunpack.c.h.b16 %v225
      %v712 = vunpack.c.l.b16 %v226
      %v713 = vunpack.c.l.b16 %v227
      %v714 = vunpack.c.h.b16 %v227
      %v715 = vunpack.c.l.b16 %v228
      %v716 = vunpack.c.l.b16 %v229
      %v717 = vunpack.c.h.b16 %v229
      %v718 = vunpack.c.l.b16 %v230
      %v719 = vunpack.c.l.b16 %v231
      %v720 = vunpack.c.h.b16 %v231
      %v721 = vunpack.c.l.b16 %v232
      %v722 = vunpack.c.l.b16 %v233
      %v723 = vunpack.c.h.b16 %v233
      %v724 = vunpack.c.l.b16 %v234
      %v725 = vunpack.c.l.b16 %v235
      %v726 = vunpack.c.h.b16 %v235
      %v727 = vunpack.c.l.b16 %v236
      %v728 = vunpack.c.l.b16 %v237
      %v729 = vunpack.c.h.b16 %v237
      %v730 = vunpack.c.l.b16 %v238
      %v731 = vpack.c.b16 %v710, %v707
      %v732 = vpack.c.b16 %v711, %v708
      %v733 = vpack.c.b16 %v712, %v709
      %v734 = vpack.c.b16 %v716, %v713
      %v735 = vpack.c.b16 %v717, %v714
      %v736 = vpack.c.b16 %v718, %v715
      %v737 = vpack.c.b16 %v722, %v719
      %v738 = vpack.c.b16 %v723, %v720
      %v739 = vpack.c.b16 %v724, %v721
      %v740 = vpack.c.b16 %v728, %v725
      %v741 = vpack.c.b16 %v729, %v726
      %v742 = vpack.c.b16 %v730, %v727
      %v803 = vunpack.c.l.b16 %v239
      %v804 = vunpack.c.l.b16 %v240
      %v805 = vunpack.c.l.b16 %v241
      %v806 = vunpack.c.l.b16 %v242
      %v807 = vunpack.c.l.b16 %v243
      %v808 = vunpack.c.l.b16 %v244
      %v809 = vunpack.c.l.b16 %v245
      %v810 = vunpack.c.l.b16 %v246
      %v811 = vunpack.c.l.b16 %v247
      %v812 = vunpack.c.l.b16 %v248
      %v813 = vunpack.c.l.b16 %v249
      %v814 = vunpack.c.l.b16 %v250
      %v815 = vunpack.c.l.b16 %v251
      %v816 = vunpack.c.l.b16 %v252
      %v817 = vunpack.c.l.b16 %v253
      %v818 = vunpack.c.l.b16 %v254
      %v819 = vunpack.c.l.b16 %v255
      %v820 = vunpack.c.l.b16 %v256
      %v821 = vunpack.c.l.b16 %v257
      %v822 = vunpack.c.l.b16 %v258
      %v823 = vunpack.c.l.b16 %v259
      %v824 = vunpack.c.l.b16 %v260
      %v825 = vunpack.c.l.b16 %v261
      %v826 = vunpack.c.l.b16 %v262
      %v827 = vunpack.c.l.b16 %v263
      %v828 = vunpack.c.l.b16 %v264
      %v829 = vunpack.c.l.b16 %v265
      %v830 = vunpack.c.l.b16 %v266
      %v831 = vunpack.c.l.b16 %v267
      %v832 = vunpack.c.l.b16 %v268
      %v833 = vunpack.c.l.b16 %v269
      %v834 = vunpack.c.l.b16 %v270
      %v835 = vunpack.c.l.b16 %v271
      %v836 = vunpack.c.l.b16 %v272
      %v837 = vunpack.c.l.b16 %v273
      %v838 = vunpack.c.l.b16 %v274
      %v839 = vunpack.c.l.b16 %v275
      %v840 = vunpack.c.l.b16 %v276
      %v841 = vunpack.c.l.b16 %v277
      %v842 = vunpack.c.l.b16 %v278
      %v843 = vunpack.c.l.b16 %v279
      %v844 = vunpack.c.l.b16 %v280
      %v845 = vunpack.c.l.b16 %v281
      %v846 = vunpack.c.l.b16 %v282
      %v847 = vunpack.c.l.b16 %v283
      %v848 = vunpack.c.l.b16 %v284
      %v849 = vunpack.c.l.b16 %v285
      %v850 = vunpack.c.l.b16 %v286
      %v851 = vpack.c.b16 %v804, %v803
      %v852 = vpack.c.b16 %v806, %v805
      %v853 = vpack.c.b16 %v808, %v807
      %v854 = vpack.c.b16 %v810, %v809
      %v855 = vpack.c.b16 %v812, %v811
      %v856 = vpack.c.b16 %v814, %v813
      %v857 = vpack.c.b16 %v816, %v815
      %v858 = vpack.c.b16 %v818, %v817
      %v859 = vpack.c.b16 %v820, %v819
      %v860 = vpack.c.b16 %v822, %v821
      %v861 = vpack.c.b16 %v824, %v823
      %v862 = vpack.c.b16 %v826, %v825
      %v863 = vpack.c.b16 %v828, %v827
      %v864 = vpack.c.b16 %v830, %v829
      %v865 = vpack.c.b16 %v832, %v831
      %v866 = vpack.c.b16 %v834, %v833
      %v867 = vpack.c.b16 %v836, %v835
      %v868 = vpack.c.b16 %v838, %v837
      %v869 = vpack.c.b16 %v840, %v839
      %v870 = vpack.c.b16 %v842, %v841
      %v871 = vpack.c.b16 %v844, %v843
      %v872 = vpack.c.b16 %v846, %v845
      %v873 = vpack.c.b16 %v848, %v847
      %v874 = vpack.c.b16 %v850, %v849
      %899 = vmatprep.subr.bf16.mxu0 0
      %900 = vmatpush1.bf16.msra.mxu0 %v851
      %901 = vmatprep.subr.bf16.mxu0 0
      %902 = vmatpush1.bf16.msra.mxu0 %v852
      %903 = vmatprep.subr.bf16.mxu0 0
      %904 = vmatpush1.bf16.msra.mxu0 %v853
      %905 = vmatprep.subr.bf16.mxu0 0
      %906 = vmatpush1.bf16.msra.mxu0 %v854
      %907 = vmatprep.subr.bf16.mxu0 0
      %908 = vmatpush1.bf16.msra.mxu0 %v855
      %909 = vmatprep.subr.bf16.mxu0 0
      %910 = vmatpush1.bf16.msra.mxu0 %v856
      %911 = vmatprep.subr.bf16.mxu0 0
      %912 = vmatpush1.bf16.msra.mxu0 %v857
      %913 = vmatprep.subr.bf16.mxu0 0
      %914 = vmatpush1.bf16.msra.mxu0 %v858
      %915 = vmatprep.subr.bf16.mxu0 0
      %916 = vmatpush1.bf16.msra.mxu0 %v859
      %917 = vmatprep.subr.bf16.mxu0 0
      %918 = vmatpush1.bf16.msra.mxu0 %v860
      %919 = vmatprep.subr.bf16.mxu0 0
      %920 = vmatpush1.bf16.msra.mxu0 %v861
      %921 = vmatprep.subr.bf16.mxu0 0
      %922 = vmatpush1.bf16.msra.mxu0 %v862
      %923 = vmatprep.subr.bf16.mxu0 0
      %924 = vmatpush1.bf16.msra.mxu0 %v863
      %925 = vmatprep.subr.bf16.mxu0 0
      %926 = vmatpush1.bf16.msra.mxu0 %v864
      %927 = vmatprep.subr.bf16.mxu0 0
      %928 = vmatpush1.bf16.msra.mxu0 %v865
      %929 = vmatprep.subr.bf16.mxu0 0
      %930 = vmatpush1.bf16.msra.mxu0 %v866
      %931 = vmatprep.mubr.bf16.mxu0 %v732
      %932 = vmatmul.mubr.bf16.gmra.mrb[0].mxu0 %v731
      %v933 = vpop.f32.mrb[0].mxu0
      %v934 = vadd.f32 %v661, %v933
      %v935 = vpop.f32.mrb[0].mxu0
      %v936 = vpop.f32.mrb[0].mxu0
      %v937 = vadd.f32 %v664, %v936
      %v938 = vpop.f32.mrb[0].mxu0
      %939 = vmatprep.mubr.bf16.mxu0 %v735
      %940 = vmatmul.mubr.bf16.gmra.mrb[0].mxu0 %v734
      %v941 = vpop.f32.mrb[0].mxu0
      %v942 = vadd.f32 %v669, %v941
      %v943 = vpop.f32.mrb[0].mxu0
      %v944 = vpop.f32.mrb[0].mxu0
      %v945 = vadd.f32 %v672, %v944
      %v946 = vpop.f32.mrb[0].mxu0
      %947 = vmatprep.mubr.bf16.mxu0 %v738
      %948 = vmatmul.mubr.bf16.gmra.mrb[0].mxu0 %v737
      %v949 = vpop.f32.mrb[0].mxu0
      %v950 = vadd.f32 %v677, %v949
      %v951 = vpop.f32.mrb[0].mxu0
      %v952 = vpop.f32.mrb[0].mxu0
      %v953 = vadd.f32 %v680, %v952
      %v954 = vpop.f32.mrb[0].mxu0
      %955 = vmatprep.mubr.bf16.mxu0 %v741
      %956 = vmatmul.mubr.bf16.gmra.mrb[0].mxu0 %v740
      %v957 = vpop.f32.mrb[0].mxu0
      %v958 = vadd.f32 %v685, %v957
      %v959 = vpop.f32.mrb[0].mxu0
      %v960 = vpop.f32.mrb[0].mxu0
      %v961 = vadd.f32 %v688, %v960
      %v962 = vpop.f32.mrb[0].mxu0
      %963 = vdwg.mxu0
      %964 = vmatprep.subr.bf16.mxu0 0
      %965 = vmatpush1.bf16.msra.mxu0 %v867
      %966 = vmatprep.subr.bf16.mxu0 0
      %967 = vmatpush1.bf16.msra.mxu0 %v868
      %968 = vmatprep.subr.bf16.mxu0 0
      %969 = vmatpush1.bf16.msra.mxu0 %v869
      %970 = vmatprep.subr.bf16.mxu0 0
      %971 = vmatpush1.bf16.msra.mxu0 %v870
      %972 = vmatprep.subr.bf16.mxu0 0
      %973 = vmatpush1.bf16.msra.mxu0 %v871
      %974 = vmatprep.subr.bf16.mxu0 0
      %975 = vmatpush1.bf16.msra.mxu0 %v872
      %976 = vmatprep.subr.bf16.mxu0 0
      %977 = vmatpush1.bf16.msra.mxu0 %v873
      %978 = vmatprep.subr.bf16.mxu0 0
      %979 = vmatpush1.bf16.msra.mxu0 %v874
      %980 = vmatprep.subr.bf16.mxu0 0
      %981 = vmatpush1.bf16.msra.mxu0 0
      %982 = vmatprep.subr.bf16.mxu0 0
      %983 = vmatpush1.bf16.msra.mxu0 0
      %984 = vmatprep.subr.bf16.mxu0 0
      %985 = vmatpush1.bf16.msra.mxu0 0
      %986 = vmatprep.subr.bf16.mxu0 0
      %987 = vmatpush1.bf16.msra.mxu0 0
      %988 = vmatprep.subr.bf16.mxu0 0
      %989 = vmatpush1.bf16.msra.mxu0 0
      %990 = vmatprep.subr.bf16.mxu0 0
      %991 = vmatpush1.bf16.msra.mxu0 0
      %992 = vmatprep.subr.bf16.mxu0 0
      %993 = vmatpush1.bf16.msra.mxu0 0
      %994 = vmatprep.subr.bf16.mxu0 0
      %995 = vmatpush1.bf16.msra.mxu0 0
      %996 = vmatprep.mubr.bf16.mxu0 0
      %997 = vmatmul.mubr.bf16.gmra.mrb[0].mxu0 %v733
      %v998 = vpop.f32.mrb[0].mxu0
      %v999 = vadd.f32 %v934, %v998
      %v1000 = vpop.f32.mrb[0].mxu0
      %v1001 = vpop.f32.mrb[0].mxu0
      %v1002 = vadd.f32 %v937, %v1001
      %v1003 = vpop.f32.mrb[0].mxu0
      %1004 = vmatprep.mubr.bf16.mxu0 0
      %1005 = vmatmul.mubr.bf16.gmra.mrb[0].mxu0 %v736
      %v1006 = vpop.f32.mrb[0].mxu0
      %v1007 = vadd.f32 %v942, %v1006
      %v1008 = vpop.f32.mrb[0].mxu0
      %v1009 = vpop.f32.mrb[0].mxu0
      %v1010 = vadd.f32 %v945, %v1009
      %v1011 = vpop.f32.mrb[0].mxu0
      %1012 = vmatprep.mubr.bf16.mxu0 0
      %1013 = vmatmul.mubr.bf16.gmra.mrb[0].mxu0 %v739
      %v1014 = vpop.f32.mrb[0].mxu0
      %v1015 = vadd.f32 %v950, %v1014
      %v1016 = vpop.f32.mrb[0].mxu0
      %v1017 = vpop.f32.mrb[0].mxu0
      %v1018 = vadd.f32 %v953, %v1017
      %v1019 = vpop.f32.mrb[0].mxu0
      %1020 = vmatprep.mubr.bf16.mxu0 0
      %1021 = vmatmul.mubr.bf16.gmra.mrb[0].mxu0 %v742
      %v1022 = vpop.f32.mrb[0].mxu0
      %v1023 = vadd.f32 %v958, %v1022
      %v1024 = vpop.f32.mrb[0].mxu0
      %v1025 = vpop.f32.mrb[0].mxu0
      %v1026 = vadd.f32 %v961, %v1025
      %v1027 = vpop.f32.mrb[0].mxu0
      %1028 = vdwg.mxu0
      %s1029 = scalar_lea.vmem %s206, 24
      %v1030 = vld [vmem:[%s1029] sm:$0xff]
      %v1031 = vld [vmem:[%s1029 + $0x8] sm:$0xf]
      %v1032 = vld [vmem:[%s1029 + $0xc] sm:$0xff]
      %v1033 = vld [vmem:[%s1029 + $0x14] sm:$0xf]
      %v1034 = vld [vmem:[%s1029 + $0x18] sm:$0xff]
      %v1035 = vld [vmem:[%s1029 + $0x20] sm:$0xf]
      %v1036 = vld [vmem:[%s1029 + $0x24] sm:$0xff]
      %v1037 = vld [vmem:[%s1029 + $0x2c] sm:$0xf]
      %v1038 = vld [vmem:[%s1029 + $0x30] sm:$0xff]
      %v1039 = vld [vmem:[%s1029 + $0x38] sm:$0xf]
      %v1040 = vld [vmem:[%s1029 + $0x3c] sm:$0xff]
      %v1041 = vld [vmem:[%s1029 + $0x44] sm:$0xf]
      %v1042 = vld [vmem:[%s1029 + $0x48] sm:$0xff]
      %v1043 = vld [vmem:[%s1029 + $0x50] sm:$0xf]
      %v1044 = vld [vmem:[%s1029 + $0x54] sm:$0xff]
      %v1045 = vld [vmem:[%s1029 + $0x5c] sm:$0xf]
      %s1046 = scalar_lea.vmem %s210, 384
      %v1047 = vld [vmem:[%s1046] sm:$0xf]
      %v1048 = vld [vmem:[%s1046 + $0x4] sm:$0xf]
      %v1049 = vld [vmem:[%s1046 + $0x8] sm:$0xf]
      %v1050 = vld [vmem:[%s1046 + $0xc] sm:$0xf]
      %v1051 = vld [vmem:[%s1046 + $0x10] sm:$0xf]
      %v1052 = vld [vmem:[%s1046 + $0x14] sm:$0xf]
      %v1053 = vld [vmem:[%s1046 + $0x18] sm:$0xf]
      %v1054 = vld [vmem:[%s1046 + $0x1c] sm:$0xf]
      %v1055 = vld [vmem:[%s1046 + $0x20] sm:$0xf]
      %v1056 = vld [vmem:[%s1046 + $0x24] sm:$0xf]
      %v1057 = vld [vmem:[%s1046 + $0x28] sm:$0xf]
      %v1058 = vld [vmem:[%s1046 + $0x2c] sm:$0xf]
      %v1059 = vld [vmem:[%s1046 + $0x30] sm:$0xf]
      %v1060 = vld [vmem:[%s1046 + $0x34] sm:$0xf]
      %v1061 = vld [vmem:[%s1046 + $0x38] sm:$0xf]
      %v1062 = vld [vmem:[%s1046 + $0x3c] sm:$0xf]
      %v1063 = vld [vmem:[%s1046 + $0x40] sm:$0xf]
      %v1064 = vld [vmem:[%s1046 + $0x44] sm:$0xf]
      %v1065 = vld [vmem:[%s1046 + $0x48] sm:$0xf]
      %v1066 = vld [vmem:[%s1046 + $0x4c] sm:$0xf]
      %v1067 = vld [vmem:[%s1046 + $0x50] sm:$0xf]
      %v1068 = vld [vmem:[%s1046 + $0x54] sm:$0xf]
      %v1069 = vld [vmem:[%s1046 + $0x58] sm:$0xf]
      %v1070 = vld [vmem:[%s1046 + $0x5c] sm:$0xf]
      %v1071 = vld [vmem:[%s1046 + $0x60] sm:$0xf]
      %v1072 = vld [vmem:[%s1046 + $0x64] sm:$0xf]
      %v1073 = vld [vmem:[%s1046 + $0x68] sm:$0xf]
      %v1074 = vld [vmem:[%s1046 + $0x6c] sm:$0xf]
      %v1075 = vld [vmem:[%s1046 + $0x70] sm:$0xf]
      %v1076 = vld [vmem:[%s1046 + $0x74] sm:$0xf]
      %v1077 = vld [vmem:[%s1046 + $0x78] sm:$0xf]
      %v1078 = vld [vmem:[%s1046 + $0x7c] sm:$0xf]
      %v1079 = vld [vmem:[%s1046 + $0x80] sm:$0xf]
      %v1080 = vld [vmem:[%s1046 + $0x84] sm:$0xf]
      %v1081 = vld [vmem:[%s1046 + $0x88] sm:$0xf]
      %v1082 = vld [vmem:[%s1046 + $0x8c] sm:$0xf]
      %v1083 = vld [vmem:[%s1046 + $0x90] sm:$0xf]
      %v1084 = vld [vmem:[%s1046 + $0x94] sm:$0xf]
      %v1085 = vld [vmem:[%s1046 + $0x98] sm:$0xf]
      %v1086 = vld [vmem:[%s1046 + $0x9c] sm:$0xf]
      %v1087 = vld [vmem:[%s1046 + $0xa0] sm:$0xf]
      %v1088 = vld [vmem:[%s1046 + $0xa4] sm:$0xf]
      %v1089 = vld [vmem:[%s1046 + $0xa8] sm:$0xf]
      %v1090 = vld [vmem:[%s1046 + $0xac] sm:$0xf]
      %v1091 = vld [vmem:[%s1046 + $0xb0] sm:$0xf]
      %v1092 = vld [vmem:[%s1046 + $0xb4] sm:$0xf]
      %v1093 = vld [vmem:[%s1046 + $0xb8] sm:$0xf]
      %v1094 = vld [vmem:[%s1046 + $0xbc] sm:$0xf]
      %v1111 = vunpack.c.l.b16 %v1030
      %v1112 = vunpack.c.h.b16 %v1030
      %v1113 = vunpack.c.l.b16 %v1031
      %v1114 = vunpack.c.l.b16 %v1032
      %v1115 = vunpack.c.h.b16 %v1032
      %v1116 = vunpack.c.l.b16 %v1033
      %v1117 = vunpack.c.l.b16 %v1034
      %v1118 = vunpack.c.h.b16 %v1034
      %v1119 = vunpack.c.l.b16 %v1035
      %v1120 = vunpack.c.l.b16 %v1036
      %v1121 = vunpack.c.h.b16 %v1036
      %v1122 = vunpack.c.l.b16 %v1037
      %v1123 = vunpack.c.l.b16 %v1038
      %v1124 = vunpack.c.h.b16 %v1038
      %v1125 = vunpack.c.l.b16 %v1039
      %v1126 = vunpack.c.l.b16 %v1040
      %v1127 = vunpack.c.h.b16 %v1040
      %v1128 = vunpack.c.l.b16 %v1041
      %v1129 = vunpack.c.l.b16 %v1042
      %v1130 = vunpack.c.h.b16 %v1042
      %v1131 = vunpack.c.l.b16 %v1043
      %v1132 = vunpack.c.l.b16 %v1044
      %v1133 = vunpack.c.h.b16 %v1044
      %v1134 = vunpack.c.l.b16 %v1045
      %v1135 = vpack.c.b16 %v1114, %v1111
      %v1136 = vpack.c.b16 %v1115, %v1112
      %v1137 = vpack.c.b16 %v1116, %v1113
      %v1138 = vpack.c.b16 %v1120, %v1117
      %v1139 = vpack.c.b16 %v1121, %v1118
      %v1140 = vpack.c.b16 %v1122, %v1119
      %v1141 = vpack.c.b16 %v1126, %v1123
      %v1142 = vpack.c.b16 %v1127, %v1124
      %v1143 = vpack.c.b16 %v1128, %v1125
      %v1144 = vpack.c.b16 %v1132, %v1129
      %v1145 = vpack.c.b16 %v1133, %v1130
      %v1146 = vpack.c.b16 %v1134, %v1131
      %v1207 = vunpack.c.l.b16 %v1047
      %v1208 = vunpack.c.l.b16 %v1048
      %v1209 = vunpack.c.l.b16 %v1049
      %v1210 = vunpack.c.l.b16 %v1050
      %v1211 = vunpack.c.l.b16 %v1051
      %v1212 = vunpack.c.l.b16 %v1052
      %v1213 = vunpack.c.l.b16 %v1053
      %v1214 = vunpack.c.l.b16 %v1054
      %v1215 = vunpack.c.l.b16 %v1055
      %v1216 = vunpack.c.l.b16 %v1056
      %v1217 = vunpack.c.l.b16 %v1057
      %v1218 = vunpack.c.l.b16 %v1058
      %v1219 = vunpack.c.l.b16 %v1059
      %v1220 = vunpack.c.l.b16 %v1060
      %v1221 = vunpack.c.l.b16 %v1061
      %v1222 = vunpack.c.l.b16 %v1062
      %v1223 = vunpack.c.l.b16 %v1063
      %v1224 = vunpack.c.l.b16 %v1064
      %v1225 = vunpack.c.l.b16 %v1065
      %v1226 = vunpack.c.l.b16 %v1066
      %v1227 = vunpack.c.l.b16 %v1067
      %v1228 = vunpack.c.l.b16 %v1068
      %v1229 = vunpack.c.l.b16 %v1069
      %v1230 = vunpack.c.l.b16 %v1070
      %v1231 = vunpack.c.l.b16 %v1071
      %v1232 = vunpack.c.l.b16 %v1072
      %v1233 = vunpack.c.l.b16 %v1073
      %v1234 = vunpack.c.l.b16 %v1074
      %v1235 = vunpack.c.l.b16 %v1075
      %v1236 = vunpack.c.l.b16 %v1076
      %v1237 = vunpack.c.l.b16 %v1077
      %v1238 = vunpack.c.l.b16 %v1078
      %v1239 = vunpack.c.l.b16 %v1079
      %v1240 = vunpack.c.l.b16 %v1080
      %v1241 = vunpack.c.l.b16 %v1081
      %v1242 = vunpack.c.l.b16 %v1082
      %v1243 = vunpack.c.l.b16 %v1083
      %v1244 = vunpack.c.l.b16 %v1084
      %v1245 = vunpack.c.l.b16 %v1085
      %v1246 = vunpack.c.l.b16 %v1086
      %v1247 = vunpack.c.l.b16 %v1087
      %v1248 = vunpack.c.l.b16 %v1088
      %v1249 = vunpack.c.l.b16 %v1089
      %v1250 = vunpack.c.l.b16 %v1090
      %v1251 = vunpack.c.l.b16 %v1091
      %v1252 = vunpack.c.l.b16 %v1092
      %v1253 = vunpack.c.l.b16 %v1093
      %v1254 = vunpack.c.l.b16 %v1094
      %v1255 = vpack.c.b16 %v1208, %v1207
      %v1256 = vpack.c.b16 %v1210, %v1209
      %v1257 = vpack.c.b16 %v1212, %v1211
      %v1258 = vpack.c.b16 %v1214, %v1213
      %v1259 = vpack.c.b16 %v1216, %v1215
      %v1260 = vpack.c.b16 %v1218, %v1217
      %v1261 = vpack.c.b16 %v1220, %v1219
      %v1262 = vpack.c.b16 %v1222, %v1221
      %v1263 = vpack.c.b16 %v1224, %v1223
      %v1264 = vpack.c.b16 %v1226, %v1225
      %v1265 = vpack.c.b16 %v1228, %v1227
      %v1266 = vpack.c.b16 %v1230, %v1229
      %v1267 = vpack.c.b16 %v1232, %v1231
      %v1268 = vpack.c.b16 %v1234, %v1233
      %v1269 = vpack.c.b16 %v1236, %v1235
      %v1270 = vpack.c.b16 %v1238, %v1237
      %v1271 = vpack.c.b16 %v1240, %v1239
      %v1272 = vpack.c.b16 %v1242, %v1241
      %v1273 = vpack.c.b16 %v1244, %v1243
      %v1274 = vpack.c.b16 %v1246, %v1245
      %v1275 = vpack.c.b16 %v1248, %v1247
      %v1276 = vpack.c.b16 %v1250, %v1249
      %v1277 = vpack.c.b16 %v1252, %v1251
      %v1278 = vpack.c.b16 %v1254, %v1253
      %1303 = vmatprep.subr.bf16.mxu0 0
      %1304 = vmatpush1.bf16.msra.mxu0 %v1255
      %1305 = vmatprep.subr.bf16.mxu0 0
      %1306 = vmatpush1.bf16.msra.mxu0 %v1256
      %1307 = vmatprep.subr.bf16.mxu0 0
      %1308 = vmatpush1.bf16.msra.mxu0 %v1257
      %1309 = vmatprep.subr.bf16.mxu0 0
      %1310 = vmatpush1.bf16.msra.mxu0 %v1258
      %1311 = vmatprep.subr.bf16.mxu0 0
      %1312 = vmatpush1.bf16.msra.mxu0 %v1259
      %1313 = vmatprep.subr.bf16.mxu0 0
      %1314 = vmatpush1.bf16.msra.mxu0 %v1260
      %1315 = vmatprep.subr.bf16.mxu0 0
      %1316 = vmatpush1.bf16.msra.mxu0 %v1261
      %1317 = vmatprep.subr.bf16.mxu0 0
      %1318 = vmatpush1.bf16.msra.mxu0 %v1262
      %1319 = vmatprep.subr.bf16.mxu0 0
      %1320 = vmatpush1.bf16.msra.mxu0 %v1263
      %1321 = vmatprep.subr.bf16.mxu0 0
      %1322 = vmatpush1.bf16.msra.mxu0 %v1264
      %1323 = vmatprep.subr.bf16.mxu0 0
      %1324 = vmatpush1.bf16.msra.mxu0 %v1265
      %1325 = vmatprep.subr.bf16.mxu0 0
      %1326 = vmatpush1.bf16.msra.mxu0 %v1266
      %1327 = vmatprep.subr.bf16.mxu0 0
      %1328 = vmatpush1.bf16.msra.mxu0 %v1267
      %1329 = vmatprep.subr.bf16.mxu0 0
      %1330 = vmatpush1.bf16.msra.mxu0 %v1268
      %1331 = vmatprep.subr.bf16.mxu0 0
      %1332 = vmatpush1.bf16.msra.mxu0 %v1269
      %1333 = vmatprep.subr.bf16.mxu0 0
      %1334 = vmatpush1.bf16.msra.mxu0 %v1270
      %1335 = vmatprep.mubr.bf16.mxu0 %v1136
      %1336 = vmatmul.mubr.bf16.gmra.mrb[0].mxu0 %v1135
      %v1337 = vpop.f32.mrb[0].mxu0
      %v1338 = vadd.f32 0.0, %v1337
      %v1339 = vpop.f32.mrb[0].mxu0
      %v1340 = vpop.f32.mrb[0].mxu0
      %v1341 = vadd.f32 0.0, %v1340
      %v1342 = vpop.f32.mrb[0].mxu0
      %1343 = vmatprep.mubr.bf16.mxu0 %v1139
      %1344 = vmatmul.mubr.bf16.gmra.mrb[0].mxu0 %v1138
      %v1345 = vpop.f32.mrb[0].mxu0
      %v1346 = vadd.f32 0.0, %v1345
      %v1347 = vpop.f32.mrb[0].mxu0
      %v1348 = vpop.f32.mrb[0].mxu0
      %v1349 = vadd.f32 0.0, %v1348
      %v1350 = vpop.f32.mrb[0].mxu0
      %1351 = vmatprep.mubr.bf16.mxu0 %v1142
      %1352 = vmatmul.mubr.bf16.gmra.mrb[0].mxu0 %v1141
      %v1353 = vpop.f32.mrb[0].mxu0
      %v1354 = vadd.f32 0.0, %v1353
      %v1355 = vpop.f32.mrb[0].mxu0
      %v1356 = vpop.f32.mrb[0].mxu0
      %v1357 = vadd.f32 0.0, %v1356
      %v1358 = vpop.f32.mrb[0].mxu0
      %1359 = vmatprep.mubr.bf16.mxu0 %v1145
      %1360 = vmatmul.mubr.bf16.gmra.mrb[0].mxu0 %v1144
      %v1361 = vpop.f32.mrb[0].mxu0
      %v1362 = vadd.f32 0.0, %v1361
      %v1363 = vpop.f32.mrb[0].mxu0
      %v1364 = vpop.f32.mrb[0].mxu0
      %v1365 = vadd.f32 0.0, %v1364
      %v1366 = vpop.f32.mrb[0].mxu0
      %1367 = vdwg.mxu0
      %1368 = vmatprep.subr.bf16.mxu0 0
      %1369 = vmatpush1.bf16.msra.mxu0 %v1271
      %1370 = vmatprep.subr.bf16.mxu0 0
      %1371 = vmatpush1.bf16.msra.mxu0 %v1272
      %1372 = vmatprep.subr.bf16.mxu0 0
      %1373 = vmatpush1.bf16.msra.mxu0 %v1273
      %1374 = vmatprep.subr.bf16.mxu0 0
      %1375 = vmatpush1.bf16.msra.mxu0 %v1274
      %1376 = vmatprep.subr.bf16.mxu0 0
      %1377 = vmatpush1.bf16.msra.mxu0 %v1275
      %1378 = vmatprep.subr.bf16.mxu0 0
      %1379 = vmatpush1.bf16.msra.mxu0 %v1276
      %1380 = vmatprep.subr.bf16.mxu0 0
      %1381 = vmatpush1.bf16.msra.mxu0 %v1277
      %1382 = vmatprep.subr.bf16.mxu0 0
      %1383 = vmatpush1.bf16.msra.mxu0 %v1278
      %1384 = vmatprep.subr.bf16.mxu0 0
      %1385 = vmatpush1.bf16.msra.mxu0 0
      %1386 = vmatprep.subr.bf16.mxu0 0
      %1387 = vmatpush1.bf16.msra.mxu0 0
      %1388 = vmatprep.subr.bf16.mxu0 0
      %1389 = vmatpush1.bf16.msra.mxu0 0
      %1390 = vmatprep.subr.bf16.mxu0 0
      %1391 = vmatpush1.bf16.msra.mxu0 0
      %1392 = vmatprep.subr.bf16.mxu0 0
      %1393 = vmatpush1.bf16.msra.mxu0 0
      %1394 = vmatprep.subr.bf16.mxu0 0
      %1395 = vmatpush1.bf16.msra.mxu0 0
      %1396 = vmatprep.subr.bf16.mxu0 0
      %1397 = vmatpush1.bf16.msra.mxu0 0
      %1398 = vmatprep.subr.bf16.mxu0 0
      %1399 = vmatpush1.bf16.msra.mxu0 0
      %1400 = vmatprep.mubr.bf16.mxu0 0
      %1401 = vmatmul.mubr.bf16.gmra.mrb[0].mxu0 %v1137
      %v1402 = vpop.f32.mrb[0].mxu0
      %v1403 = vadd.f32 %v1338, %v1402
      %v1404 = vpop.f32.mrb[0].mxu0
      %v1405 = vpop.f32.mrb[0].mxu0
      %v1406 = vadd.f32 %v1341, %v1405
      %v1407 = vpop.f32.mrb[0].mxu0
      %1408 = vmatprep.mubr.bf16.mxu0 0
      %1409 = vmatmul.mubr.bf16.gmra.mrb[0].mxu0 %v1140
      %v1410 = vpop.f32.mrb[0].mxu0
      %v1411 = vadd.f32 %v1346, %v1410
      %v1412 = vpop.f32.mrb[0].mxu0
      %v1413 = vpop.f32.mrb[0].mxu0
      %v1414 = vadd.f32 %v1349, %v1413
      %v1415 = vpop.f32.mrb[0].mxu0
      %1416 = vmatprep.mubr.bf16.mxu0 0
      %1417 = vmatmul.mubr.bf16.gmra.mrb[0].mxu0 %v1143
      %v1418 = vpop.f32.mrb[0].mxu0
      %v1419 = vadd.f32 %v1354, %v1418
      %v1420 = vpop.f32.mrb[0].mxu0
      %v1421 = vpop.f32.mrb[0].mxu0
      %v1422 = vadd.f32 %v1357, %v1421
      %v1423 = vpop.f32.mrb[0].mxu0
      %1424 = vmatprep.mubr.bf16.mxu0 0
      %1425 = vmatmul.mubr.bf16.gmra.mrb[0].mxu0 %v1146
      %v1426 = vpop.f32.mrb[0].mxu0
      %v1427 = vadd.f32 %v1362, %v1426
      %v1428 = vpop.f32.mrb[0].mxu0
      %v1429 = vpop.f32.mrb[0].mxu0
      %v1430 = vadd.f32 %v1365, %v1429
      %v1431 = vpop.f32.mrb[0].mxu0
      %1432 = vdwg.mxu0
      %v1433 = vadd.f32 %v999, %v1403
      %v1434 = vadd.f32 %v1002, %v1406
      %v1435 = vadd.f32 %v1007, %v1411
      %v1436 = vadd.f32 %v1010, %v1414
      %v1437 = vadd.f32 %v1015, %v1419
      %v1438 = vadd.f32 %v1018, %v1422
      %v1439 = vadd.f32 %v1023, %v1427
      %v1440 = vadd.f32 %v1026, %v1430
      %v1441 = vld [vmem:[%s213] sm:$0x1]
      %v1443 = vlaneseq
      %v1444 = vshrl.u32 %v1443, 7
      %v1445 = vsub.s32 0, %v1444
      %v1446 = vrot.slane %v1441, %v1445
      %v1448 = vadd.f32 %v1433, %v1446
      %v1449 = vadd.f32 %v1434, %v1446
      %v1450 = vadd.f32 %v1435, %v1446
      %v1451 = vadd.f32 %v1436, %v1446
      %v1452 = vadd.f32 %v1437, %v1446
      %v1453 = vadd.f32 %v1438, %v1446
      %v1454 = vadd.f32 %v1439, %v1446
      %v1455 = vadd.f32 %v1440, %v1446
      %v1456 = vmax.f32 %v1448, 0.0
      %v1457 = vmax.f32 %v1449, 0.0
      %v1458 = vmax.f32 %v1450, 0.0
      %v1459 = vmax.f32 %v1451, 0.0
      %v1460 = vmax.f32 %v1452, 0.0
      %v1461 = vmax.f32 %v1453, 0.0
      %v1462 = vmax.f32 %v1454, 0.0
      %v1463 = vmax.f32 %v1455, 0.0
      %v1464 = vpack.c.bf16 %v1456, %v1456
      %v1465 = vpack.c.bf16 %v1457, %v1457
      %v1466 = vpack.c.bf16 %v1458, %v1458
      %v1467 = vpack.c.bf16 %v1459, %v1459
      %v1468 = vpack.c.bf16 %v1460, %v1460
      %v1469 = vpack.c.bf16 %v1461, %v1461
      %v1470 = vpack.c.bf16 %v1462, %v1462
      %v1471 = vpack.c.bf16 %v1463, %v1463
      %1472 = vst [vmem:[%s221] sm:$0xf] %v1464
      %1473 = vst [vmem:[%s221 + $0x4] sm:$0xf] %v1465
      %1474 = vst [vmem:[%s221 + $0x8] sm:$0xf] %v1466
      %1475 = vst [vmem:[%s221 + $0xc] sm:$0xf] %v1467
      %1476 = vst [vmem:[%s221 + $0x10] sm:$0xf] %v1468
      %1477 = vst [vmem:[%s221 + $0x14] sm:$0xf] %v1469
      %1478 = vst [vmem:[%s221 + $0x18] sm:$0xf] %v1470
      %1479 = vst [vmem:[%s221 + $0x1c] sm:$0xf] %v1471
      %p1480 = scmp.lt.s32.totalorder %s18, 1
      %s1481 = scalar_select %p1480, %s18, 1
      %p1482 = scmp.lt.s32.totalorder %s19, 0
      %s1483 = scalar_select %p1482, %s19, 0
      %s1484 = smul.addr %s1481, 8
      %s1485 = sadd.s32 %s1483, %s1484
      %s1486 = smul.addr %s1485, 4
      %s1487 = scalar_lea.vmem %s3, %s1486
      // Predicated region
      $region33: #{_lambda_.6} parent=31 // pred_check
        %p1488 = pneg %p124
      $region34: #{_lambda_.6} parent=31 // pred_check_branch
        %1490 = sbr.rel (%p1488) target = $region36
      $region35: #{_lambda_.6} parent=31 // pred_region
        _
      $region36: #{_lambda_.6} parent=31 // pred_fallthru
        _
    $region32: #{_lambda_.6} parent=5 // pred_fallthru
      _
    %p1491 = scmp.le.s32.totalorder 2, %s9
    // Predicated region
    $region37: #{_lambda_.6} parent=5 // pred_check
      %p1492 = pneg %p1491
    $region38: #{_lambda_.6} parent=5 // pred_check_branch
      %1494 = sbr.rel (%p1492) target = $region40
    $region39: #{_lambda_.6} parent=5 // pred_region
      %s1495 = ssub.s32 %s9, 2
      // Predicated region
      $region41: #{_lambda_.6} parent=39 // pred_check
        %p1496 = pneg %p130
      $region42: #{_lambda_.6} parent=39 // pred_check_branch
        %1498 = sbr.rel (%p1496) target = $region44
      $region43: #{_lambda_.6} parent=39 // pred_region
        %p1499 = scmp.lt.s32.totalorder %s20, 1
        %s1500 = scalar_select %p1499, %s20, 1
        %p1501 = scmp.lt.s32.totalorder %s21, 0
        %s1502 = scalar_select %p1501, %s21, 0
        %s1503 = smul.addr %s1500, 8
        %s1504 = sadd.s32 %s1502, %s1503
        %s1505 = smul.addr %s1504, 4
        %s1506 = scalar_lea.vmem %s3, %s1505
      $region44: #{_lambda_.6} parent=39 // pred_fallthru
        _
    $region40: #{_lambda_.6} parent=5 // pred_fallthru
      _
  $region6: #{_lambda_.6} parent=0 // loop_footer
    %s13 = sadd.s32 1, %s9
  $region7: #{_lambda_.6} parent=0 // loop_footer_branch
    %8 = sbr.rel target = $region3
  $region8: #{_lambda_.6} parent=0 // loop_exit
    _

</llo_original>
